<compile_context>
chip_gen: v5e
topology: v5e:2x2
jax: 0.10.0
libtpu: 0.0.40
codegen_flags: <defaults>
</compile_context>

<pallas_src>
import math

import jax
import jax.numpy as jnp
from jax import lax
from jax.experimental import pallas as pl
from jax.experimental.pallas import tpu as pltpu

# ----------------------------- config (small, synthetic) -----------------------------
B = 2                # batch
IMG_C, IMG_H, IMG_W = 3, 16, 16
IMG_FLAT = IMG_C * IMG_H * IMG_W   # 768
NUM_IMG_EMBS = 4     # tokens produced by the (synthetic) vision encoder
LANG_LEN = 4
VOCAB = 32
STATE_DIM = 6        # config.max_state_dim
ACTION_DIM = 6       # config.max_action_dim
CHUNK = 8            # config.chunk_size
PREFIX_LENGTH = 16   # config.prefix_length
H_VLM = 32           # VLM text hidden size
H_EXP = 16           # expert hidden size (expert_width_multiplier = 0.5)
D_ATTN = 32          # shared attention head dim
NUM_LAYERS = 2
MIN_PERIOD = 4e-3    # config.min_period
MAX_PERIOD = 4.0     # config.max_period
SEQ_TOTAL = PREFIX_LENGTH + CHUNK   # 24
NEG_INF = -1e30

BP = B * PREFIX_LENGTH             # 32  batch-folded prefix rows
BC = B * CHUNK                     # 16  batch-folded suffix rows
BSEQ = BP + BC                     # 48  joint rows: all prefixes first, then suffixes
STATE_ROW = NUM_IMG_EMBS + LANG_LEN   # 8, position of the state token in each prefix


# ----------------------------- packed-buffer layouts (static) -----------------------------

def _round8(n):
    return ((n + 7) // 8) * 8


# weight pack: every weight / bias as an 8-aligned row-block of one (W_ROWS, 128) buffer
W_LANES = 128
_W_SLOTS = {}
_W_ROWS = 0


def _wslot(name, rows, cols):
    global _W_ROWS
    _W_SLOTS[name] = (_W_ROWS, rows, cols)
    _W_ROWS += _round8(rows)


_wslot("img_w", IMG_FLAT, NUM_IMG_EMBS * H_VLM)
_wslot("img_b", 1, NUM_IMG_EMBS * H_VLM)
_wslot("state_w", STATE_DIM, H_VLM)
_wslot("state_b", 1, H_VLM)
_wslot("action_in_w", ACTION_DIM, H_EXP)
_wslot("action_in_b", 1, H_EXP)
_wslot("time_scale", 1, H_EXP // 2)
_wslot("at_in_w", 2 * H_EXP, H_EXP)
_wslot("at_in_b", 1, H_EXP)
_wslot("at_out_w", H_EXP, H_EXP)
_wslot("at_out_b", 1, H_EXP)
_wslot("action_out_w", H_EXP, ACTION_DIM)
_wslot("action_out_b", 1, ACTION_DIM)
for _l in range(NUM_LAYERS):
    _wslot(f"wqkv_p{_l}", H_VLM, 3 * D_ATTN)
    _wslot(f"bqkv_p{_l}", 1, 3 * D_ATTN)
    _wslot(f"wqkv_s{_l}", H_EXP, 3 * D_ATTN)
    _wslot(f"bqkv_s{_l}", 1, 3 * D_ATTN)
    _wslot(f"wo{_l}", D_ATTN, H_VLM + H_EXP)        # [wo_p | wo_s] lane-blocked
    _wslot(f"bo{_l}", 1, H_VLM + H_EXP)
    _wslot(f"mlp_p_w1_{_l}", H_VLM, 4 * H_VLM)
    _wslot(f"mlp_p_b1_{_l}", 1, 4 * H_VLM)
    _wslot(f"mlp_p_w2_{_l}", 4 * H_VLM, H_VLM)
    _wslot(f"mlp_p_b2_{_l}", 1, H_VLM)
    _wslot(f"mlp_s_w1_{_l}", H_EXP, 4 * H_EXP)
    _wslot(f"mlp_s_b1_{_l}", 1, 4 * H_EXP)
    _wslot(f"mlp_s_w2_{_l}", 4 * H_EXP, H_EXP)
    _wslot(f"mlp_s_b2_{_l}", 1, H_EXP)
W_ROWS = _round8(_W_ROWS)   # 1656 rows -> ~848 KB resident

# data pack: attention bias + language prefix + suffix data + state in one buffer
D_LANES = BSEQ                       # 48
_DP_BIAS = 0                         # (BSEQ, BSEQ)
_DP_LANG = _DP_BIAS + BSEQ           # (BP, H_VLM)
_DP_SUFF = _DP_LANG + BP             # (BC, 2*ACTION_DIM + 1) = [actions | noise | time]
_DP_STATE = _DP_SUFF + BC            # (B, STATE_DIM)
D_ROWS = _round8(_DP_STATE + B)      # 104


# ----------------------------- fused Pallas kernel -----------------------------

def _fused_vla_kernel(dpack_ref, img_ref, w_ref, loss_ref):
    def mm(a, b):
        return jnp.dot(a, b, preferred_element_type=jnp.float32)

    def w(name):
        off, r, c = _W_SLOTS[name]
        return w_ref[off:off + r, 0:c]

    # ---------------- unpack the consolidated data buffer ----------------
    bias = dpack_ref[_DP_BIAS:_DP_BIAS + BSEQ, 0:BSEQ]                 # (48, 48)
    lang_p = dpack_ref[_DP_LANG:_DP_LANG + BP, 0:H_VLM]                # (32, 32)
    suff = dpack_ref[_DP_SUFF:_DP_SUFF + BC, 0:2 * ACTION_DIM + 1]     # (16, 13)
    acts = suff[:, 0:ACTION_DIM]
    nz = suff[:, ACTION_DIM:2 * ACTION_DIM]
    t_rows = suff[:, 2 * ACTION_DIM:2 * ACTION_DIM + 1]                # (16, 1)
    state = dpack_ref[_DP_STATE:_DP_STATE + B, 0:STATE_DIM]            # (2, 6)

    # ---------------- prefix embedding: (B*PREFIX_LENGTH, H_VLM) ----------------
    # one lane-dense matmul for all image tokens, then tiny one-hot scatter matmuls
    img_tok = (mm(img_ref[...], w("img_w")) + w("img_b")) * (H_VLM ** 0.5)   # (2, 128)
    state_tok = mm(state, w("state_w")) + w("state_b")                        # (2, 32)

    row_ids = lax.broadcasted_iota(jnp.int32, (BP, B), 0)
    col_ids = lax.broadcasted_iota(jnp.int32, (BP, B), 1)
    p = lang_p
    for t in range(NUM_IMG_EMBS):
        sel = (row_ids == col_ids * PREFIX_LENGTH + t).astype(jnp.float32)    # (32, 2)
        p = p + mm(sel, img_tok[:, t * H_VLM:(t + 1) * H_VLM])
    sel_state = (row_ids == col_ids * PREFIX_LENGTH + STATE_ROW).astype(jnp.float32)
    p = p + mm(sel_state, state_tok)
    # padded prefix rows (9..15 of each batch) stay exactly zero.

    # ---------------- suffix embedding: (B*CHUNK, H_EXP) ----------------
    x_t = t_rows * nz + (1.0 - t_rows) * acts
    u_t = nz - acts

    a_emb = mm(x_t, w("action_in_w")) + w("action_in_b")                # (16, 16)
    sin_in = t_rows * w("time_scale")                                   # (16, 8)
    at_in_w = w("at_in_w")                                              # (32, 16)
    half = H_EXP // 2
    # action_time_mlp_in applied without materializing concat([a_emb, sin, cos]):
    h = (mm(a_emb, at_in_w[0:H_EXP, :])
         + mm(jnp.sin(sin_in), at_in_w[H_EXP:H_EXP + half, :])
         + mm(jnp.cos(sin_in), at_in_w[H_EXP + half:2 * H_EXP, :])
         + w("at_in_b"))
    h = h * jax.nn.sigmoid(h)                                           # SiLU
    s = mm(h, w("at_out_w")) + w("at_out_b")                            # (16, 16)

    inv_sqrt_d = 1.0 / math.sqrt(D_ATTN)

    # ---------------- joint VLM+expert transformer (synthetic) ----------------
    for l in range(NUM_LAYERS):
        # one fused QKV matmul per stream, then cheap 8-aligned concat (no scratch)
        qkv_p = mm(p, w(f"wqkv_p{l}")) + w(f"bqkv_p{l}")                # (32, 96)
        qkv_s = mm(s, w(f"wqkv_s{l}")) + w(f"bqkv_s{l}")                # (16, 96)
        qkv = jnp.concatenate([qkv_p, qkv_s], axis=0)                   # (48, 96)
        q = qkv[:, 0:D_ATTN]
        k = qkv[:, D_ATTN:2 * D_ATTN]
        v = qkv[:, 2 * D_ATTN:3 * D_ATTN]

        # scores = q @ k^T without materializing a transpose
        scores = lax.dot_general(q, k, (((1,), (1,)), ((), ())),
                                 preferred_element_type=jnp.float32) * inv_sqrt_d
        scores = scores + bias
        scores = scores - jnp.max(scores, axis=-1, keepdims=True)
        pexp = jnp.exp(scores)
        denom = jnp.sum(pexp, axis=-1, keepdims=True)
        attn = mm(pexp, v) * pl.reciprocal(denom, approx=True)          # (48, 32)

        # fused (lane-blocked) output projection for both streams in one matmul
        o = mm(attn, w(f"wo{l}")) + w(f"bo{l}")                         # (48, 48)
        p = p + o[0:BP, 0:H_VLM]
        s = s + o[BP:BSEQ, H_VLM:H_VLM + H_EXP]

        hp = mm(p, w(f"mlp_p_w1_{l}")) + w(f"mlp_p_b1_{l}")
        hp = hp * jax.nn.sigmoid(hp)
        p = p + mm(hp, w(f"mlp_p_w2_{l}")) + w(f"mlp_p_b2_{l}")

        hs = mm(s, w(f"mlp_s_w1_{l}")) + w(f"mlp_s_b1_{l}")
        hs = hs * jax.nn.sigmoid(hs)
        s = s + mm(hs, w(f"mlp_s_w2_{l}")) + w(f"mlp_s_b2_{l}")

    # ---------------- action head + flow-matching loss (fused) ----------------
    v_t = mm(s, w("action_out_w")) + w("action_out_b")                  # (16, 6)
    d = u_t - v_t
    loss_ref[...] = d * d


# ----------------------------- forward (glue + one pallas_call) -----------------------------

def vla_flow_matching_forward(params, images, img_masks, lang_tokens, lang_masks,
                              state, actions, noise, time):
    bsize = state.shape[0]
    assert bsize == B

    # TODO(synk): language-token embedding gather stays in JAX glue (no clean Pallas gather).
    lang_emb = jnp.take(params["tok_emb"], lang_tokens, axis=0) * math.sqrt(H_VLM)
    lang_prefix = jnp.zeros((bsize, PREFIX_LENGTH, H_VLM), jnp.float32)
    lang_prefix = lang_prefix.at[:, NUM_IMG_EMBS:NUM_IMG_EMBS + LANG_LEN, :].set(lang_emb)
    lang_flat = lang_prefix.reshape(bsize * PREFIX_LENGTH, H_VLM)

    img_flat = images[0].reshape(bsize, IMG_FLAT).astype(jnp.float32)   # NCHW flatten

    # pad / attention bookkeeping (make_att_2d_masks), batch-block-diagonal joint order
    n_real = NUM_IMG_EMBS + LANG_LEN + 1
    img_pad = jnp.broadcast_to(img_masks[0][:, None], (bsize, NUM_IMG_EMBS))
    prefix_pad = jnp.concatenate(
        [img_pad, lang_masks, jnp.ones((bsize, 1), bool),
         jnp.zeros((bsize, PREFIX_LENGTH - n_real), bool)], axis=1)
    prefix_att = jnp.concatenate(
        [jnp.zeros((bsize, NUM_IMG_EMBS + LANG_LEN), jnp.int32),
         jnp.ones((bsize, 1), jnp.int32),
         jnp.zeros((bsize, PREFIX_LENGTH - n_real), jnp.int32)], axis=1)
    pad_masks = jnp.concatenate([prefix_pad, jnp.ones((bsize, CHUNK), bool)], axis=1)
    att_masks = jnp.concatenate([prefix_att, jnp.ones((bsize, CHUNK), jnp.int32)], axis=1)
    cumsum = jnp.cumsum(att_masks, axis=1)
    position_ids = jnp.cumsum(pad_masks.astype(jnp.int32), axis=1) - 1   # noqa: F841
    # TODO(synk): position_ids / RoPE are not applied inside the synthetic transformer.

    def to_joint(x):   # (B, SEQ_TOTAL) -> (B*SEQ_TOTAL,) with all prefixes first
        return jnp.concatenate([x[:, :PREFIX_LENGTH].reshape(-1),
                                x[:, PREFIX_LENGTH:].reshape(-1)], axis=0)

    cs_j = to_joint(cumsum)
    pad_j = to_joint(pad_masks)
    batch_j = jnp.concatenate([jnp.repeat(jnp.arange(bsize), PREFIX_LENGTH),
                               jnp.repeat(jnp.arange(bsize), CHUNK)], axis=0)
    allowed = ((cs_j[None, :] <= cs_j[:, None])
               & (batch_j[None, :] == batch_j[:, None])
               & pad_j[None, :] & pad_j[:, None])
    bias = jnp.where(allowed, 0.0, NEG_INF).astype(jnp.float32)          # (48, 48)

    actions_flat = actions.reshape(bsize * CHUNK, ACTION_DIM).astype(jnp.float32)
    noise_flat = noise.reshape(bsize * CHUNK, ACTION_DIM).astype(jnp.float32)
    time_rows = jnp.repeat(time.astype(jnp.float32), CHUNK)[:, None]     # (16, 1)

    # one consolidated "data" DMA: bias | language prefix | actions,noise,time | state
    lang_block = jnp.pad(lang_flat, ((0, 0), (0, D_LANES - H_VLM)))
    suffix_block = jnp.concatenate([actions_flat, noise_flat, time_rows], axis=1)
    suffix_block = jnp.pad(suffix_block, ((0, 0), (0, D_LANES - suffix_block.shape[1])))
    state_block = jnp.pad(state.astype(jnp.float32), ((0, 0), (0, D_LANES - STATE_DIM)))
    dpack = jnp.concatenate([bias, lang_block, suffix_block, state_block], axis=0)
    dpack = jnp.pad(dpack, ((0, D_ROWS - dpack.shape[0]), (0, 0)))

    losses_flat = pl.pallas_call(
        _fused_vla_kernel,
        out_shape=jax.ShapeDtypeStruct((bsize * CHUNK, ACTION_DIM), jnp.float32),
        grid=(1,),   # batch folded into matmul rows -> one step; avoids duplicating
                     # the resident-weight DMA per TensorCore at B=2 (perf review)
        in_specs=[
            pl.BlockSpec((D_ROWS, D_LANES), lambda i: (0, 0)),
            pl.BlockSpec((bsize, IMG_FLAT), lambda i: (0, 0)),
            pl.BlockSpec((W_ROWS, W_LANES), lambda i: (0, 0)),
        ],
        out_specs=pl.BlockSpec((bsize * CHUNK, ACTION_DIM), lambda i: (0, 0)),
        compiler_params=pltpu.CompilerParams(
            dimension_semantics=("arbitrary",),
            vmem_limit_bytes=8 * 1024 * 1024,
        ),
    )(dpack, img_flat, params["wpack"])
    # TODO(synk): the (., ACTION_DIM=6) writeback is a masked store; bytes are tiny,
    # so a lane-padded output was not worth an in-kernel relayout.
    return losses_flat.reshape(bsize, CHUNK, ACTION_DIM)


# ----------------------------- deterministic parameter init -----------------------------

def init_params(key):
    keys = iter(jax.random.split(key, 64))

    def dense(shape, scale=0.02):
        return scale * jax.random.normal(next(keys), shape, dtype=jnp.float32)

    def zeros(shape):
        return jnp.zeros(shape, dtype=jnp.float32)

    # sinusoidal time-embedding scaling factors (2*pi / period), precomputed once
    fraction = jnp.linspace(0.0, 1.0, H_EXP // 2, dtype=jnp.float32)
    period = MIN_PERIOD * (MAX_PERIOD / MIN_PERIOD) ** fraction
    time_scale = ((1.0 / period) * 2.0 * math.pi).reshape(1, H_EXP // 2)

    vals = {
        "img_w": dense((IMG_FLAT, NUM_IMG_EMBS * H_VLM)),
        "img_b": zeros((1, NUM_IMG_EMBS * H_VLM)),
        "state_w": dense((STATE_DIM, H_VLM)),
        "state_b": zeros((1, H_VLM)),
        "action_in_w": dense((ACTION_DIM, H_EXP)),
        "action_in_b": zeros((1, H_EXP)),
        "time_scale": time_scale,
        "at_in_w": dense((2 * H_EXP, H_EXP)),   # rows: [a_emb(16) | sin(8) | cos(8)]
        "at_in_b": zeros((1, H_EXP)),
        "at_out_w": dense((H_EXP, H_EXP)),
        "at_out_b": zeros((1, H_EXP)),
        "action_out_w": dense((H_EXP, ACTION_DIM)),
        "action_out_b": zeros((1, ACTION_DIM)),
    }
    for l in range(NUM_LAYERS):
        vals[f"wqkv_p{l}"] = dense((H_VLM, 3 * D_ATTN))
        vals[f"bqkv_p{l}"] = zeros((1, 3 * D_ATTN))
        vals[f"wqkv_s{l}"] = dense((H_EXP, 3 * D_ATTN))
        vals[f"bqkv_s{l}"] = zeros((1, 3 * D_ATTN))
        vals[f"wo{l}"] = jnp.concatenate(
            [dense((D_ATTN, H_VLM)), dense((D_ATTN, H_EXP))], axis=1)
        vals[f"bo{l}"] = zeros((1, H_VLM + H_EXP))
        vals[f"mlp_p_w1_{l}"] = dense((H_VLM, 4 * H_VLM))
        vals[f"mlp_p_b1_{l}"] = zeros((1, 4 * H_VLM))
        vals[f"mlp_p_w2_{l}"] = dense((4 * H_VLM, H_VLM))
        vals[f"mlp_p_b2_{l}"] = zeros((1, H_VLM))
        vals[f"mlp_s_w1_{l}"] = dense((H_EXP, 4 * H_EXP))
        vals[f"mlp_s_b1_{l}"] = zeros((1, 4 * H_EXP))
        vals[f"mlp_s_w2_{l}"] = dense((4 * H_EXP, H_EXP))
        vals[f"mlp_s_b2_{l}"] = zeros((1, H_EXP))

    wpack = jnp.zeros((W_ROWS, W_LANES), jnp.float32)
    for name, (off, r, c) in _W_SLOTS.items():
        wpack = wpack.at[off:off + r, 0:c].set(vals[name])

    return {"tok_emb": dense((VOCAB, H_VLM)), "wpack": wpack}


# ----------------------------- main -----------------------------

if __name__ == "__main__":
    key = jax.random.PRNGKey(0)
    kp, kimg, ktok, kstate, kact, knoise, ktime = jax.random.split(key, 7)

    params = init_params(kp)

    images = [jax.random.normal(kimg, (B, IMG_C, IMG_H, IMG_W), dtype=jnp.float32)]
    img_masks = [jnp.ones((B,), dtype=bool)]
    lang_tokens = jax.random.randint(ktok, (B, LANG_LEN), 0, VOCAB)
    lang_masks = jnp.ones((B, LANG_LEN), dtype=bool)
    state = jax.random.normal(kstate, (B, STATE_DIM), dtype=jnp.float32)
    actions = jax.random.normal(kact, (B, CHUNK, ACTION_DIM), dtype=jnp.float32)
    # deterministic stand-ins for sample_noise / sample_time (Beta(1.5, 1.0)*0.999+0.001)
    noise = jax.random.normal(knoise, (B, CHUNK, ACTION_DIM), dtype=jnp.float32)
    time = jax.random.beta(ktime, 1.5, 1.0, (B,)).astype(jnp.float32) * 0.999 + 0.001

    fwd = jax.jit(vla_flow_matching_forward)
    losses = fwd(params, images, img_masks, lang_tokens, lang_masks,
                 state, actions, noise, time)
    losses = jax.block_until_ready(losses)

    assert losses.shape == (B, CHUNK, ACTION_DIM), losses.shape
    assert bool(jnp.all(jnp.isfinite(losses)))
    print("KERNEL_OK")
</pallas_src>

<mosaic_0001>
module attributes {stable_mosaic.version = 11 : i64} {
  func.func @_fused_vla_kernel(%arg0: i32, %arg1: memref<104x48xf32, #tpu.memory_space<vmem>>, %arg2: memref<2x768xf32, #tpu.memory_space<vmem>>, %arg3: memref<1656x128xf32, #tpu.memory_space<vmem>>, %arg4: memref<16x6xf32, #tpu.memory_space<vmem>>) attributes {dimension_semantics = [#tpu.dimension_semantics<arbitrary>], iteration_bounds = array<i64: 1>, scalar_prefetch = 0 : i64, scratch_operands = 0 : i64, tpu.core_type = #tpu.core_type<tc>, window_params = [{pipeline_mode = #tpu.pipeline_mode<synchronous>, transform_indices = @transform_0, window_bounds = array<i64: 104, 48>}, {pipeline_mode = #tpu.pipeline_mode<synchronous>, transform_indices = @transform_1, window_bounds = array<i64: 2, 768>}, {pipeline_mode = #tpu.pipeline_mode<synchronous>, transform_indices = @transform_2, window_bounds = array<i64: 1656, 128>}, {pipeline_mode = #tpu.pipeline_mode<synchronous>, transform_indices = @transform_3, window_bounds = array<i64: 16, 6>}]} {
    %c0 = arith.constant 0 : index
    %c0_0 = arith.constant 0 : index
    %0 = vector.load %arg1[%c0, %c0_0] : memref<104x48xf32, #tpu.memory_space<vmem>>, vector<48x48xf32>
    %c48 = arith.constant 48 : index
    %c0_1 = arith.constant 0 : index
    %1 = vector.load %arg1[%c48, %c0_1] : memref<104x48xf32, #tpu.memory_space<vmem>>, vector<32x32xf32>
    %c80 = arith.constant 80 : index
    %c0_2 = arith.constant 0 : index
    %2 = vector.load %arg1[%c80, %c0_2] : memref<104x48xf32, #tpu.memory_space<vmem>>, vector<16x13xf32>
    %3 = vector.extract_strided_slice %2 {offsets = [0, 0], sizes = [16, 6], strides = [1, 1]} : vector<16x13xf32> to vector<16x6xf32>
    %4 = vector.extract_strided_slice %2 {offsets = [0, 6], sizes = [16, 6], strides = [1, 1]} : vector<16x13xf32> to vector<16x6xf32>
    %5 = vector.extract_strided_slice %2 {offsets = [0, 12], sizes = [16, 1], strides = [1, 1]} : vector<16x13xf32> to vector<16x1xf32>
    %c96 = arith.constant 96 : index
    %c0_3 = arith.constant 0 : index
    %6 = vector.load %arg1[%c96, %c0_3] : memref<104x48xf32, #tpu.memory_space<vmem>>, vector<2x6xf32>
    %c0_4 = arith.constant 0 : index
    %c0_5 = arith.constant 0 : index
    %7 = vector.load %arg2[%c0_4, %c0_5] : memref<2x768xf32, #tpu.memory_space<vmem>>, vector<2x768xf32>
    %c0_6 = arith.constant 0 : index
    %c0_7 = arith.constant 0 : index
    %8 = vector.load %arg3[%c0_6, %c0_7] : memref<1656x128xf32, #tpu.memory_space<vmem>>, vector<768x128xf32>
    %cst = arith.constant dense<0.000000e+00> : vector<2x128xf32>
    %9 = tpu.matmul %7, %8, %cst {dimension_numbers = #tpu.dot_dimension_numbers<[1], [0], [0], [1], [0, 0, 1, 1], [], []>} : vector<2x768xf32>, vector<768x128xf32>, vector<2x128xf32> -> vector<2x128xf32>
    %c768 = arith.constant 768 : index
    %c0_8 = arith.constant 0 : index
    %10 = vector.load %arg3[%c768, %c0_8] : memref<1656x128xf32, #tpu.memory_space<vmem>>, vector<1x128xf32>
    %11 = vector.broadcast %10 : vector<1x128xf32> to vector<2x128xf32>
    %12 = arith.addf %9, %11 : vector<2x128xf32>
    %cst_9 = arith.constant 5.65685415 : f32
    %13 = vector.broadcast %cst_9 : f32 to vector<2x128xf32>
    %14 = arith.mulf %12, %13 : vector<2x128xf32>
    %c776 = arith.constant 776 : index
    %c0_10 = arith.constant 0 : index
    %15 = vector.load %arg3[%c776, %c0_10] : memref<1656x128xf32, #tpu.memory_space<vmem>>, vector<6x32xf32>
    %cst_11 = arith.constant dense<0.000000e+00> : vector<2x32xf32>
    %16 = tpu.matmul %6, %15, %cst_11 {dimension_numbers = #tpu.dot_dimension_numbers<[1], [0], [0], [1], [0, 0, 1, 1], [], []>} : vector<2x6xf32>, vector<6x32xf32>, vector<2x32xf32> -> vector<2x32xf32>
    %c784 = arith.constant 784 : index
    %c0_12 = arith.constant 0 : index
    %17 = vector.load %arg3[%c784, %c0_12] : memref<1656x128xf32, #tpu.memory_space<vmem>>, vector<1x32xf32>
    %18 = vector.broadcast %17 : vector<1x32xf32> to vector<2x32xf32>
    %19 = arith.addf %16, %18 : vector<2x32xf32>
    %20 = tpu.iota {dimensions = array<i32: 0>} : vector<32x2xi32>
    %21 = tpu.iota {dimensions = array<i32: 1>} : vector<32x2xi32>
    %c16_i32 = arith.constant 16 : i32
    %22 = vector.broadcast %c16_i32 : i32 to vector<32x2xi32>
    %23 = arith.muli %21, %22 : vector<32x2xi32>
    %c0_i32 = arith.constant 0 : i32
    %24 = vector.broadcast %c0_i32 : i32 to vector<32x2xi32>
    %25 = arith.addi %23, %24 : vector<32x2xi32>
    %26 = arith.cmpi eq, %20, %25 : vector<32x2xi32>
    %27 = arith.extui %26 : vector<32x2xi1> to vector<32x2xi32>
    %28 = arith.sitofp %27 : vector<32x2xi32> to vector<32x2xf32>
    %29 = vector.extract_strided_slice %14 {offsets = [0, 0], sizes = [2, 32], strides = [1, 1]} : vector<2x128xf32> to vector<2x32xf32>
    %cst_13 = arith.constant dense<0.000000e+00> : vector<32x32xf32>
    %30 = tpu.matmul %28, %29, %cst_13 {dimension_numbers = #tpu.dot_dimension_numbers<[1], [0], [0], [1], [0, 0, 1, 1], [], []>} : vector<32x2xf32>, vector<2x32xf32>, vector<32x32xf32> -> vector<32x32xf32>
    %31 = arith.addf %1, %30 : vector<32x32xf32>
    %c16_i32_14 = arith.constant 16 : i32
    %32 = vector.broadcast %c16_i32_14 : i32 to vector<32x2xi32>
    %33 = arith.muli %21, %32 : vector<32x2xi32>
    %c1_i32 = arith.constant 1 : i32
    %34 = vector.broadcast %c1_i32 : i32 to vector<32x2xi32>
    %35 = arith.addi %33, %34 : vector<32x2xi32>
    %36 = arith.cmpi eq, %20, %35 : vector<32x2xi32>
    %37 = arith.extui %36 : vector<32x2xi1> to vector<32x2xi32>
    %38 = arith.sitofp %37 : vector<32x2xi32> to vector<32x2xf32>
    %39 = vector.extract_strided_slice %14 {offsets = [0, 32], sizes = [2, 32], strides = [1, 1]} : vector<2x128xf32> to vector<2x32xf32>
    %cst_15 = arith.constant dense<0.000000e+00> : vector<32x32xf32>
    %40 = tpu.matmul %38, %39, %cst_15 {dimension_numbers = #tpu.dot_dimension_numbers<[1], [0], [0], [1], [0, 0, 1, 1], [], []>} : vector<32x2xf32>, vector<2x32xf32>, vector<32x32xf32> -> vector<32x32xf32>
    %41 = arith.addf %31, %40 : vector<32x32xf32>
    %c16_i32_16 = arith.constant 16 : i32
    %42 = vector.broadcast %c16_i32_16 : i32 to vector<32x2xi32>
    %43 = arith.muli %21, %42 : vector<32x2xi32>
    %c2_i32 = arith.constant 2 : i32
    %44 = vector.broadcast %c2_i32 : i32 to vector<32x2xi32>
    %45 = arith.addi %43, %44 : vector<32x2xi32>
    %46 = arith.cmpi eq, %20, %45 : vector<32x2xi32>
    %47 = arith.extui %46 : vector<32x2xi1> to vector<32x2xi32>
    %48 = arith.sitofp %47 : vector<32x2xi32> to vector<32x2xf32>
    %49 = vector.extract_strided_slice %14 {offsets = [0, 64], sizes = [2, 32], strides = [1, 1]} : vector<2x128xf32> to vector<2x32xf32>
    %cst_17 = arith.constant dense<0.000000e+00> : vector<32x32xf32>
    %50 = tpu.matmul %48, %49, %cst_17 {dimension_numbers = #tpu.dot_dimension_numbers<[1], [0], [0], [1], [0, 0, 1, 1], [], []>} : vector<32x2xf32>, vector<2x32xf32>, vector<32x32xf32> -> vector<32x32xf32>
    %51 = arith.addf %41, %50 : vector<32x32xf32>
    %c16_i32_18 = arith.constant 16 : i32
    %52 = vector.broadcast %c16_i32_18 : i32 to vector<32x2xi32>
    %53 = arith.muli %21, %52 : vector<32x2xi32>
    %c3_i32 = arith.constant 3 : i32
    %54 = vector.broadcast %c3_i32 : i32 to vector<32x2xi32>
    %55 = arith.addi %53, %54 : vector<32x2xi32>
    %56 = arith.cmpi eq, %20, %55 : vector<32x2xi32>
    %57 = arith.extui %56 : vector<32x2xi1> to vector<32x2xi32>
    %58 = arith.sitofp %57 : vector<32x2xi32> to vector<32x2xf32>
    %59 = vector.extract_strided_slice %14 {offsets = [0, 96], sizes = [2, 32], strides = [1, 1]} : vector<2x128xf32> to vector<2x32xf32>
    %cst_19 = arith.constant dense<0.000000e+00> : vector<32x32xf32>
    %60 = tpu.matmul %58, %59, %cst_19 {dimension_numbers = #tpu.dot_dimension_numbers<[1], [0], [0], [1], [0, 0, 1, 1], [], []>} : vector<32x2xf32>, vector<2x32xf32>, vector<32x32xf32> -> vector<32x32xf32>
    %61 = arith.addf %51, %60 : vector<32x32xf32>
    %c16_i32_20 = arith.constant 16 : i32
    %62 = vector.broadcast %c16_i32_20 : i32 to vector<32x2xi32>
    %63 = arith.muli %21, %62 : vector<32x2xi32>
    %c8_i32 = arith.constant 8 : i32
    %64 = vector.broadcast %c8_i32 : i32 to vector<32x2xi32>
    %65 = arith.addi %63, %64 : vector<32x2xi32>
    %66 = arith.cmpi eq, %20, %65 : vector<32x2xi32>
    %67 = arith.extui %66 : vector<32x2xi1> to vector<32x2xi32>
    %68 = arith.sitofp %67 : vector<32x2xi32> to vector<32x2xf32>
    %cst_21 = arith.constant dense<0.000000e+00> : vector<32x32xf32>
    %69 = tpu.matmul %68, %19, %cst_21 {dimension_numbers = #tpu.dot_dimension_numbers<[1], [0], [0], [1], [0, 0, 1, 1], [], []>} : vector<32x2xf32>, vector<2x32xf32>, vector<32x32xf32> -> vector<32x32xf32>
    %70 = arith.addf %61, %69 : vector<32x32xf32>
    %71 = vector.broadcast %5 : vector<16x1xf32> to vector<16x6xf32>
    %72 = arith.mulf %71, %4 : vector<16x6xf32>
    %cst_22 = arith.constant 1.000000e+00 : f32
    %73 = vector.broadcast %cst_22 : f32 to vector<16x1xf32>
    %74 = arith.subf %73, %5 : vector<16x1xf32>
    %75 = vector.broadcast %74 : vector<16x1xf32> to vector<16x6xf32>
    %76 = arith.mulf %75, %3 : vector<16x6xf32>
    %77 = arith.addf %72, %76 : vector<16x6xf32>
    %78 = arith.subf %4, %3 : vector<16x6xf32>
    %c792 = arith.constant 792 : index
    %c0_23 = arith.constant 0 : index
    %79 = vector.load %arg3[%c792, %c0_23] : memref<1656x128xf32, #tpu.memory_space<vmem>>, vector<6x16xf32>
    %cst_24 = arith.constant dense<0.000000e+00> : vector<16x16xf32>
    %80 = tpu.matmul %77, %79, %cst_24 {dimension_numbers = #tpu.dot_dimension_numbers<[1], [0], [0], [1], [0, 0, 1, 1], [], []>} : vector<16x6xf32>, vector<6x16xf32>, vector<16x16xf32> -> vector<16x16xf32>
    %c800 = arith.constant 800 : index
    %c0_25 = arith.constant 0 : index
    %81 = vector.load %arg3[%c800, %c0_25] : memref<1656x128xf32, #tpu.memory_space<vmem>>, vector<1x16xf32>
    %82 = vector.broadcast %81 : vector<1x16xf32> to vector<16x16xf32>
    %83 = arith.addf %80, %82 : vector<16x16xf32>
    %c808 = arith.constant 808 : index
    %c0_26 = arith.constant 0 : index
    %84 = vector.load %arg3[%c808, %c0_26] : memref<1656x128xf32, #tpu.memory_space<vmem>>, vector<1x8xf32>
    %85 = vector.broadcast %5 : vector<16x1xf32> to vector<16x8xf32>
    %86 = vector.broadcast %84 : vector<1x8xf32> to vector<16x8xf32>
    %87 = arith.mulf %85, %86 : vector<16x8xf32>
    %c816 = arith.constant 816 : index
    %c0_27 = arith.constant 0 : index
    %88 = vector.load %arg3[%c816, %c0_27] : memref<1656x128xf32, #tpu.memory_space<vmem>>, vector<32x16xf32>
    %89 = vector.extract_strided_slice %88 {offsets = [0, 0], sizes = [16, 16], strides = [1, 1]} : vector<32x16xf32> to vector<16x16xf32>
    %cst_28 = arith.constant dense<0.000000e+00> : vector<16x16xf32>
    %90 = tpu.matmul %83, %89, %cst_28 {dimension_numbers = #tpu.dot_dimension_numbers<[1], [0], [0], [1], [0, 0, 1, 1], [], []>} : vector<16x16xf32>, vector<16x16xf32>, vector<16x16xf32> -> vector<16x16xf32>
    %91 = math.sin %87 : vector<16x8xf32>
    %92 = vector.extract_strided_slice %88 {offsets = [16, 0], sizes = [8, 16], strides = [1, 1]} : vector<32x16xf32> to vector<8x16xf32>
    %cst_29 = arith.constant dense<0.000000e+00> : vector<16x16xf32>
    %93 = tpu.matmul %91, %92, %cst_29 {dimension_numbers = #tpu.dot_dimension_numbers<[1], [0], [0], [1], [0, 0, 1, 1], [], []>} : vector<16x8xf32>, vector<8x16xf32>, vector<16x16xf32> -> vector<16x16xf32>
    %94 = arith.addf %90, %93 : vector<16x16xf32>
    %95 = math.cos %87 : vector<16x8xf32>
    %96 = vector.extract_strided_slice %88 {offsets = [24, 0], sizes = [8, 16], strides = [1, 1]} : vector<32x16xf32> to vector<8x16xf32>
    %cst_30 = arith.constant dense<0.000000e+00> : vector<16x16xf32>
    %97 = tpu.matmul %95, %96, %cst_30 {dimension_numbers = #tpu.dot_dimension_numbers<[1], [0], [0], [1], [0, 0, 1, 1], [], []>} : vector<16x8xf32>, vector<8x16xf32>, vector<16x16xf32> -> vector<16x16xf32>
    %98 = arith.addf %94, %97 : vector<16x16xf32>
    %c848 = arith.constant 848 : index
    %c0_31 = arith.constant 0 : index
    %99 = vector.load %arg3[%c848, %c0_31] : memref<1656x128xf32, #tpu.memory_space<vmem>>, vector<1x16xf32>
    %100 = vector.broadcast %99 : vector<1x16xf32> to vector<16x16xf32>
    %101 = arith.addf %98, %100 : vector<16x16xf32>
    %102 = arith.negf %101 : vector<16x16xf32>
    %103 = math.exp %102 : vector<16x16xf32>
    %cst_32 = arith.constant 1.000000e+00 : f32
    %104 = vector.broadcast %cst_32 : f32 to vector<16x16xf32>
    %105 = arith.addf %104, %103 : vector<16x16xf32>
    %106 = arith.divf %104, %105 : vector<16x16xf32>
    %107 = arith.mulf %101, %106 : vector<16x16xf32>
    %c856 = arith.constant 856 : index
    %c0_33 = arith.constant 0 : index
    %108 = vector.load %arg3[%c856, %c0_33] : memref<1656x128xf32, #tpu.memory_space<vmem>>, vector<16x16xf32>
    %cst_34 = arith.constant dense<0.000000e+00> : vector<16x16xf32>
    %109 = tpu.matmul %107, %108, %cst_34 {dimension_numbers = #tpu.dot_dimension_numbers<[1], [0], [0], [1], [0, 0, 1, 1], [], []>} : vector<16x16xf32>, vector<16x16xf32>, vector<16x16xf32> -> vector<16x16xf32>
    %c872 = arith.constant 872 : index
    %c0_35 = arith.constant 0 : index
    %110 = vector.load %arg3[%c872, %c0_35] : memref<1656x128xf32, #tpu.memory_space<vmem>>, vector<1x16xf32>
    %111 = vector.broadcast %110 : vector<1x16xf32> to vector<16x16xf32>
    %112 = arith.addf %109, %111 : vector<16x16xf32>
    %c904 = arith.constant 904 : index
    %c0_36 = arith.constant 0 : index
    %113 = vector.load %arg3[%c904, %c0_36] : memref<1656x128xf32, #tpu.memory_space<vmem>>, vector<32x96xf32>
    %cst_37 = arith.constant dense<0.000000e+00> : vector<32x96xf32>
    %114 = tpu.matmul %70, %113, %cst_37 {dimension_numbers = #tpu.dot_dimension_numbers<[1], [0], [0], [1], [0, 0, 1, 1], [], []>} : vector<32x32xf32>, vector<32x96xf32>, vector<32x96xf32> -> vector<32x96xf32>
    %c936 = arith.constant 936 : index
    %c0_38 = arith.constant 0 : index
    %115 = vector.load %arg3[%c936, %c0_38] : memref<1656x128xf32, #tpu.memory_space<vmem>>, vector<1x96xf32>
    %116 = vector.broadcast %115 : vector<1x96xf32> to vector<32x96xf32>
    %117 = arith.addf %114, %116 : vector<32x96xf32>
    %c944 = arith.constant 944 : index
    %c0_39 = arith.constant 0 : index
    %118 = vector.load %arg3[%c944, %c0_39] : memref<1656x128xf32, #tpu.memory_space<vmem>>, vector<16x96xf32>
    %cst_40 = arith.constant dense<0.000000e+00> : vector<16x96xf32>
    %119 = tpu.matmul %112, %118, %cst_40 {dimension_numbers = #tpu.dot_dimension_numbers<[1], [0], [0], [1], [0, 0, 1, 1], [], []>} : vector<16x16xf32>, vector<16x96xf32>, vector<16x96xf32> -> vector<16x96xf32>
    %c960 = arith.constant 960 : index
    %c0_41 = arith.constant 0 : index
    %120 = vector.load %arg3[%c960, %c0_41] : memref<1656x128xf32, #tpu.memory_space<vmem>>, vector<1x96xf32>
    %121 = vector.broadcast %120 : vector<1x96xf32> to vector<16x96xf32>
    %122 = arith.addf %119, %121 : vector<16x96xf32>
    %123 = tpu.concatenate %117, %122 in 0 : vector<32x96xf32>, vector<16x96xf32> -> vector<48x96xf32>
    %124 = vector.extract_strided_slice %123 {offsets = [0, 0], sizes = [48, 32], strides = [1, 1]} : vector<48x96xf32> to vector<48x32xf32>
    %125 = vector.extract_strided_slice %123 {offsets = [0, 32], sizes = [48, 32], strides = [1, 1]} : vector<48x96xf32> to vector<48x32xf32>
    %126 = vector.extract_strided_slice %123 {offsets = [0, 64], sizes = [48, 32], strides = [1, 1]} : vector<48x96xf32> to vector<48x32xf32>
    %cst_42 = arith.constant dense<0.000000e+00> : vector<48x48xf32>
    %127 = tpu.matmul %124, %125, %cst_42 {dimension_numbers = #tpu.dot_dimension_numbers<[1], [1], [0], [0], [0, 0, 1, 0], [], []>} : vector<48x32xf32>, vector<48x32xf32>, vector<48x48xf32> -> vector<48x48xf32>
    %cst_43 = arith.constant 0.176776692 : f32
    %128 = vector.broadcast %cst_43 : f32 to vector<48x48xf32>
    %129 = arith.mulf %127, %128 : vector<48x48xf32>
    %130 = arith.addf %129, %0 : vector<48x48xf32>
    %cst_44 = arith.constant dense<0xFF800000> : vector<48xf32>
    %131 = vector.multi_reduction <maximumf>, %130, %cst_44 [1] : vector<48x48xf32> to vector<48xf32>
    %132 = vector.shape_cast %131 : vector<48xf32> to vector<48x1xf32>
    %133 = vector.broadcast %132 : vector<48x1xf32> to vector<48x48xf32>
    %134 = arith.subf %130, %133 : vector<48x48xf32>
    %135 = math.exp %134 : vector<48x48xf32>
    %cst_45 = arith.constant dense<0.000000e+00> : vector<48xf32>
    %136 = vector.multi_reduction <add>, %135, %cst_45 [1] : vector<48x48xf32> to vector<48xf32>
    %137 = vector.shape_cast %136 : vector<48xf32> to vector<48x1xf32>
    %cst_46 = arith.constant dense<0.000000e+00> : vector<48x32xf32>
    %138 = tpu.matmul %135, %126, %cst_46 {dimension_numbers = #tpu.dot_dimension_numbers<[1], [0], [0], [1], [0, 0, 1, 1], [], []>} : vector<48x48xf32>, vector<48x32xf32>, vector<48x32xf32> -> vector<48x32xf32>
    %139 = tpu.reciprocal %137 {approx = true} : vector<48x1xf32> -> vector<48x1xf32>
    %140 = vector.broadcast %139 : vector<48x1xf32> to vector<48x32xf32>
    %141 = arith.mulf %138, %140 : vector<48x32xf32>
    %c968 = arith.constant 968 : index
    %c0_47 = arith.constant 0 : index
    %142 = vector.load %arg3[%c968, %c0_47] : memref<1656x128xf32, #tpu.memory_space<vmem>>, vector<32x48xf32>
    %cst_48 = arith.constant dense<0.000000e+00> : vector<48x48xf32>
    %143 = tpu.matmul %141, %142, %cst_48 {dimension_numbers = #tpu.dot_dimension_numbers<[1], [0], [0], [1], [0, 0, 1, 1], [], []>} : vector<48x32xf32>, vector<32x48xf32>, vector<48x48xf32> -> vector<48x48xf32>
    %c1000 = arith.constant 1000 : index
    %c0_49 = arith.constant 0 : index
    %144 = vector.load %arg3[%c1000, %c0_49] : memref<1656x128xf32, #tpu.memory_space<vmem>>, vector<1x48xf32>
    %145 = vector.broadcast %144 : vector<1x48xf32> to vector<48x48xf32>
    %146 = arith.addf %143, %145 : vector<48x48xf32>
    %147 = vector.extract_strided_slice %146 {offsets = [0, 0], sizes = [32, 32], strides = [1, 1]} : vector<48x48xf32> to vector<32x32xf32>
    %148 = arith.addf %70, %147 : vector<32x32xf32>
    %149 = vector.extract_strided_slice %146 {offsets = [32, 32], sizes = [16, 16], strides = [1, 1]} : vector<48x48xf32> to vector<16x16xf32>
    %150 = arith.addf %112, %149 : vector<16x16xf32>
    %c1008 = arith.constant 1008 : index
    %c0_50 = arith.constant 0 : index
    %151 = vector.load %arg3[%c1008, %c0_50] : memref<1656x128xf32, #tpu.memory_space<vmem>>, vector<32x128xf32>
    %cst_51 = arith.constant dense<0.000000e+00> : vector<32x128xf32>
    %152 = tpu.matmul %148, %151, %cst_51 {dimension_numbers = #tpu.dot_dimension_numbers<[1], [0], [0], [1], [0, 0, 1, 1], [], []>} : vector<32x32xf32>, vector<32x128xf32>, vector<32x128xf32> -> vector<32x128xf32>
    %c1040 = arith.constant 1040 : index
    %c0_52 = arith.constant 0 : index
    %153 = vector.load %arg3[%c1040, %c0_52] : memref<1656x128xf32, #tpu.memory_space<vmem>>, vector<1x128xf32>
    %154 = vector.broadcast %153 : vector<1x128xf32> to vector<32x128xf32>
    %155 = arith.addf %152, %154 : vector<32x128xf32>
    %156 = arith.negf %155 : vector<32x128xf32>
    %157 = math.exp %156 : vector<32x128xf32>
    %cst_53 = arith.constant 1.000000e+00 : f32
    %158 = vector.broadcast %cst_53 : f32 to vector<32x128xf32>
    %159 = arith.addf %158, %157 : vector<32x128xf32>
    %160 = arith.divf %158, %159 : vector<32x128xf32>
    %161 = arith.mulf %155, %160 : vector<32x128xf32>
    %c1048 = arith.constant 1048 : index
    %c0_54 = arith.constant 0 : index
    %162 = vector.load %arg3[%c1048, %c0_54] : memref<1656x128xf32, #tpu.memory_space<vmem>>, vector<128x32xf32>
    %cst_55 = arith.constant dense<0.000000e+00> : vector<32x32xf32>
    %163 = tpu.matmul %161, %162, %cst_55 {dimension_numbers = #tpu.dot_dimension_numbers<[1], [0], [0], [1], [0, 0, 1, 1], [], []>} : vector<32x128xf32>, vector<128x32xf32>, vector<32x32xf32> -> vector<32x32xf32>
    %164 = arith.addf %148, %163 : vector<32x32xf32>
    %c1176 = arith.constant 1176 : index
    %c0_56 = arith.constant 0 : index
    %165 = vector.load %arg3[%c1176, %c0_56] : memref<1656x128xf32, #tpu.memory_space<vmem>>, vector<1x32xf32>
    %166 = vector.broadcast %165 : vector<1x32xf32> to vector<32x32xf32>
    %167 = arith.addf %164, %166 : vector<32x32xf32>
    %c1184 = arith.constant 1184 : index
    %c0_57 = arith.constant 0 : index
    %168 = vector.load %arg3[%c1184, %c0_57] : memref<1656x128xf32, #tpu.memory_space<vmem>>, vector<16x64xf32>
    %cst_58 = arith.constant dense<0.000000e+00> : vector<16x64xf32>
    %169 = tpu.matmul %150, %168, %cst_58 {dimension_numbers = #tpu.dot_dimension_numbers<[1], [0], [0], [1], [0, 0, 1, 1], [], []>} : vector<16x16xf32>, vector<16x64xf32>, vector<16x64xf32> -> vector<16x64xf32>
    %c1200 = arith.constant 1200 : index
    %c0_59 = arith.constant 0 : index
    %170 = vector.load %arg3[%c1200, %c0_59] : memref<1656x128xf32, #tpu.memory_space<vmem>>, vector<1x64xf32>
    %171 = vector.broadcast %170 : vector<1x64xf32> to vector<16x64xf32>
    %172 = arith.addf %169, %171 : vector<16x64xf32>
    %173 = arith.negf %172 : vector<16x64xf32>
    %174 = math.exp %173 : vector<16x64xf32>
    %cst_60 = arith.constant 1.000000e+00 : f32
    %175 = vector.broadcast %cst_60 : f32 to vector<16x64xf32>
    %176 = arith.addf %175, %174 : vector<16x64xf32>
    %177 = arith.divf %175, %176 : vector<16x64xf32>
    %178 = arith.mulf %172, %177 : vector<16x64xf32>
    %c1208 = arith.constant 1208 : index
    %c0_61 = arith.constant 0 : index
    %179 = vector.load %arg3[%c1208, %c0_61] : memref<1656x128xf32, #tpu.memory_space<vmem>>, vector<64x16xf32>
    %cst_62 = arith.constant dense<0.000000e+00> : vector<16x16xf32>
    %180 = tpu.matmul %178, %179, %cst_62 {dimension_numbers = #tpu.dot_dimension_numbers<[1], [0], [0], [1], [0, 0, 1, 1], [], []>} : vector<16x64xf32>, vector<64x16xf32>, vector<16x16xf32> -> vector<16x16xf32>
    %181 = arith.addf %150, %180 : vector<16x16xf32>
    %c1272 = arith.constant 1272 : index
    %c0_63 = arith.constant 0 : index
    %182 = vector.load %arg3[%c1272, %c0_63] : memref<1656x128xf32, #tpu.memory_space<vmem>>, vector<1x16xf32>
    %183 = vector.broadcast %182 : vector<1x16xf32> to vector<16x16xf32>
    %184 = arith.addf %181, %183 : vector<16x16xf32>
    %c1280 = arith.constant 1280 : index
    %c0_64 = arith.constant 0 : index
    %185 = vector.load %arg3[%c1280, %c0_64] : memref<1656x128xf32, #tpu.memory_space<vmem>>, vector<32x96xf32>
    %cst_65 = arith.constant dense<0.000000e+00> : vector<32x96xf32>
    %186 = tpu.matmul %167, %185, %cst_65 {dimension_numbers = #tpu.dot_dimension_numbers<[1], [0], [0], [1], [0, 0, 1, 1], [], []>} : vector<32x32xf32>, vector<32x96xf32>, vector<32x96xf32> -> vector<32x96xf32>
    %c1312 = arith.constant 1312 : index
    %c0_66 = arith.constant 0 : index
    %187 = vector.load %arg3[%c1312, %c0_66] : memref<1656x128xf32, #tpu.memory_space<vmem>>, vector<1x96xf32>
    %188 = vector.broadcast %187 : vector<1x96xf32> to vector<32x96xf32>
    %189 = arith.addf %186, %188 : vector<32x96xf32>
    %c1320 = arith.constant 1320 : index
    %c0_67 = arith.constant 0 : index
    %190 = vector.load %arg3[%c1320, %c0_67] : memref<1656x128xf32, #tpu.memory_space<vmem>>, vector<16x96xf32>
    %cst_68 = arith.constant dense<0.000000e+00> : vector<16x96xf32>
    %191 = tpu.matmul %184, %190, %cst_68 {dimension_numbers = #tpu.dot_dimension_numbers<[1], [0], [0], [1], [0, 0, 1, 1], [], []>} : vector<16x16xf32>, vector<16x96xf32>, vector<16x96xf32> -> vector<16x96xf32>
    %c1336 = arith.constant 1336 : index
    %c0_69 = arith.constant 0 : index
    %192 = vector.load %arg3[%c1336, %c0_69] : memref<1656x128xf32, #tpu.memory_space<vmem>>, vector<1x96xf32>
    %193 = vector.broadcast %192 : vector<1x96xf32> to vector<16x96xf32>
    %194 = arith.addf %191, %193 : vector<16x96xf32>
    %195 = tpu.concatenate %189, %194 in 0 : vector<32x96xf32>, vector<16x96xf32> -> vector<48x96xf32>
    %196 = vector.extract_strided_slice %195 {offsets = [0, 0], sizes = [48, 32], strides = [1, 1]} : vector<48x96xf32> to vector<48x32xf32>
    %197 = vector.extract_strided_slice %195 {offsets = [0, 32], sizes = [48, 32], strides = [1, 1]} : vector<48x96xf32> to vector<48x32xf32>
    %198 = vector.extract_strided_slice %195 {offsets = [0, 64], sizes = [48, 32], strides = [1, 1]} : vector<48x96xf32> to vector<48x32xf32>
    %cst_70 = arith.constant dense<0.000000e+00> : vector<48x48xf32>
    %199 = tpu.matmul %196, %197, %cst_70 {dimension_numbers = #tpu.dot_dimension_numbers<[1], [1], [0], [0], [0, 0, 1, 0], [], []>} : vector<48x32xf32>, vector<48x32xf32>, vector<48x48xf32> -> vector<48x48xf32>
    %cst_71 = arith.constant 0.176776692 : f32
    %200 = vector.broadcast %cst_71 : f32 to vector<48x48xf32>
    %201 = arith.mulf %199, %200 : vector<48x48xf32>
    %202 = arith.addf %201, %0 : vector<48x48xf32>
    %cst_72 = arith.constant dense<0xFF800000> : vector<48xf32>
    %203 = vector.multi_reduction <maximumf>, %202, %cst_72 [1] : vector<48x48xf32> to vector<48xf32>
    %204 = vector.shape_cast %203 : vector<48xf32> to vector<48x1xf32>
    %205 = vector.broadcast %204 : vector<48x1xf32> to vector<48x48xf32>
    %206 = arith.subf %202, %205 : vector<48x48xf32>
    %207 = math.exp %206 : vector<48x48xf32>
    %cst_73 = arith.constant dense<0.000000e+00> : vector<48xf32>
    %208 = vector.multi_reduction <add>, %207, %cst_73 [1] : vector<48x48xf32> to vector<48xf32>
    %209 = vector.shape_cast %208 : vector<48xf32> to vector<48x1xf32>
    %cst_74 = arith.constant dense<0.000000e+00> : vector<48x32xf32>
    %210 = tpu.matmul %207, %198, %cst_74 {dimension_numbers = #tpu.dot_dimension_numbers<[1], [0], [0], [1], [0, 0, 1, 1], [], []>} : vector<48x48xf32>, vector<48x32xf32>, vector<48x32xf32> -> vector<48x32xf32>
    %211 = tpu.reciprocal %209 {approx = true} : vector<48x1xf32> -> vector<48x1xf32>
    %212 = vector.broadcast %211 : vector<48x1xf32> to vector<48x32xf32>
    %213 = arith.mulf %210, %212 : vector<48x32xf32>
    %c1344 = arith.constant 1344 : index
    %c0_75 = arith.constant 0 : index
    %214 = vector.load %arg3[%c1344, %c0_75] : memref<1656x128xf32, #tpu.memory_space<vmem>>, vector<32x48xf32>
    %cst_76 = arith.constant dense<0.000000e+00> : vector<48x48xf32>
    %215 = tpu.matmul %213, %214, %cst_76 {dimension_numbers = #tpu.dot_dimension_numbers<[1], [0], [0], [1], [0, 0, 1, 1], [], []>} : vector<48x32xf32>, vector<32x48xf32>, vector<48x48xf32> -> vector<48x48xf32>
    %c1376 = arith.constant 1376 : index
    %c0_77 = arith.constant 0 : index
    %216 = vector.load %arg3[%c1376, %c0_77] : memref<1656x128xf32, #tpu.memory_space<vmem>>, vector<1x48xf32>
    %217 = vector.broadcast %216 : vector<1x48xf32> to vector<48x48xf32>
    %218 = arith.addf %215, %217 : vector<48x48xf32>
    %219 = vector.extract_strided_slice %218 {offsets = [32, 32], sizes = [16, 16], strides = [1, 1]} : vector<48x48xf32> to vector<16x16xf32>
    %220 = arith.addf %184, %219 : vector<16x16xf32>
    %c1560 = arith.constant 1560 : index
    %c0_78 = arith.constant 0 : index
    %221 = vector.load %arg3[%c1560, %c0_78] : memref<1656x128xf32, #tpu.memory_space<vmem>>, vector<16x64xf32>
    %cst_79 = arith.constant dense<0.000000e+00> : vector<16x64xf32>
    %222 = tpu.matmul %220, %221, %cst_79 {dimension_numbers = #tpu.dot_dimension_numbers<[1], [0], [0], [1], [0, 0, 1, 1], [], []>} : vector<16x16xf32>, vector<16x64xf32>, vector<16x64xf32> -> vector<16x64xf32>
    %c1576 = arith.constant 1576 : index
    %c0_80 = arith.constant 0 : index
    %223 = vector.load %arg3[%c1576, %c0_80] : memref<1656x128xf32, #tpu.memory_space<vmem>>, vector<1x64xf32>
    %224 = vector.broadcast %223 : vector<1x64xf32> to vector<16x64xf32>
    %225 = arith.addf %222, %224 : vector<16x64xf32>
    %226 = arith.negf %225 : vector<16x64xf32>
    %227 = math.exp %226 : vector<16x64xf32>
    %cst_81 = arith.constant 1.000000e+00 : f32
    %228 = vector.broadcast %cst_81 : f32 to vector<16x64xf32>
    %229 = arith.addf %228, %227 : vector<16x64xf32>
    %230 = arith.divf %228, %229 : vector<16x64xf32>
    %231 = arith.mulf %225, %230 : vector<16x64xf32>
    %c1584 = arith.constant 1584 : index
    %c0_82 = arith.constant 0 : index
    %232 = vector.load %arg3[%c1584, %c0_82] : memref<1656x128xf32, #tpu.memory_space<vmem>>, vector<64x16xf32>
    %cst_83 = arith.constant dense<0.000000e+00> : vector<16x16xf32>
    %233 = tpu.matmul %231, %232, %cst_83 {dimension_numbers = #tpu.dot_dimension_numbers<[1], [0], [0], [1], [0, 0, 1, 1], [], []>} : vector<16x64xf32>, vector<64x16xf32>, vector<16x16xf32> -> vector<16x16xf32>
    %234 = arith.addf %220, %233 : vector<16x16xf32>
    %c1648 = arith.constant 1648 : index
    %c0_84 = arith.constant 0 : index
    %235 = vector.load %arg3[%c1648, %c0_84] : memref<1656x128xf32, #tpu.memory_space<vmem>>, vector<1x16xf32>
    %236 = vector.broadcast %235 : vector<1x16xf32> to vector<16x16xf32>
    %237 = arith.addf %234, %236 : vector<16x16xf32>
    %c880 = arith.constant 880 : index
    %c0_85 = arith.constant 0 : index
    %238 = vector.load %arg3[%c880, %c0_85] : memref<1656x128xf32, #tpu.memory_space<vmem>>, vector<16x6xf32>
    %cst_86 = arith.constant dense<0.000000e+00> : vector<16x6xf32>
    %239 = tpu.matmul %237, %238, %cst_86 {dimension_numbers = #tpu.dot_dimension_numbers<[1], [0], [0], [1], [0, 0, 1, 1], [], []>} : vector<16x16xf32>, vector<16x6xf32>, vector<16x6xf32> -> vector<16x6xf32>
    %c896 = arith.constant 896 : index
    %c0_87 = arith.constant 0 : index
    %240 = vector.load %arg3[%c896, %c0_87] : memref<1656x128xf32, #tpu.memory_space<vmem>>, vector<1x6xf32>
    %241 = vector.broadcast %240 : vector<1x6xf32> to vector<16x6xf32>
    %242 = arith.addf %239, %241 : vector<16x6xf32>
    %243 = arith.subf %78, %242 : vector<16x6xf32>
    %244 = arith.mulf %243, %243 : vector<16x6xf32>
    %c0_88 = arith.constant 0 : index
    %c0_89 = arith.constant 0 : index
    %245 = vector.load %arg4[%c0_88, %c0_89] : memref<16x6xf32, #tpu.memory_space<vmem>>, vector<16x6xf32>
    tpu.vector_store %arg4[%c0_88, %c0_89], %244 {strides = array<i32>} : memref<16x6xf32, #tpu.memory_space<vmem>>, vector<16x6xf32>,
    return
  }
  func.func @transform_0(%arg0: i32) -> (i32, i32) {
    %c0_i32 = arith.constant 0 : i32
    %c0_i32_0 = arith.constant 0 : i32
    %c0_i32_1 = arith.constant 0 : i32
    return %c0_i32, %c0_i32_0 : i32, i32
  }
  func.func @transform_1(%arg0: i32) -> (i32, i32) {
    %c0_i32 = arith.constant 0 : i32
    %c0_i32_0 = arith.constant 0 : i32
    %c0_i32_1 = arith.constant 0 : i32
    return %c0_i32, %c0_i32_0 : i32, i32
  }
  func.func @transform_2(%arg0: i32) -> (i32, i32) {
    %c0_i32 = arith.constant 0 : i32
    %c0_i32_0 = arith.constant 0 : i32
    %c0_i32_1 = arith.constant 0 : i32
    return %c0_i32, %c0_i32_0 : i32, i32
  }
  func.func @transform_3(%arg0: i32) -> (i32, i32) {
    %c0_i32 = arith.constant 0 : i32
    %c0_i32_0 = arith.constant 0 : i32
    %c0_i32_1 = arith.constant 0 : i32
    return %c0_i32, %c0_i32_0 : i32, i32
  }
}

</mosaic_0001>

<llo_original>
// kernel: vla_flow_matching_forward.1
$region0: #{vla_flow_matching_forward.1}
  #allocation0 [shape = 'u32[]', space=smem, size = 0x4, offset = 0x4, fixed_abs, tag = 'smem constant byte address 0x4 - core index']
  #allocation1 [shape = 'u32[72,128]{1,0:T(1,128)}', space=vmem, size = 0x9000, scoped, tag = 'internal scratch']
  %s0 = inlined_call_operand.vmem [shape: f32[104,48], index: 0, kind: input, shape index: {}]
  %s1 = inlined_call_operand.vmem [shape: f32[2,768], index: 1, kind: input, shape index: {}]
  %s2 = inlined_call_operand.hbm [shape: f32[1656,128], index: 2, kind: input, shape index: {}]
  %s3 = inlined_call_operand.vmem [shape: f32[16,6], index: 3, kind: output, shape index: {}]
  %s4 = sld [smem:[#allocation0]]
  $region26: #{vla_flow_matching_forward.1} parent=0
    _
  %s6 = ssub.s32 1, %s4
  %s7 = scalar_select 0, %s6, %s4
  $region1: #{vla_flow_matching_forward.1} parent=0
    #allocation2 [shape = 'u8[847872]{0}', space=vmem, size = 0xcf000, scoped, tag = 'input window, operand 2, single buffered']
    #allocation3 [shape = 's32[1]{0}', space=sflag, size = 0x4, scoped, tag = 'scoped memory for vla_flow_matching_forward.1']
    %8 = vsyncpa [#allocation3], 0
    // Predicated region
    $region2: #{vla_flow_matching_forward.1} parent=1 // pred_check
      _
    $region3: #{vla_flow_matching_forward.1} parent=1 // pred_check_branch
      %10 = sbr.rel (0) target = $region5
    $region4: #{vla_flow_matching_forward.1} parent=1 // pred_region
      _
    $region5: #{vla_flow_matching_forward.1} parent=1 // pred_fallthru
      _
    // Predicated region
    $region6: #{vla_flow_matching_forward.1} parent=1 // pred_check
      _
    $region7: #{vla_flow_matching_forward.1} parent=1 // pred_check_branch
      %12 = sbr.rel (0) target = $region9
    $region8: #{vla_flow_matching_forward.1} parent=1 // pred_region
      _
    $region9: #{vla_flow_matching_forward.1} parent=1 // pred_fallthru
      _
    // Predicated region
    $region10: #{vla_flow_matching_forward.1} parent=1 // pred_check
      _
    $region11: #{vla_flow_matching_forward.1} parent=1 // pred_check_branch
      %14 = sbr.rel (0) target = $region13
    $region12: #{vla_flow_matching_forward.1} parent=1 // pred_region
      %16 = vsyncadd [#allocation3], 0
      %s17 = sshll.u32 %s2, 4
      %s18 = int_to_ptr.hbm [resolvable:$true] %s17
      %s19 = sshll.u32 [#allocation2], 4
      %s20 = int_to_ptr.vmem [resolvable:$true] %s19
      %25 = dma.hbm_to_vmem [thread:$0]  %s18, 26496, %s20, [#allocation3], 128, 128, 8
    $region13: #{vla_flow_matching_forward.1} parent=1 // pred_fallthru
      _
    // Predicated region
    $region14: #{vla_flow_matching_forward.1} parent=1 // pred_check
      _
    $region15: #{vla_flow_matching_forward.1} parent=1 // pred_check_branch
      %27 = sbr.rel (0) target = $region17
    $region16: #{vla_flow_matching_forward.1} parent=1 // pred_region
      %29 = dma.done [#allocation3], 26496
    $region17: #{vla_flow_matching_forward.1} parent=1 // pred_fallthru
      _
    %v30 = vld [vmem:[%s0] sm:$0xff]
    %v31 = vld [vmem:[%s0 + $0x8] sm:$0xff]
    %v32 = vld [vmem:[%s0 + $0x10] sm:$0xff]
    %v33 = vld [vmem:[%s0 + $0x18] sm:$0xff]
    %v34 = vld [vmem:[%s0 + $0x20] sm:$0xff]
    %v35 = vld [vmem:[%s0 + $0x28] sm:$0xff]
    %v36 = vld [vmem:[%s0 + $0x30] sm:$0xff]
    %v37 = vld [vmem:[%s0 + $0x38] sm:$0xff]
    %v38 = vld [vmem:[%s0 + $0x40] sm:$0xff]
    %v39 = vld [vmem:[%s0 + $0x48] sm:$0xff]
    %v40 = vld [vmem:[%s0 + $0x50] sm:$0xff]
    %v41 = vld [vmem:[%s0 + $0x58] sm:$0xff]
    %v42 = vld [vmem:[%s0 + $0x60] sm:$0x3]
    %v43 = vld [vmem:[%s1] sm:$0xff]
    %v44 = vld [vmem:[%s1 + $0x8] sm:$0xf]
    %v45 = vld [vmem:[#allocation2] sm:$0xff]
    %v46 = vld [vmem:[#allocation2 + $0x8] sm:$0xff]
    %v47 = vld [vmem:[#allocation2 + $0x10] sm:$0xff]
    %v48 = vld [vmem:[#allocation2 + $0x18] sm:$0xff]
    %v49 = vld [vmem:[#allocation2 + $0x20] sm:$0xff]
    %v50 = vld [vmem:[#allocation2 + $0x28] sm:$0xff]
    %v51 = vld [vmem:[#allocation2 + $0x30] sm:$0xff]
    %v52 = vld [vmem:[#allocation2 + $0x38] sm:$0xff]
    %v53 = vld [vmem:[#allocation2 + $0x40] sm:$0xff]
    %v54 = vld [vmem:[#allocation2 + $0x48] sm:$0xff]
    %v55 = vld [vmem:[#allocation2 + $0x50] sm:$0xff]
    %v56 = vld [vmem:[#allocation2 + $0x58] sm:$0xff]
    %v57 = vld [vmem:[#allocation2 + $0x60] sm:$0xff]
    %v58 = vld [vmem:[#allocation2 + $0x68] sm:$0xff]
    %v59 = vld [vmem:[#allocation2 + $0x70] sm:$0xff]
    %v60 = vld [vmem:[#allocation2 + $0x78] sm:$0xff]
    %v61 = vld [vmem:[#allocation2 + $0x80] sm:$0xff]
    %v62 = vld [vmem:[#allocation2 + $0x88] sm:$0xff]
    %v63 = vld [vmem:[#allocation2 + $0x90] sm:$0xff]
    %v64 = vld [vmem:[#allocation2 + $0x98] sm:$0xff]
    %v65 = vld [vmem:[#allocation2 + $0xa0] sm:$0xff]
    %v66 = vld [vmem:[#allocation2 + $0xa8] sm:$0xff]
    %v67 = vld [vmem:[#allocation2 + $0xb0] sm:$0xff]
    %v68 = vld [vmem:[#allocation2 + $0xb8] sm:$0xff]
    %v69 = vld [vmem:[#allocation2 + $0xc0] sm:$0xff]
    %v70 = vld [vmem:[#allocation2 + $0xc8] sm:$0xff]
    %v71 = vld [vmem:[#allocation2 + $0xd0] sm:$0xff]
    %v72 = vld [vmem:[#allocation2 + $0xd8] sm:$0xff]
    %v73 = vld [vmem:[#allocation2 + $0xe0] sm:$0xff]
    %v74 = vld [vmem:[#allocation2 + $0xe8] sm:$0xff]
    %v75 = vld [vmem:[#allocation2 + $0xf0] sm:$0xff]
    %v76 = vld [vmem:[#allocation2 + $0xf8] sm:$0xff]
    %v77 = vld [vmem:[#allocation2 + $0x100] sm:$0xff]
    %v78 = vld [vmem:[#allocation2 + $0x108] sm:$0xff]
    %v79 = vld [vmem:[#allocation2 + $0x110] sm:$0xff]
    %v80 = vld [vmem:[#allocation2 + $0x118] sm:$0xff]
    %v81 = vld [vmem:[#allocation2 + $0x120] sm:$0xff]
    %v82 = vld [vmem:[#allocation2 + $0x128] sm:$0xff]
    %v83 = vld [vmem:[#allocation2 + $0x130] sm:$0xff]
    %v84 = vld [vmem:[#allocation2 + $0x138] sm:$0xff]
    %v85 = vld [vmem:[#allocation2 + $0x140] sm:$0xff]
    %v86 = vld [vmem:[#allocation2 + $0x148] sm:$0xff]
    %v87 = vld [vmem:[#allocation2 + $0x150] sm:$0xff]
    %v88 = vld [vmem:[#allocation2 + $0x158] sm:$0xff]
    %v89 = vld [vmem:[#allocation2 + $0x160] sm:$0xff]
    %v90 = vld [vmem:[#allocation2 + $0x168] sm:$0xff]
    %v91 = vld [vmem:[#allocation2 + $0x170] sm:$0xff]
    %v92 = vld [vmem:[#allocation2 + $0x178] sm:$0xff]
    %v93 = vld [vmem:[#allocation2 + $0x180] sm:$0xff]
    %v94 = vld [vmem:[#allocation2 + $0x188] sm:$0xff]
    %v95 = vld [vmem:[#allocation2 + $0x190] sm:$0xff]
    %v96 = vld [vmem:[#allocation2 + $0x198] sm:$0xff]
    %v97 = vld [vmem:[#allocation2 + $0x1a0] sm:$0xff]
    %v98 = vld [vmem:[#allocation2 + $0x1a8] sm:$0xff]
    %v99 = vld [vmem:[#allocation2 + $0x1b0] sm:$0xff]
    %v100 = vld [vmem:[#allocation2 + $0x1b8] sm:$0xff]
    %v101 = vld [vmem:[#allocation2 + $0x1c0] sm:$0xff]
    %v102 = vld [vmem:[#allocation2 + $0x1c8] sm:$0xff]
    %v103 = vld [vmem:[#allocation2 + $0x1d0] sm:$0xff]
    %v104 = vld [vmem:[#allocation2 + $0x1d8] sm:$0xff]
    %v105 = vld [vmem:[#allocation2 + $0x1e0] sm:$0xff]
    %v106 = vld [vmem:[#allocation2 + $0x1e8] sm:$0xff]
    %v107 = vld [vmem:[#allocation2 + $0x1f0] sm:$0xff]
    %v108 = vld [vmem:[#allocation2 + $0x1f8] sm:$0xff]
    %v109 = vld [vmem:[#allocation2 + $0x200] sm:$0xff]
    %v110 = vld [vmem:[#allocation2 + $0x208] sm:$0xff]
    %v111 = vld [vmem:[#allocation2 + $0x210] sm:$0xff]
    %v112 = vld [vmem:[#allocation2 + $0x218] sm:$0xff]
    %v113 = vld [vmem:[#allocation2 + $0x220] sm:$0xff]
    %v114 = vld [vmem:[#allocation2 + $0x228] sm:$0xff]
    %v115 = vld [vmem:[#allocation2 + $0x230] sm:$0xff]
    %v116 = vld [vmem:[#allocation2 + $0x238] sm:$0xff]
    %v117 = vld [vmem:[#allocation2 + $0x240] sm:$0xff]
    %v118 = vld [vmem:[#allocation2 + $0x248] sm:$0xff]
    %v119 = vld [vmem:[#allocation2 + $0x250] sm:$0xff]
    %v120 = vld [vmem:[#allocation2 + $0x258] sm:$0xff]
    %v121 = vld [vmem:[#allocation2 + $0x260] sm:$0xff]
    %v122 = vld [vmem:[#allocation2 + $0x268] sm:$0xff]
    %v123 = vld [vmem:[#allocation2 + $0x270] sm:$0xff]
    %v124 = vld [vmem:[#allocation2 + $0x278] sm:$0xff]
    %v125 = vld [vmem:[#allocation2 + $0x280] sm:$0xff]
    %v126 = vld [vmem:[#allocation2 + $0x288] sm:$0xff]
    %v127 = vld [vmem:[#allocation2 + $0x290] sm:$0xff]
    %v128 = vld [vmem:[#allocation2 + $0x298] sm:$0xff]
    %v129 = vld [vmem:[#allocation2 + $0x2a0] sm:$0xff]
    %v130 = vld [vmem:[#allocation2 + $0x2a8] sm:$0xff]
    %v131 = vld [vmem:[#allocation2 + $0x2b0] sm:$0xff]
    %v132 = vld [vmem:[#allocation2 + $0x2b8] sm:$0xff]
    %v133 = vld [vmem:[#allocation2 + $0x2c0] sm:$0xff]
    %v134 = vld [vmem:[#allocation2 + $0x2c8] sm:$0xff]
    %v135 = vld [vmem:[#allocation2 + $0x2d0] sm:$0xff]
    %v136 = vld [vmem:[#allocation2 + $0x2d8] sm:$0xff]
    %v137 = vld [vmem:[#allocation2 + $0x2e0] sm:$0xff]
    %v138 = vld [vmem:[#allocation2 + $0x2e8] sm:$0xff]
    %v139 = vld [vmem:[#allocation2 + $0x2f0] sm:$0xff]
    %v140 = vld [vmem:[#allocation2 + $0x2f8] sm:$0xff]
    %v141 = vld [vmem:[#allocation2 + $0x300] sm:$0x1]
    %v142 = vperm.slane %v141, 0
    %145 = vst [vmem:[#allocation1] ss:$4 sm:$0xff] %v43
    %s146 = scalar_lea.vmem [#allocation1], 32
    %147 = vst [vmem:[%s146] ss:$4 sm:$0xff] %v44
    %v148 = vld.sshfl [vmem:[#allocation1] sm:$0xff pattern:$0x73625140]
    %v149 = vld.sshfl [vmem:[#allocation1 + $0x8] sm:$0xff pattern:$0x73625140]
    %v150 = vld.sshfl [vmem:[#allocation1 + $0x10] sm:$0xff pattern:$0x73625140]
    %v151 = vld.sshfl [vmem:[#allocation1 + $0x18] sm:$0xff pattern:$0x73625140]
    %v152 = vld.sshfl [vmem:[#allocation1 + $0x20] sm:$0xff pattern:$0x73625140]
    %v153 = vld.sshfl [vmem:[#allocation1 + $0x28] sm:$0xff pattern:$0x73625140]
    %160 = vmatpush.msra.mxu0 %v60
    %161 = vmatpush.msra.mxu0 %v59
    %162 = vmatpush.msra.mxu0 %v58
    %163 = vmatpush.msra.mxu0 %v57
    %164 = vmatpush.msra.mxu0 %v56
    %165 = vmatpush.msra.mxu0 %v55
    %166 = vmatpush.msra.mxu0 %v54
    %167 = vmatpush.msra.mxu0 %v53
    %168 = vmatpush.msra.mxu0 %v52
    %169 = vmatpush.msra.mxu0 %v51
    %170 = vmatpush.msra.mxu0 %v50
    %171 = vmatpush.msra.mxu0 %v49
    %172 = vmatpush.msra.mxu0 %v48
    %173 = vmatpush.msra.mxu0 %v47
    %174 = vmatpush.msra.mxu0 %v46
    %175 = vmatpush.msra.mxu0 %v45
    %176 = vmatmul.f32.gmra.mxu0 %v148
    %v177 = vpop.f32.mrf.mxu0
    %v178 = vadd.f32 %v142, %v177
    %179 = vdwg.mxu0
    %180 = vmatpush.msra.mxu0 %v76
    %181 = vmatpush.msra.mxu0 %v75
    %182 = vmatpush.msra.mxu0 %v74
    %183 = vmatpush.msra.mxu0 %v73
    %184 = vmatpush.msra.mxu0 %v72
    %185 = vmatpush.msra.mxu0 %v71
    %186 = vmatpush.msra.mxu0 %v70
    %187 = vmatpush.msra.mxu0 %v69
    %188 = vmatpush.msra.mxu0 %v68
    %189 = vmatpush.msra.mxu0 %v67
    %190 = vmatpush.msra.mxu0 %v66
    %191 = vmatpush.msra.mxu0 %v65
    %192 = vmatpush.msra.mxu0 %v64
    %193 = vmatpush.msra.mxu0 %v63
    %194 = vmatpush.msra.mxu0 %v62
    %195 = vmatpush.msra.mxu0 %v61
    %196 = vmatmul.f32.gmra.mxu0 %v149
    %v197 = vpop.f32.mrf.mxu0
    %v198 = vadd.f32 %v178, %v197
    %199 = vdwg.mxu0
    %200 = vmatpush.msra.mxu0 %v92
    %201 = vmatpush.msra.mxu0 %v91
    %202 = vmatpush.msra.mxu0 %v90
    %203 = vmatpush.msra.mxu0 %v89
    %204 = vmatpush.msra.mxu0 %v88
    %205 = vmatpush.msra.mxu0 %v87
    %206 = vmatpush.msra.mxu0 %v86
    %207 = vmatpush.msra.mxu0 %v85
    %208 = vmatpush.msra.mxu0 %v84
    %209 = vmatpush.msra.mxu0 %v83
    %210 = vmatpush.msra.mxu0 %v82
    %211 = vmatpush.msra.mxu0 %v81
    %212 = vmatpush.msra.mxu0 %v80
    %213 = vmatpush.msra.mxu0 %v79
    %214 = vmatpush.msra.mxu0 %v78
    %215 = vmatpush.msra.mxu0 %v77
    %216 = vmatmul.f32.gmra.mxu0 %v150
    %v217 = vpop.f32.mrf.mxu0
    %v218 = vadd.f32 %v198, %v217
    %219 = vdwg.mxu0
    %220 = vmatpush.msra.mxu0 %v108
    %221 = vmatpush.msra.mxu0 %v107
    %222 = vmatpush.msra.mxu0 %v106
    %223 = vmatpush.msra.mxu0 %v105
    %224 = vmatpush.msra.mxu0 %v104
    %225 = vmatpush.msra.mxu0 %v103
    %226 = vmatpush.msra.mxu0 %v102
    %227 = vmatpush.msra.mxu0 %v101
    %228 = vmatpush.msra.mxu0 %v100
    %229 = vmatpush.msra.mxu0 %v99
    %230 = vmatpush.msra.mxu0 %v98
    %231 = vmatpush.msra.mxu0 %v97
    %232 = vmatpush.msra.mxu0 %v96
    %233 = vmatpush.msra.mxu0 %v95
    %234 = vmatpush.msra.mxu0 %v94
    %235 = vmatpush.msra.mxu0 %v93
    %236 = vmatmul.f32.gmra.mxu0 %v151
    %v237 = vpop.f32.mrf.mxu0
    %v238 = vadd.f32 %v218, %v237
    %239 = vdwg.mxu0
    %240 = vmatpush.msra.mxu0 %v124
    %241 = vmatpush.msra.mxu0 %v123
    %242 = vmatpush.msra.mxu0 %v122
    %243 = vmatpush.msra.mxu0 %v121
    %244 = vmatpush.msra.mxu0 %v120
    %245 = vmatpush.msra.mxu0 %v119
    %246 = vmatpush.msra.mxu0 %v118
    %247 = vmatpush.msra.mxu0 %v117
    %248 = vmatpush.msra.mxu0 %v116
    %249 = vmatpush.msra.mxu0 %v115
    %250 = vmatpush.msra.mxu0 %v114
    %251 = vmatpush.msra.mxu0 %v113
    %252 = vmatpush.msra.mxu0 %v112
    %253 = vmatpush.msra.mxu0 %v111
    %254 = vmatpush.msra.mxu0 %v110
    %255 = vmatpush.msra.mxu0 %v109
    %256 = vmatmul.f32.gmra.mxu0 %v152
    %v257 = vpop.f32.mrf.mxu0
    %v258 = vadd.f32 %v238, %v257
    %259 = vdwg.mxu0
    %260 = vmatpush.msra.mxu0 %v140
    %261 = vmatpush.msra.mxu0 %v139
    %262 = vmatpush.msra.mxu0 %v138
    %263 = vmatpush.msra.mxu0 %v137
    %264 = vmatpush.msra.mxu0 %v136
    %265 = vmatpush.msra.mxu0 %v135
    %266 = vmatpush.msra.mxu0 %v134
    %267 = vmatpush.msra.mxu0 %v133
    %268 = vmatpush.msra.mxu0 %v132
    %269 = vmatpush.msra.mxu0 %v131
    %270 = vmatpush.msra.mxu0 %v130
    %271 = vmatpush.msra.mxu0 %v129
    %272 = vmatpush.msra.mxu0 %v128
    %273 = vmatpush.msra.mxu0 %v127
    %274 = vmatpush.msra.mxu0 %v126
    %275 = vmatpush.msra.mxu0 %v125
    %276 = vmatmul.f32.gmra.mxu0 %v153
    %v277 = vpop.f32.mrf.mxu0
    %v278 = vadd.f32 %v258, %v277
    %279 = vdwg.mxu0
    %v280 = vmul.f32 %v278, 5.656854
    %v281 = vld [vmem:[#allocation2 + $0x308] sm:$0x3f]
    %v282 = vld [vmem:[#allocation2 + $0x310] sm:$0x1]
    %v283 = vperm.slane %v282, 0
    %vm284 = vcmask 48128
    %v286 = vsel %vm284, %v42, 0
    %vm288 = vcmask 1045504
    %v290 = vsel %vm288, %v281, 0
    %292 = vmatpush.msra.mxu0 0.0
    %293 = vmatpush.msra.mxu0 0.0
    %294 = vmatpush.msra.mxu0 0.0
    %295 = vmatpush.msra.mxu0 0.0
    %296 = vmatpush.msra.mxu0 0.0
    %297 = vmatpush.msra.mxu0 0.0
    %298 = vmatpush.msra.mxu0 0.0
    %299 = vmatpush.msra.mxu0 0.0
    %300 = vmatpush.msra.mxu0 0.0
    %301 = vmatpush.msra.mxu0 0.0
    %302 = vmatpush.msra.mxu0 0.0
    %303 = vmatpush.msra.mxu0 0.0
    %304 = vmatpush.msra.mxu0 0.0
    %305 = vmatpush.msra.mxu0 0.0
    %306 = vmatpush.msra.mxu0 0.0
    %307 = vmatpush.msra.mxu0 %v290
    %308 = vmatmul.f32.gmra.mxu0 %v286
    %v309 = vpop.f32.mrf.mxu0
    %v310 = vadd.f32 %v283, %v309
    %311 = vdwg.mxu0
    %v312 = vlaneseq
    %v313 = vshrl.u32 %v312, 7
    %v314 = vadd.s32 %v313, 8
    %v315 = vadd.s32 %v313, 16
    %v316 = vadd.s32 %v313, 24
    %v317 = vlaneseq
    %v318 = vand.u32 %v317, 127
    %v319 = vmul.u32 %v318, 16
    %vm320 = vcmp.eq.s32.totalorder %v313, %v319
    %vm321 = vcmp.eq.s32.totalorder %v314, %v319
    %vm322 = vcmp.eq.s32.totalorder %v315, %v319
    %vm323 = vcmp.eq.s32.totalorder %v316, %v319
    %v324 = vsel %vm320, 1, 0
    %v325 = vsel %vm321, 1, 0
    %v326 = vsel %vm322, 1, 0
    %v327 = vsel %vm323, 1, 0
    %v328 = vcvt.s32.f32 %v324
    %v329 = vcvt.s32.f32 %v325
    %v330 = vcvt.s32.f32 %v326
    %v331 = vcvt.s32.f32 %v327
    %vm332 = vcmask 15360
    %v334 = vsel %vm332, %v328, 0
    %v337 = vsel %vm332, %v329, 0
    %v340 = vsel %vm332, %v330, 0
    %v343 = vsel %vm332, %v331, 0
    %vm345 = vcmask 1041408
    %v347 = vsel %vm345, %v280, 0
    %349 = vmatpush.msra.mxu0 0.0
    %350 = vmatpush.msra.mxu0 0.0
    %351 = vmatpush.msra.mxu0 0.0
    %352 = vmatpush.msra.mxu0 0.0
    %353 = vmatpush.msra.mxu0 0.0
    %354 = vmatpush.msra.mxu0 0.0
    %355 = vmatpush.msra.mxu0 0.0
    %356 = vmatpush.msra.mxu0 0.0
    %357 = vmatpush.msra.mxu0 0.0
    %358 = vmatpush.msra.mxu0 0.0
    %359 = vmatpush.msra.mxu0 0.0
    %360 = vmatpush.msra.mxu0 0.0
    %361 = vmatpush.msra.mxu0 0.0
    %362 = vmatpush.msra.mxu0 0.0
    %363 = vmatpush.msra.mxu0 0.0
    %364 = vmatpush.msra.mxu0 %v347
    %365 = vmatmul.f32.gmra.mxu0 %v334
    %v366 = vpop.f32.mrf.mxu0
    %v367 = vadd.f32 0.0, %v366
    %368 = vmatmul.f32.gmra.mxu0 %v337
    %v369 = vpop.f32.mrf.mxu0
    %v370 = vadd.f32 0.0, %v369
    %371 = vmatmul.f32.gmra.mxu0 %v340
    %v372 = vpop.f32.mrf.mxu0
    %v373 = vadd.f32 0.0, %v372
    %374 = vmatmul.f32.gmra.mxu0 %v343
    %v375 = vpop.f32.mrf.mxu0
    %v376 = vadd.f32 0.0, %v375
    %377 = vdwg.mxu0
    %v378 = vadd.f32 %v36, %v367
    %v379 = vadd.f32 %v37, %v370
    %v380 = vadd.f32 %v38, %v373
    %v381 = vadd.f32 %v39, %v376
    %v382 = vadd.s32 %v319, 1
    %vm383 = vcmp.eq.s32.totalorder %v313, %v382
    %vm384 = vcmp.eq.s32.totalorder %v314, %v382
    %vm385 = vcmp.eq.s32.totalorder %v315, %v382
    %vm386 = vcmp.eq.s32.totalorder %v316, %v382
    %v387 = vsel %vm383, 1, 0
    %v388 = vsel %vm384, 1, 0
    %v389 = vsel %vm385, 1, 0
    %v390 = vsel %vm386, 1, 0
    %v391 = vcvt.s32.f32 %v387
    %v392 = vcvt.s32.f32 %v388
    %v393 = vcvt.s32.f32 %v389
    %v394 = vcvt.s32.f32 %v390
    %395 = vrot.lane.b32.xlu0 %v280, 96
    %v396 = vpop.permute.xlu0 %395
    %v398 = vsel %vm332, %v391, 0
    %v401 = vsel %vm332, %v392, 0
    %v404 = vsel %vm332, %v393, 0
    %v407 = vsel %vm332, %v394, 0
    %v409 = vsel %vm345, %v396, 0
    %411 = vmatpush.msra.mxu0 0.0
    %412 = vmatpush.msra.mxu0 0.0
    %413 = vmatpush.msra.mxu0 0.0
    %414 = vmatpush.msra.mxu0 0.0
    %415 = vmatpush.msra.mxu0 0.0
    %416 = vmatpush.msra.mxu0 0.0
    %417 = vmatpush.msra.mxu0 0.0
    %418 = vmatpush.msra.mxu0 0.0
    %419 = vmatpush.msra.mxu0 0.0
    %420 = vmatpush.msra.mxu0 0.0
    %421 = vmatpush.msra.mxu0 0.0
    %422 = vmatpush.msra.mxu0 0.0
    %423 = vmatpush.msra.mxu0 0.0
    %424 = vmatpush.msra.mxu0 0.0
    %425 = vmatpush.msra.mxu0 0.0
    %426 = vmatpush.msra.mxu0 %v409
    %427 = vmatmul.f32.gmra.mxu0 %v398
    %v428 = vpop.f32.mrf.mxu0
    %v429 = vadd.f32 0.0, %v428
    %430 = vmatmul.f32.gmra.mxu0 %v401
    %v431 = vpop.f32.mrf.mxu0
    %v432 = vadd.f32 0.0, %v431
    %433 = vmatmul.f32.gmra.mxu0 %v404
    %v434 = vpop.f32.mrf.mxu0
    %v435 = vadd.f32 0.0, %v434
    %436 = vmatmul.f32.gmra.mxu0 %v407
    %v437 = vpop.f32.mrf.mxu0
    %v438 = vadd.f32 0.0, %v437
    %439 = vdwg.mxu0
    %v440 = vadd.f32 %v378, %v429
    %v441 = vadd.f32 %v379, %v432
    %v442 = vadd.f32 %v380, %v435
    %v443 = vadd.f32 %v381, %v438
    %v444 = vadd.s32 %v319, 2
    %vm445 = vcmp.eq.s32.totalorder %v313, %v444
    %vm446 = vcmp.eq.s32.totalorder %v314, %v444
    %vm447 = vcmp.eq.s32.totalorder %v315, %v444
    %vm448 = vcmp.eq.s32.totalorder %v316, %v444
    %v449 = vsel %vm445, 1, 0
    %v450 = vsel %vm446, 1, 0
    %v451 = vsel %vm447, 1, 0
    %v452 = vsel %vm448, 1, 0
    %v453 = vcvt.s32.f32 %v449
    %v454 = vcvt.s32.f32 %v450
    %v455 = vcvt.s32.f32 %v451
    %v456 = vcvt.s32.f32 %v452
    %457 = vrot.lane.b32.xlu0 %v280, 64
    %v458 = vpop.permute.xlu0 %457
    %v460 = vsel %vm332, %v453, 0
    %v463 = vsel %vm332, %v454, 0
    %v466 = vsel %vm332, %v455, 0
    %v469 = vsel %vm332, %v456, 0
    %v471 = vsel %vm345, %v458, 0
    %473 = vmatpush.msra.mxu0 0.0
    %474 = vmatpush.msra.mxu0 0.0
    %475 = vmatpush.msra.mxu0 0.0
    %476 = vmatpush.msra.mxu0 0.0
    %477 = vmatpush.msra.mxu0 0.0
    %478 = vmatpush.msra.mxu0 0.0
    %479 = vmatpush.msra.mxu0 0.0
    %480 = vmatpush.msra.mxu0 0.0
    %481 = vmatpush.msra.mxu0 0.0
    %482 = vmatpush.msra.mxu0 0.0
    %483 = vmatpush.msra.mxu0 0.0
    %484 = vmatpush.msra.mxu0 0.0
    %485 = vmatpush.msra.mxu0 0.0
    %486 = vmatpush.msra.mxu0 0.0
    %487 = vmatpush.msra.mxu0 0.0
    %488 = vmatpush.msra.mxu0 %v471
    %489 = vmatmul.f32.gmra.mxu0 %v460
    %v490 = vpop.f32.mrf.mxu0
    %v491 = vadd.f32 0.0, %v490
    %492 = vmatmul.f32.gmra.mxu0 %v463
    %v493 = vpop.f32.mrf.mxu0
    %v494 = vadd.f32 0.0, %v493
    %495 = vmatmul.f32.gmra.mxu0 %v466
    %v496 = vpop.f32.mrf.mxu0
    %v497 = vadd.f32 0.0, %v496
    %498 = vmatmul.f32.gmra.mxu0 %v469
    %v499 = vpop.f32.mrf.mxu0
    %v500 = vadd.f32 0.0, %v499
    %501 = vdwg.mxu0
    %v502 = vadd.f32 %v440, %v491
    %v503 = vadd.f32 %v441, %v494
    %v504 = vadd.f32 %v442, %v497
    %v505 = vadd.f32 %v443, %v500
    %v506 = vadd.s32 %v319, 3
    %vm507 = vcmp.eq.s32.totalorder %v313, %v506
    %vm508 = vcmp.eq.s32.totalorder %v314, %v506
    %vm509 = vcmp.eq.s32.totalorder %v315, %v506
    %vm510 = vcmp.eq.s32.totalorder %v316, %v506
    %v511 = vsel %vm507, 1, 0
    %v512 = vsel %vm508, 1, 0
    %v513 = vsel %vm509, 1, 0
    %v514 = vsel %vm510, 1, 0
    %v515 = vcvt.s32.f32 %v511
    %v516 = vcvt.s32.f32 %v512
    %v517 = vcvt.s32.f32 %v513
    %v518 = vcvt.s32.f32 %v514
    %519 = vrot.lane.b32.xlu0 %v280, 32
    %v520 = vpop.permute.xlu0 %519
    %v522 = vsel %vm332, %v515, 0
    %v525 = vsel %vm332, %v516, 0
    %v528 = vsel %vm332, %v517, 0
    %v531 = vsel %vm332, %v518, 0
    %v533 = vsel %vm345, %v520, 0
    %535 = vmatpush.msra.mxu0 0.0
    %536 = vmatpush.msra.mxu0 0.0
    %537 = vmatpush.msra.mxu0 0.0
    %538 = vmatpush.msra.mxu0 0.0
    %539 = vmatpush.msra.mxu0 0.0
    %540 = vmatpush.msra.mxu0 0.0
    %541 = vmatpush.msra.mxu0 0.0
    %542 = vmatpush.msra.mxu0 0.0
    %543 = vmatpush.msra.mxu0 0.0
    %544 = vmatpush.msra.mxu0 0.0
    %545 = vmatpush.msra.mxu0 0.0
    %546 = vmatpush.msra.mxu0 0.0
    %547 = vmatpush.msra.mxu0 0.0
    %548 = vmatpush.msra.mxu0 0.0
    %549 = vmatpush.msra.mxu0 0.0
    %550 = vmatpush.msra.mxu0 %v533
    %551 = vmatmul.f32.gmra.mxu0 %v522
    %v552 = vpop.f32.mrf.mxu0
    %v553 = vadd.f32 0.0, %v552
    %554 = vmatmul.f32.gmra.mxu0 %v525
    %v555 = vpop.f32.mrf.mxu0
    %v556 = vadd.f32 0.0, %v555
    %557 = vmatmul.f32.gmra.mxu0 %v528
    %v558 = vpop.f32.mrf.mxu0
    %v559 = vadd.f32 0.0, %v558
    %560 = vmatmul.f32.gmra.mxu0 %v531
    %v561 = vpop.f32.mrf.mxu0
    %v562 = vadd.f32 0.0, %v561
    %563 = vdwg.mxu0
    %v564 = vadd.f32 %v502, %v553
    %v565 = vadd.f32 %v503, %v556
    %v566 = vadd.f32 %v504, %v559
    %v567 = vadd.f32 %v505, %v562
    %v568 = vadd.s32 %v319, 8
    %vm569 = vcmp.eq.s32.totalorder %v313, %v568
    %vm570 = vcmp.eq.s32.totalorder %v314, %v568
    %vm571 = vcmp.eq.s32.totalorder %v315, %v568
    %vm572 = vcmp.eq.s32.totalorder %v316, %v568
    %v573 = vsel %vm569, 1, 0
    %v574 = vsel %vm570, 1, 0
    %v575 = vsel %vm571, 1, 0
    %v576 = vsel %vm572, 1, 0
    %v577 = vcvt.s32.f32 %v573
    %v578 = vcvt.s32.f32 %v574
    %v579 = vcvt.s32.f32 %v575
    %v580 = vcvt.s32.f32 %v576
    %v582 = vsel %vm332, %v577, 0
    %v585 = vsel %vm332, %v578, 0
    %v588 = vsel %vm332, %v579, 0
    %v591 = vsel %vm332, %v580, 0
    %v594 = vsel %vm345, %v310, 0
    %596 = vmatpush.msra.mxu0 0.0
    %597 = vmatpush.msra.mxu0 0.0
    %598 = vmatpush.msra.mxu0 0.0
    %599 = vmatpush.msra.mxu0 0.0
    %600 = vmatpush.msra.mxu0 0.0
    %601 = vmatpush.msra.mxu0 0.0
    %602 = vmatpush.msra.mxu0 0.0
    %603 = vmatpush.msra.mxu0 0.0
    %604 = vmatpush.msra.mxu0 0.0
    %605 = vmatpush.msra.mxu0 0.0
    %606 = vmatpush.msra.mxu0 0.0
    %607 = vmatpush.msra.mxu0 0.0
    %608 = vmatpush.msra.mxu0 0.0
    %609 = vmatpush.msra.mxu0 0.0
    %610 = vmatpush.msra.mxu0 0.0
    %611 = vmatpush.msra.mxu0 %v594
    %612 = vmatmul.f32.gmra.mxu0 %v582
    %v613 = vpop.f32.mrf.mxu0
    %v614 = vadd.f32 0.0, %v613
    %615 = vmatmul.f32.gmra.mxu0 %v585
    %v616 = vpop.f32.mrf.mxu0
    %v617 = vadd.f32 0.0, %v616
    %618 = vmatmul.f32.gmra.mxu0 %v588
    %v619 = vpop.f32.mrf.mxu0
    %v620 = vadd.f32 0.0, %v619
    %621 = vmatmul.f32.gmra.mxu0 %v591
    %v622 = vpop.f32.mrf.mxu0
    %v623 = vadd.f32 0.0, %v622
    %624 = vdwg.mxu0
    %v625 = vadd.f32 %v564, %v614
    %v626 = vadd.f32 %v565, %v617
    %v627 = vadd.f32 %v566, %v620
    %v628 = vadd.f32 %v567, %v623
    %630 = vset.pattern.permute.xlu0 12
    %631 = vperm.xlu0 %630, %v40
    %v632 = vpop.permute.xlu0 %631
    %635 = vset.pattern.permute.xlu0 12
    %636 = vperm.xlu0 %635, %v41
    %v637 = vpop.permute.xlu0 %636
    %v639 = vmul.f32 %v632, %v40
    %v640 = vmul.f32 %v637, %v41
    %v641 = vsub.f32 1.0, %v40
    %v642 = vsub.f32 1.0, %v41
    %644 = vset.pattern.permute.xlu0 12
    %645 = vperm.xlu0 %644, %v641
    %v646 = vpop.permute.xlu0 %645
    %649 = vset.pattern.permute.xlu0 12
    %650 = vperm.xlu0 %649, %v642
    %v651 = vpop.permute.xlu0 %650
    %v653 = vmul.f32 %v646, %v40
    %v654 = vmul.f32 %v651, %v41
    %657 = vrot.lane.b32.xlu0 %v653, 6
    %v658 = vpop.permute.xlu0 %657
    %659 = vrot.lane.b32.xlu0 %v654, 6
    %v660 = vpop.permute.xlu0 %659
    %v663 = vadd.f32 %v639, %v658
    %v664 = vadd.f32 %v640, %v660
    %665 = vrot.lane.b32.xlu0 %v40, 6
    %v666 = vpop.permute.xlu0 %665
    %667 = vrot.lane.b32.xlu0 %v41, 6
    %v668 = vpop.permute.xlu0 %667
    %v671 = vsub.f32 %v40, %v666
    %v672 = vsub.f32 %v41, %v668
    %v673 = vld [vmem:[#allocation2 + $0x318] sm:$0x3f]
    %v674 = vld [vmem:[#allocation2 + $0x320] sm:$0x1]
    %v675 = vperm.slane %v674, 0
    %678 = vrot.lane.b32.xlu0 %v663, 122
    %v679 = vpop.permute.xlu0 %678
    %680 = vrot.lane.b32.xlu0 %v664, 122
    %v681 = vpop.permute.xlu0 %680
    %v682 = vsel %vm284, %v679, 0
    %v684 = vsel %vm284, %v681, 0
    %v687 = vsel %vm288, %v673, 0
    %689 = vmatpush.msra.mxu0 0.0
    %690 = vmatpush.msra.mxu0 0.0
    %691 = vmatpush.msra.mxu0 0.0
    %692 = vmatpush.msra.mxu0 0.0
    %693 = vmatpush.msra.mxu0 0.0
    %694 = vmatpush.msra.mxu0 0.0
    %695 = vmatpush.msra.mxu0 0.0
    %696 = vmatpush.msra.mxu0 0.0
    %697 = vmatpush.msra.mxu0 0.0
    %698 = vmatpush.msra.mxu0 0.0
    %699 = vmatpush.msra.mxu0 0.0
    %700 = vmatpush.msra.mxu0 0.0
    %701 = vmatpush.msra.mxu0 0.0
    %702 = vmatpush.msra.mxu0 0.0
    %703 = vmatpush.msra.mxu0 0.0
    %704 = vmatpush.msra.mxu0 %v687
    %705 = vmatmul.f32.gmra.mxu0 %v682
    %v706 = vpop.f32.mrf.mxu0
    %v707 = vadd.f32 %v675, %v706
    %708 = vmatmul.f32.gmra.mxu0 %v684
    %v709 = vpop.f32.mrf.mxu0
    %v710 = vadd.f32 %v675, %v709
    %711 = vdwg.mxu0
    %v712 = vld [vmem:[#allocation2 + $0x328] sm:$0x1]
    %v713 = vperm.slane %v712, 0
    %v714 = vmul.f32 %v632, %v713
    %v715 = vmul.f32 %v637, %v713
    %v716 = vld [vmem:[#allocation2 + $0x330] sm:$0xff]
    %v717 = vld [vmem:[#allocation2 + $0x338] sm:$0xff]
    %v718 = vld [vmem:[#allocation2 + $0x340] sm:$0xff]
    %v719 = vld [vmem:[#allocation2 + $0x348] sm:$0xff]
    %v720 = vand.u32 2147483647, %v714
    %vm721 = vcmp.le.f32.partialorder %v720, 0.7853982
    %vm722 = vcmp.lt.s32.totalorder %v714, 0
    %v723 = vand.u32 %v714, 2139095040
    %v724 = vshrl.u32 %v723, 23
    %v725 = vsub.s32 %v724, 127
    %v726 = vand.u32 2147483647, %v714
    %v727 = vand.u32 %v726, 8388607
    %v728 = vor.u32 %v727, 8388608
    %v729 = vsub.s32 0, %v728
    %v730 = vadd.s32 %v725, 1
    %vm731 = vcmp.gt.s32.totalorder %v730, 0
    %v732 = vsel %vm731, %v730, 0
    %v733 = vshrl.u32 %v732, 5
    %v734 = vand.u32 %v732, 31
    %v735 = vsub.s32 32, %v734
    %v736 = vshrl.u32 683565275, %v735
    %v737 = vshll.u32 683565275, %v734
    %v738 = vshrl.u32 2475754826, %v735
    %v739 = vor.u32 %v737, %v738
    %v740 = vshll.u32 2475754826, %v734
    %v741 = vshrl.u32 2131351028, %v735
    %v742 = vor.u32 %v740, %v741
    %v743 = vshll.u32 2131351028, %v734
    %v744 = vshrl.u32 2102212464, %v735
    %v745 = vor.u32 %v743, %v744
    %v746 = vshll.u32 2102212464, %v734
    %v747 = vshrl.u32 920167782, %v735
    %v748 = vor.u32 %v746, %v747
    %v749 = vshll.u32 920167782, %v734
    %v750 = vshrl.u32 1326507024, %v735
    %v751 = vor.u32 %v749, %v750
    %vm752 = vcmp.lt.s32.totalorder %v733, 1
    %vm753 = vcmp.lt.s32.totalorder %v733, 2
    %vm754 = vcmp.lt.s32.totalorder %v733, 3
    %vm755 = vcmp.lt.s32.totalorder %v733, 4
    %v756 = vsel %vm752, %v736, %v739
    %v757 = vsel %vm755, %v745, 2102212464
    %v758 = vsel %vm754, %v742, %v757
    %v759 = vsel %vm753, %v756, %v758
    %v760 = vsel %vm752, %v739, %v742
    %v761 = vsel %vm755, %v748, 920167782
    %v762 = vsel %vm754, %v745, %v761
    %v763 = vsel %vm753, %v760, %v762
    %v764 = vsel %vm752, %v742, %v745
    %v765 = vsel %vm755, %v751, 1326507024
    %v766 = vsel %vm754, %v748, %v765
    %v767 = vsel %vm753, %v764, %v766
    %v768 = vshll.u32 %v728, 8
    %v769 = vand.u32 %v768, 65535
    %v770 = vshrl.u32 %v768, 16
    %v771 = vand.u32 %v767, 65535
    %v772 = vshrl.u32 %v767, 16
    %v773 = vmul.u32 %v769, %v771
    %v774 = vmul.u32 %v769, %v772
    %v775 = vmul.u32 %v770, %v771
    %v776 = vmul.u32 %v770, %v772
    %v777 = vshll.u32 %v774, 16
    %v778 = vshrl.u32 %v774, 16
    %v779 = vshll.u32 %v775, 16
    %v780 = vshrl.u32 %v775, 16
    %vm781 = vc.u32 %v773, %v777
    %v782 = vsel %vm781, 1, 0
    %v783 = vadd.s32 %v773, %v777
    %v784 = vadd.s32 %v776, %v782
    %vm785 = vc.u32 %v783, %v779
    %v786 = vsel %vm785, 1, 0
    %v787 = vadd.s32 %v783, %v779
    %v788 = vadd.s32 %v784, %v786
    %v789 = vadd.s32 %v788, %v778
    %v790 = vadd.s32 %v789, %v780
    %v791 = vand.u32 %v768, 65535
    %v792 = vshrl.u32 %v768, 16
    %v793 = vand.u32 %v763, 65535
    %v794 = vshrl.u32 %v763, 16
    %v795 = vmul.u32 %v791, %v793
    %v796 = vmul.u32 %v791, %v794
    %v797 = vmul.u32 %v792, %v793
    %v798 = vmul.u32 %v792, %v794
    %v799 = vshll.u32 %v796, 16
    %v800 = vshrl.u32 %v796, 16
    %v801 = vshll.u32 %v797, 16
    %v802 = vshrl.u32 %v797, 16
    %vm803 = vc.u32 %v795, %v799
    %v804 = vsel %vm803, 1, 0
    %v805 = vadd.s32 %v795, %v799
    %v806 = vadd.s32 %v798, %v804
    %vm807 = vc.u32 %v805, %v801
    %v808 = vsel %vm807, 1, 0
    %v809 = vadd.s32 %v805, %v801
    %v810 = vadd.s32 %v806, %v808
    %v811 = vadd.s32 %v810, %v800
    %v812 = vadd.s32 %v811, %v802
    %v813 = vmul.u32 %v768, %v759
    %v814 = vadd.s32 %v790, %v809
    %vm815 = vc.u32 %v790, %v809
    %v816 = vadd.s32 %v812, 1
    %v817 = vsel %vm815, %v816, %v812
    %v818 = vadd.s32 %v813, %v817
    %v819 = vadd.s32 %v818, 536870912
    %v820 = vshrl.u32 %v819, 30
    %v821 = vshll.u32 %v820, 30
    %v822 = vsub.s32 %v818, %v821
    %vm823 = vcmp.lt.s32.totalorder %v822, 0
    %v824 = vsub.s32 0, %v822
    %v825 = vsel %vm823, %v824, %v822
    %v826 = vclz %v825
    %v827 = vsub.s32 %v826, 2
    %vm828 = vcmp.gt.s32.totalorder 0, %v827
    %v829 = vsel %vm828, 0, %v827
    %v830 = vsub.s32 32, %v829
    %v831 = vshll.u32 %v822, %v829
    %v832 = vshrl.u32 %v814, %v830
    %v833 = vor.u32 %v831, %v832
    %v834 = vsub.s32 4294967266, %v829
    %v835 = vadd.s32 %v834, 127
    %v836 = vshll.u32 %v835, 23
    %v837 = vor.u32 4788187, %v836
    %v838 = vand.u32 2147483647, %v837
    %v840 = vcvt.s32.f32 %v833
    %v841 = vmul.f32 %v840, %v838
    %v842 = vxor.u32 %v841, 2147483648
    %v843 = vsel %vm722, %v842, %v841
    %v844 = vsub.s32 4, %v820
    %v845 = vsel %vm722, %v844, %v820
    %v846 = vsel %vm721, %v714, %v843
    %v847 = vsel %vm721, 0, %v845
    %v848 = vmul.f32 %v846, %v846
    %v849 = vmul.f32 %v848, -0.001358992
    %v850 = vadd.f32 %v849, 0.041655596
    %v851 = vmul.f32 %v848, %v850
    %v852 = vadd.f32 %v851, -0.4999988
    %v853 = vmul.f32 %v848, %v852
    %v854 = vadd.f32 1.0, %v853
    %v855 = vmul.f32 %v846, %v846
    %v856 = vmul.f32 %v855, -0.00019511016
    %v857 = vadd.f32 %v856, 0.008332121
    %v858 = vmul.f32 %v855, %v857
    %v859 = vadd.f32 %v858, -0.16666654
    %v860 = vmul.f32 %v855, %v859
    %v861 = vadd.f32 %v860, 1.0
    %v862 = vmul.f32 %v861, %v846
    %vm863 = vweird.f32 %v714
    %v864 = vadd.s32 %v847, 3
    %v865 = vand.u32 %v864, 3
    %vm866 = vcmp.lt.s32.totalorder %v865, 2
    %vm867 = vcmp.eq.s32.totalorder %v865, 0
    %v868 = vxor.u32 %v862, 2147483648
    %v869 = vsel %vm867, %v854, %v868
    %vm870 = vcmp.eq.s32.totalorder %v865, 2
    %v871 = vxor.u32 %v854, 2147483648
    %v872 = vsel %vm870, %v871, %v862
    %v873 = vsel %vm866, %v869, %v872
    %v874 = vsel %vm863, nan, %v873
    %v875 = vand.u32 2147483647, %v715
    %vm876 = vcmp.le.f32.partialorder %v875, 0.7853982
    %vm877 = vcmp.lt.s32.totalorder %v715, 0
    %v878 = vand.u32 %v715, 2139095040
    %v879 = vshrl.u32 %v878, 23
    %v880 = vsub.s32 %v879, 127
    %v881 = vand.u32 2147483647, %v715
    %v882 = vand.u32 %v881, 8388607
    %v883 = vor.u32 %v882, 8388608
    %v884 = vsub.s32 0, %v883
    %v885 = vadd.s32 %v880, 1
    %vm886 = vcmp.gt.s32.totalorder %v885, 0
    %v887 = vsel %vm886, %v885, 0
    %v888 = vshrl.u32 %v887, 5
    %v889 = vand.u32 %v887, 31
    %v890 = vsub.s32 32, %v889
    %v891 = vshrl.u32 683565275, %v890
    %v892 = vshll.u32 683565275, %v889
    %v893 = vshrl.u32 2475754826, %v890
    %v894 = vor.u32 %v892, %v893
    %v895 = vshll.u32 2475754826, %v889
    %v896 = vshrl.u32 2131351028, %v890
    %v897 = vor.u32 %v895, %v896
    %v898 = vshll.u32 2131351028, %v889
    %v899 = vshrl.u32 2102212464, %v890
    %v900 = vor.u32 %v898, %v899
    %v901 = vshll.u32 2102212464, %v889
    %v902 = vshrl.u32 920167782, %v890
    %v903 = vor.u32 %v901, %v902
    %v904 = vshll.u32 920167782, %v889
    %v905 = vshrl.u32 1326507024, %v890
    %v906 = vor.u32 %v904, %v905
    %vm907 = vcmp.lt.s32.totalorder %v888, 1
    %vm908 = vcmp.lt.s32.totalorder %v888, 2
    %vm909 = vcmp.lt.s32.totalorder %v888, 3
    %vm910 = vcmp.lt.s32.totalorder %v888, 4
    %v911 = vsel %vm907, %v891, %v894
    %v912 = vsel %vm910, %v900, 2102212464
    %v913 = vsel %vm909, %v897, %v912
    %v914 = vsel %vm908, %v911, %v913
    %v915 = vsel %vm907, %v894, %v897
    %v916 = vsel %vm910, %v903, 920167782
    %v917 = vsel %vm909, %v900, %v916
    %v918 = vsel %vm908, %v915, %v917
    %v919 = vsel %vm907, %v897, %v900
    %v920 = vsel %vm910, %v906, 1326507024
    %v921 = vsel %vm909, %v903, %v920
    %v922 = vsel %vm908, %v919, %v921
    %v923 = vshll.u32 %v883, 8
    %v924 = vand.u32 %v923, 65535
    %v925 = vshrl.u32 %v923, 16
    %v926 = vand.u32 %v922, 65535
    %v927 = vshrl.u32 %v922, 16
    %v928 = vmul.u32 %v924, %v926
    %v929 = vmul.u32 %v924, %v927
    %v930 = vmul.u32 %v925, %v926
    %v931 = vmul.u32 %v925, %v927
    %v932 = vshll.u32 %v929, 16
    %v933 = vshrl.u32 %v929, 16
    %v934 = vshll.u32 %v930, 16
    %v935 = vshrl.u32 %v930, 16
    %vm936 = vc.u32 %v928, %v932
    %v937 = vsel %vm936, 1, 0
    %v938 = vadd.s32 %v928, %v932
    %v939 = vadd.s32 %v931, %v937
    %vm940 = vc.u32 %v938, %v934
    %v941 = vsel %vm940, 1, 0
    %v942 = vadd.s32 %v938, %v934
    %v943 = vadd.s32 %v939, %v941
    %v944 = vadd.s32 %v943, %v933
    %v945 = vadd.s32 %v944, %v935
    %v946 = vand.u32 %v923, 65535
    %v947 = vshrl.u32 %v923, 16
    %v948 = vand.u32 %v918, 65535
    %v949 = vshrl.u32 %v918, 16
    %v950 = vmul.u32 %v946, %v948
    %v951 = vmul.u32 %v946, %v949
    %v952 = vmul.u32 %v947, %v948
    %v953 = vmul.u32 %v947, %v949
    %v954 = vshll.u32 %v951, 16
    %v955 = vshrl.u32 %v951, 16
    %v956 = vshll.u32 %v952, 16
    %v957 = vshrl.u32 %v952, 16
    %vm958 = vc.u32 %v950, %v954
    %v959 = vsel %vm958, 1, 0
    %v960 = vadd.s32 %v950, %v954
    %v961 = vadd.s32 %v953, %v959
    %vm962 = vc.u32 %v960, %v956
    %v963 = vsel %vm962, 1, 0
    %v964 = vadd.s32 %v960, %v956
    %v965 = vadd.s32 %v961, %v963
    %v966 = vadd.s32 %v965, %v955
    %v967 = vadd.s32 %v966, %v957
    %v968 = vmul.u32 %v923, %v914
    %v969 = vadd.s32 %v945, %v964
    %vm970 = vc.u32 %v945, %v964
    %v971 = vadd.s32 %v967, 1
    %v972 = vsel %vm970, %v971, %v967
    %v973 = vadd.s32 %v968, %v972
    %v974 = vadd.s32 %v973, 536870912
    %v975 = vshrl.u32 %v974, 30
    %v976 = vshll.u32 %v975, 30
    %v977 = vsub.s32 %v973, %v976
    %vm978 = vcmp.lt.s32.totalorder %v977, 0
    %v979 = vsub.s32 0, %v977
    %v980 = vsel %vm978, %v979, %v977
    %v981 = vclz %v980
    %v982 = vsub.s32 %v981, 2
    %vm983 = vcmp.gt.s32.totalorder 0, %v982
    %v984 = vsel %vm983, 0, %v982
    %v985 = vsub.s32 32, %v984
    %v986 = vshll.u32 %v977, %v984
    %v987 = vshrl.u32 %v969, %v985
    %v988 = vor.u32 %v986, %v987
    %v989 = vsub.s32 4294967266, %v984
    %v990 = vadd.s32 %v989, 127
    %v991 = vshll.u32 %v990, 23
    %v992 = vor.u32 4788187, %v991
    %v993 = vand.u32 2147483647, %v992
    %v995 = vcvt.s32.f32 %v988
    %v996 = vmul.f32 %v995, %v993
    %v997 = vxor.u32 %v996, 2147483648
    %v998 = vsel %vm877, %v997, %v996
    %v999 = vsub.s32 4, %v975
    %v1000 = vsel %vm877, %v999, %v975
    %v1001 = vsel %vm876, %v715, %v998
    %v1002 = vsel %vm876, 0, %v1000
    %v1003 = vmul.f32 %v1001, %v1001
    %v1004 = vmul.f32 %v1003, -0.001358992
    %v1005 = vadd.f32 %v1004, 0.041655596
    %v1006 = vmul.f32 %v1003, %v1005
    %v1007 = vadd.f32 %v1006, -0.4999988
    %v1008 = vmul.f32 %v1003, %v1007
    %v1009 = vadd.f32 1.0, %v1008
    %v1010 = vmul.f32 %v1001, %v1001
    %v1011 = vmul.f32 %v1010, -0.00019511016
    %v1012 = vadd.f32 %v1011, 0.008332121
    %v1013 = vmul.f32 %v1010, %v1012
    %v1014 = vadd.f32 %v1013, -0.16666654
    %v1015 = vmul.f32 %v1010, %v1014
    %v1016 = vadd.f32 %v1015, 1.0
    %v1017 = vmul.f32 %v1016, %v1001
    %vm1018 = vweird.f32 %v715
    %v1019 = vadd.s32 %v1002, 3
    %v1020 = vand.u32 %v1019, 3
    %vm1021 = vcmp.lt.s32.totalorder %v1020, 2
    %vm1022 = vcmp.eq.s32.totalorder %v1020, 0
    %v1023 = vxor.u32 %v1017, 2147483648
    %v1024 = vsel %vm1022, %v1009, %v1023
    %vm1025 = vcmp.eq.s32.totalorder %v1020, 2
    %v1026 = vxor.u32 %v1009, 2147483648
    %v1027 = vsel %vm1025, %v1026, %v1017
    %v1028 = vsel %vm1021, %v1024, %v1027
    %v1029 = vsel %vm1018, nan, %v1028
    %vm1030 = vcmask 64512
    %v1032 = vsel %vm1030, %v874, 0
    %v1035 = vsel %vm1030, %v1029, 0
    %1037 = vmatpush.msra.mxu0 0.0
    %1038 = vmatpush.msra.mxu0 0.0
    %1039 = vmatpush.msra.mxu0 0.0
    %1040 = vmatpush.msra.mxu0 0.0
    %1041 = vmatpush.msra.mxu0 0.0
    %1042 = vmatpush.msra.mxu0 0.0
    %1043 = vmatpush.msra.mxu0 0.0
    %1044 = vmatpush.msra.mxu0 0.0
    %1045 = vmatpush.msra.mxu0 0.0
    %1046 = vmatpush.msra.mxu0 0.0
    %1047 = vmatpush.msra.mxu0 0.0
    %1048 = vmatpush.msra.mxu0 0.0
    %1049 = vmatpush.msra.mxu0 0.0
    %1050 = vmatpush.msra.mxu0 0.0
    %1051 = vmatpush.msra.mxu0 0.0
    %1052 = vmatpush.msra.mxu0 %v718
    %1053 = vmatmul.f32.gmra.mxu0 %v1032
    %v1054 = vpop.f32.mrf.mxu0
    %v1055 = vadd.f32 0.0, %v1054
    %1056 = vmatmul.f32.gmra.mxu0 %v1035
    %v1057 = vpop.f32.mrf.mxu0
    %v1058 = vadd.f32 0.0, %v1057
    %1059 = vdwg.mxu0
    %vm1060 = vcmask 130048
    %v1062 = vsel %vm1060, %v707, 0
    %v1065 = vsel %vm1060, %v710, 0
    %1067 = vmatpush.msra.mxu0 0.0
    %1068 = vmatpush.msra.mxu0 0.0
    %1069 = vmatpush.msra.mxu0 0.0
    %1070 = vmatpush.msra.mxu0 0.0
    %1071 = vmatpush.msra.mxu0 0.0
    %1072 = vmatpush.msra.mxu0 0.0
    %1073 = vmatpush.msra.mxu0 0.0
    %1074 = vmatpush.msra.mxu0 0.0
    %1075 = vmatpush.msra.mxu0 0.0
    %1076 = vmatpush.msra.mxu0 0.0
    %1077 = vmatpush.msra.mxu0 0.0
    %1078 = vmatpush.msra.mxu0 0.0
    %1079 = vmatpush.msra.mxu0 0.0
    %1080 = vmatpush.msra.mxu0 0.0
    %1081 = vmatpush.msra.mxu0 %v717
    %1082 = vmatpush.msra.mxu0 %v716
    %1083 = vmatmul.f32.gmra.mxu0 %v1062
    %v1084 = vpop.f32.mrf.mxu0
    %v1085 = vadd.f32 %v1055, %v1084
    %1086 = vmatmul.f32.gmra.mxu0 %v1065
    %v1087 = vpop.f32.mrf.mxu0
    %v1088 = vadd.f32 %v1058, %v1087
    %1089 = vdwg.mxu0
    %v1090 = vand.u32 2147483647, %v714
    %vm1091 = vcmp.le.f32.partialorder %v1090, 0.7853982
    %vm1092 = vcmp.lt.s32.totalorder %v714, 0
    %v1093 = vand.u32 %v714, 2139095040
    %v1094 = vshrl.u32 %v1093, 23
    %v1095 = vsub.s32 %v1094, 127
    %v1096 = vand.u32 2147483647, %v714
    %v1097 = vand.u32 %v1096, 8388607
    %v1098 = vor.u32 %v1097, 8388608
    %v1099 = vsub.s32 0, %v1098
    %v1100 = vadd.s32 %v1095, 1
    %vm1101 = vcmp.gt.s32.totalorder %v1100, 0
    %v1102 = vsel %vm1101, %v1100, 0
    %v1103 = vshrl.u32 %v1102, 5
    %v1104 = vand.u32 %v1102, 31
    %v1105 = vsub.s32 32, %v1104
    %v1106 = vshrl.u32 683565275, %v1105
    %v1107 = vshll.u32 683565275, %v1104
    %v1108 = vshrl.u32 2475754826, %v1105
    %v1109 = vor.u32 %v1107, %v1108
    %v1110 = vshll.u32 2475754826, %v1104
    %v1111 = vshrl.u32 2131351028, %v1105
    %v1112 = vor.u32 %v1110, %v1111
    %v1113 = vshll.u32 2131351028, %v1104
    %v1114 = vshrl.u32 2102212464, %v1105
    %v1115 = vor.u32 %v1113, %v1114
    %v1116 = vshll.u32 2102212464, %v1104
    %v1117 = vshrl.u32 920167782, %v1105
    %v1118 = vor.u32 %v1116, %v1117
    %v1119 = vshll.u32 920167782, %v1104
    %v1120 = vshrl.u32 1326507024, %v1105
    %v1121 = vor.u32 %v1119, %v1120
    %vm1122 = vcmp.lt.s32.totalorder %v1103, 1
    %vm1123 = vcmp.lt.s32.totalorder %v1103, 2
    %vm1124 = vcmp.lt.s32.totalorder %v1103, 3
    %vm1125 = vcmp.lt.s32.totalorder %v1103, 4
    %v1126 = vsel %vm1122, %v1106, %v1109
    %v1127 = vsel %vm1125, %v1115, 2102212464
    %v1128 = vsel %vm1124, %v1112, %v1127
    %v1129 = vsel %vm1123, %v1126, %v1128
    %v1130 = vsel %vm1122, %v1109, %v1112
    %v1131 = vsel %vm1125, %v1118, 920167782
    %v1132 = vsel %vm1124, %v1115, %v1131
    %v1133 = vsel %vm1123, %v1130, %v1132
    %v1134 = vsel %vm1122, %v1112, %v1115
    %v1135 = vsel %vm1125, %v1121, 1326507024
    %v1136 = vsel %vm1124, %v1118, %v1135
    %v1137 = vsel %vm1123, %v1134, %v1136
    %v1138 = vshll.u32 %v1098, 8
    %v1139 = vand.u32 %v1138, 65535
    %v1140 = vshrl.u32 %v1138, 16
    %v1141 = vand.u32 %v1137, 65535
    %v1142 = vshrl.u32 %v1137, 16
    %v1143 = vmul.u32 %v1139, %v1141
    %v1144 = vmul.u32 %v1139, %v1142
    %v1145 = vmul.u32 %v1140, %v1141
    %v1146 = vmul.u32 %v1140, %v1142
    %v1147 = vshll.u32 %v1144, 16
    %v1148 = vshrl.u32 %v1144, 16
    %v1149 = vshll.u32 %v1145, 16
    %v1150 = vshrl.u32 %v1145, 16
    %vm1151 = vc.u32 %v1143, %v1147
    %v1152 = vsel %vm1151, 1, 0
    %v1153 = vadd.s32 %v1143, %v1147
    %v1154 = vadd.s32 %v1146, %v1152
    %vm1155 = vc.u32 %v1153, %v1149
    %v1156 = vsel %vm1155, 1, 0
    %v1157 = vadd.s32 %v1153, %v1149
    %v1158 = vadd.s32 %v1154, %v1156
    %v1159 = vadd.s32 %v1158, %v1148
    %v1160 = vadd.s32 %v1159, %v1150
    %v1161 = vand.u32 %v1138, 65535
    %v1162 = vshrl.u32 %v1138, 16
    %v1163 = vand.u32 %v1133, 65535
    %v1164 = vshrl.u32 %v1133, 16
    %v1165 = vmul.u32 %v1161, %v1163
    %v1166 = vmul.u32 %v1161, %v1164
    %v1167 = vmul.u32 %v1162, %v1163
    %v1168 = vmul.u32 %v1162, %v1164
    %v1169 = vshll.u32 %v1166, 16
    %v1170 = vshrl.u32 %v1166, 16
    %v1171 = vshll.u32 %v1167, 16
    %v1172 = vshrl.u32 %v1167, 16
    %vm1173 = vc.u32 %v1165, %v1169
    %v1174 = vsel %vm1173, 1, 0
    %v1175 = vadd.s32 %v1165, %v1169
    %v1176 = vadd.s32 %v1168, %v1174
    %vm1177 = vc.u32 %v1175, %v1171
    %v1178 = vsel %vm1177, 1, 0
    %v1179 = vadd.s32 %v1175, %v1171
    %v1180 = vadd.s32 %v1176, %v1178
    %v1181 = vadd.s32 %v1180, %v1170
    %v1182 = vadd.s32 %v1181, %v1172
    %v1183 = vmul.u32 %v1138, %v1129
    %v1184 = vadd.s32 %v1160, %v1179
    %vm1185 = vc.u32 %v1160, %v1179
    %v1186 = vadd.s32 %v1182, 1
    %v1187 = vsel %vm1185, %v1186, %v1182
    %v1188 = vadd.s32 %v1183, %v1187
    %v1189 = vadd.s32 %v1188, 536870912
    %v1190 = vshrl.u32 %v1189, 30
    %v1191 = vshll.u32 %v1190, 30
    %v1192 = vsub.s32 %v1188, %v1191
    %vm1193 = vcmp.lt.s32.totalorder %v1192, 0
    %v1194 = vsub.s32 0, %v1192
    %v1195 = vsel %vm1193, %v1194, %v1192
    %v1196 = vclz %v1195
    %v1197 = vsub.s32 %v1196, 2
    %vm1198 = vcmp.gt.s32.totalorder 0, %v1197
    %v1199 = vsel %vm1198, 0, %v1197
    %v1200 = vsub.s32 32, %v1199
    %v1201 = vshll.u32 %v1192, %v1199
    %v1202 = vshrl.u32 %v1184, %v1200
    %v1203 = vor.u32 %v1201, %v1202
    %v1204 = vsub.s32 4294967266, %v1199
    %v1205 = vadd.s32 %v1204, 127
    %v1206 = vshll.u32 %v1205, 23
    %v1207 = vor.u32 4788187, %v1206
    %v1208 = vand.u32 2147483647, %v1207
    %v1210 = vcvt.s32.f32 %v1203
    %v1211 = vmul.f32 %v1210, %v1208
    %v1212 = vxor.u32 %v1211, 2147483648
    %v1213 = vsel %vm1092, %v1212, %v1211
    %v1214 = vsub.s32 4, %v1190
    %v1215 = vsel %vm1092, %v1214, %v1190
    %v1216 = vsel %vm1091, %v714, %v1213
    %v1217 = vsel %vm1091, 0, %v1215
    %v1218 = vmul.f32 %v1216, %v1216
    %v1219 = vmul.f32 %v1218, -0.001358992
    %v1220 = vadd.f32 %v1219, 0.041655596
    %v1221 = vmul.f32 %v1218, %v1220
    %v1222 = vadd.f32 %v1221, -0.4999988
    %v1223 = vmul.f32 %v1218, %v1222
    %v1224 = vadd.f32 1.0, %v1223
    %v1225 = vmul.f32 %v1216, %v1216
    %v1226 = vmul.f32 %v1225, -0.00019511016
    %v1227 = vadd.f32 %v1226, 0.008332121
    %v1228 = vmul.f32 %v1225, %v1227
    %v1229 = vadd.f32 %v1228, -0.16666654
    %v1230 = vmul.f32 %v1225, %v1229
    %v1231 = vadd.f32 %v1230, 1.0
    %v1232 = vmul.f32 %v1231, %v1216
    %vm1233 = vweird.f32 %v714
    %v1234 = vand.u32 %v1217, 3
    %vm1235 = vcmp.lt.s32.totalorder %v1234, 2
    %vm1236 = vcmp.eq.s32.totalorder %v1234, 0
    %v1237 = vxor.u32 %v1232, 2147483648
    %v1238 = vsel %vm1236, %v1224, %v1237
    %vm1239 = vcmp.eq.s32.totalorder %v1234, 2
    %v1240 = vxor.u32 %v1224, 2147483648
    %v1241 = vsel %vm1239, %v1240, %v1232
    %v1242 = vsel %vm1235, %v1238, %v1241
    %v1243 = vsel %vm1233, nan, %v1242
    %v1244 = vand.u32 2147483647, %v715
    %vm1245 = vcmp.le.f32.partialorder %v1244, 0.7853982
    %vm1246 = vcmp.lt.s32.totalorder %v715, 0
    %v1247 = vand.u32 %v715, 2139095040
    %v1248 = vshrl.u32 %v1247, 23
    %v1249 = vsub.s32 %v1248, 127
    %v1250 = vand.u32 2147483647, %v715
    %v1251 = vand.u32 %v1250, 8388607
    %v1252 = vor.u32 %v1251, 8388608
    %v1253 = vsub.s32 0, %v1252
    %v1254 = vadd.s32 %v1249, 1
    %vm1255 = vcmp.gt.s32.totalorder %v1254, 0
    %v1256 = vsel %vm1255, %v1254, 0
    %v1257 = vshrl.u32 %v1256, 5
    %v1258 = vand.u32 %v1256, 31
    %v1259 = vsub.s32 32, %v1258
    %v1260 = vshrl.u32 683565275, %v1259
    %v1261 = vshll.u32 683565275, %v1258
    %v1262 = vshrl.u32 2475754826, %v1259
    %v1263 = vor.u32 %v1261, %v1262
    %v1264 = vshll.u32 2475754826, %v1258
    %v1265 = vshrl.u32 2131351028, %v1259
    %v1266 = vor.u32 %v1264, %v1265
    %v1267 = vshll.u32 2131351028, %v1258
    %v1268 = vshrl.u32 2102212464, %v1259
    %v1269 = vor.u32 %v1267, %v1268
    %v1270 = vshll.u32 2102212464, %v1258
    %v1271 = vshrl.u32 920167782, %v1259
    %v1272 = vor.u32 %v1270, %v1271
    %v1273 = vshll.u32 920167782, %v1258
    %v1274 = vshrl.u32 1326507024, %v1259
    %v1275 = vor.u32 %v1273, %v1274
    %vm1276 = vcmp.lt.s32.totalorder %v1257, 1
    %vm1277 = vcmp.lt.s32.totalorder %v1257, 2
    %vm1278 = vcmp.lt.s32.totalorder %v1257, 3
    %vm1279 = vcmp.lt.s32.totalorder %v1257, 4
    %v1280 = vsel %vm1276, %v1260, %v1263
    %v1281 = vsel %vm1279, %v1269, 2102212464
    %v1282 = vsel %vm1278, %v1266, %v1281
    %v1283 = vsel %vm1277, %v1280, %v1282
    %v1284 = vsel %vm1276, %v1263, %v1266
    %v1285 = vsel %vm1279, %v1272, 920167782
    %v1286 = vsel %vm1278, %v1269, %v1285
    %v1287 = vsel %vm1277, %v1284, %v1286
    %v1288 = vsel %vm1276, %v1266, %v1269
    %v1289 = vsel %vm1279, %v1275, 1326507024
    %v1290 = vsel %vm1278, %v1272, %v1289
    %v1291 = vsel %vm1277, %v1288, %v1290
    %v1292 = vshll.u32 %v1252, 8
    %v1293 = vand.u32 %v1292, 65535
    %v1294 = vshrl.u32 %v1292, 16
    %v1295 = vand.u32 %v1291, 65535
    %v1296 = vshrl.u32 %v1291, 16
    %v1297 = vmul.u32 %v1293, %v1295
    %v1298 = vmul.u32 %v1293, %v1296
    %v1299 = vmul.u32 %v1294, %v1295
    %v1300 = vmul.u32 %v1294, %v1296
    %v1301 = vshll.u32 %v1298, 16
    %v1302 = vshrl.u32 %v1298, 16
    %v1303 = vshll.u32 %v1299, 16
    %v1304 = vshrl.u32 %v1299, 16
    %vm1305 = vc.u32 %v1297, %v1301
    %v1306 = vsel %vm1305, 1, 0
    %v1307 = vadd.s32 %v1297, %v1301
    %v1308 = vadd.s32 %v1300, %v1306
    %vm1309 = vc.u32 %v1307, %v1303
    %v1310 = vsel %vm1309, 1, 0
    %v1311 = vadd.s32 %v1307, %v1303
    %v1312 = vadd.s32 %v1308, %v1310
    %v1313 = vadd.s32 %v1312, %v1302
    %v1314 = vadd.s32 %v1313, %v1304
    %v1315 = vand.u32 %v1292, 65535
    %v1316 = vshrl.u32 %v1292, 16
    %v1317 = vand.u32 %v1287, 65535
    %v1318 = vshrl.u32 %v1287, 16
    %v1319 = vmul.u32 %v1315, %v1317
    %v1320 = vmul.u32 %v1315, %v1318
    %v1321 = vmul.u32 %v1316, %v1317
    %v1322 = vmul.u32 %v1316, %v1318
    %v1323 = vshll.u32 %v1320, 16
    %v1324 = vshrl.u32 %v1320, 16
    %v1325 = vshll.u32 %v1321, 16
    %v1326 = vshrl.u32 %v1321, 16
    %vm1327 = vc.u32 %v1319, %v1323
    %v1328 = vsel %vm1327, 1, 0
    %v1329 = vadd.s32 %v1319, %v1323
    %v1330 = vadd.s32 %v1322, %v1328
    %vm1331 = vc.u32 %v1329, %v1325
    %v1332 = vsel %vm1331, 1, 0
    %v1333 = vadd.s32 %v1329, %v1325
    %v1334 = vadd.s32 %v1330, %v1332
    %v1335 = vadd.s32 %v1334, %v1324
    %v1336 = vadd.s32 %v1335, %v1326
    %v1337 = vmul.u32 %v1292, %v1283
    %v1338 = vadd.s32 %v1314, %v1333
    %vm1339 = vc.u32 %v1314, %v1333
    %v1340 = vadd.s32 %v1336, 1
    %v1341 = vsel %vm1339, %v1340, %v1336
    %v1342 = vadd.s32 %v1337, %v1341
    %v1343 = vadd.s32 %v1342, 536870912
    %v1344 = vshrl.u32 %v1343, 30
    %v1345 = vshll.u32 %v1344, 30
    %v1346 = vsub.s32 %v1342, %v1345
    %vm1347 = vcmp.lt.s32.totalorder %v1346, 0
    %v1348 = vsub.s32 0, %v1346
    %v1349 = vsel %vm1347, %v1348, %v1346
    %v1350 = vclz %v1349
    %v1351 = vsub.s32 %v1350, 2
    %vm1352 = vcmp.gt.s32.totalorder 0, %v1351
    %v1353 = vsel %vm1352, 0, %v1351
    %v1354 = vsub.s32 32, %v1353
    %v1355 = vshll.u32 %v1346, %v1353
    %v1356 = vshrl.u32 %v1338, %v1354
    %v1357 = vor.u32 %v1355, %v1356
    %v1358 = vsub.s32 4294967266, %v1353
    %v1359 = vadd.s32 %v1358, 127
    %v1360 = vshll.u32 %v1359, 23
    %v1361 = vor.u32 4788187, %v1360
    %v1362 = vand.u32 2147483647, %v1361
    %v1364 = vcvt.s32.f32 %v1357
    %v1365 = vmul.f32 %v1364, %v1362
    %v1366 = vxor.u32 %v1365, 2147483648
    %v1367 = vsel %vm1246, %v1366, %v1365
    %v1368 = vsub.s32 4, %v1344
    %v1369 = vsel %vm1246, %v1368, %v1344
    %v1370 = vsel %vm1245, %v715, %v1367
    %v1371 = vsel %vm1245, 0, %v1369
    %v1372 = vmul.f32 %v1370, %v1370
    %v1373 = vmul.f32 %v1372, -0.001358992
    %v1374 = vadd.f32 %v1373, 0.041655596
    %v1375 = vmul.f32 %v1372, %v1374
    %v1376 = vadd.f32 %v1375, -0.4999988
    %v1377 = vmul.f32 %v1372, %v1376
    %v1378 = vadd.f32 1.0, %v1377
    %v1379 = vmul.f32 %v1370, %v1370
    %v1380 = vmul.f32 %v1379, -0.00019511016
    %v1381 = vadd.f32 %v1380, 0.008332121
    %v1382 = vmul.f32 %v1379, %v1381
    %v1383 = vadd.f32 %v1382, -0.16666654
    %v1384 = vmul.f32 %v1379, %v1383
    %v1385 = vadd.f32 %v1384, 1.0
    %v1386 = vmul.f32 %v1385, %v1370
    %vm1387 = vweird.f32 %v715
    %v1388 = vand.u32 %v1371, 3
    %vm1389 = vcmp.lt.s32.totalorder %v1388, 2
    %vm1390 = vcmp.eq.s32.totalorder %v1388, 0
    %v1391 = vxor.u32 %v1386, 2147483648
    %v1392 = vsel %vm1390, %v1378, %v1391
    %vm1393 = vcmp.eq.s32.totalorder %v1388, 2
    %v1394 = vxor.u32 %v1378, 2147483648
    %v1395 = vsel %vm1393, %v1394, %v1386
    %v1396 = vsel %vm1389, %v1392, %v1395
    %v1397 = vsel %vm1387, nan, %v1396
    %v1399 = vsel %vm1030, %v1243, 0
    %v1402 = vsel %vm1030, %v1397, 0
    %1404 = vmatpush.msra.mxu0 0.0
    %1405 = vmatpush.msra.mxu0 0.0
    %1406 = vmatpush.msra.mxu0 0.0
    %1407 = vmatpush.msra.mxu0 0.0
    %1408 = vmatpush.msra.mxu0 0.0
    %1409 = vmatpush.msra.mxu0 0.0
    %1410 = vmatpush.msra.mxu0 0.0
    %1411 = vmatpush.msra.mxu0 0.0
    %1412 = vmatpush.msra.mxu0 0.0
    %1413 = vmatpush.msra.mxu0 0.0
    %1414 = vmatpush.msra.mxu0 0.0
    %1415 = vmatpush.msra.mxu0 0.0
    %1416 = vmatpush.msra.mxu0 0.0
    %1417 = vmatpush.msra.mxu0 0.0
    %1418 = vmatpush.msra.mxu0 0.0
    %1419 = vmatpush.msra.mxu0 %v719
    %1420 = vmatmul.f32.gmra.mxu0 %v1399
    %v1421 = vpop.f32.mrf.mxu0
    %v1422 = vadd.f32 0.0, %v1421
    %1423 = vmatmul.f32.gmra.mxu0 %v1402
    %v1424 = vpop.f32.mrf.mxu0
    %v1425 = vadd.f32 0.0, %v1424
    %1426 = vdwg.mxu0
    %v1427 = vadd.f32 %v1085, %v1422
    %v1428 = vadd.f32 %v1088, %v1425
    %v1429 = vld [vmem:[#allocation2 + $0x350] sm:$0x1]
    %v1430 = vperm.slane %v1429, 0
    %v1431 = vadd.f32 %v1427, %v1430
    %v1432 = vadd.f32 %v1428, %v1430
    %v1433 = vxor.u32 %v1431, 2147483648
    %v1434 = vxor.u32 %v1432, 2147483648
    %v1435 = vmul.f32 %v1433, 1.442695
    %v1436 = vpow.pop %v1435
    %v1437 = vmul.f32 %v1434, 1.442695
    %v1438 = vpow.pop %v1437
    %v1439 = vadd.f32 %v1436, 1.0
    %v1440 = vadd.f32 %v1438, 1.0
    %v1441 = vrcp.pop %v1439
    %v1442 = vmul.f32 %v1439, %v1441
    %v1443 = vsub.f32 1.0, %v1442
    %v1444 = vmul.f32 %v1441, %v1443
    %v1445 = vadd.f32 %v1441, %v1444
    %vm1446 = vweird.f32 %v1439
    %vm1447 = vweird.f32 %v1441
    %vm1448 = vmor %vm1446, %vm1447
    %v1449 = vsel %vm1448, %v1441, %v1445
    %v1450 = vand.u32 2147483647, %v1439
    %vm1451 = vcmp.eq.f32.partialorder %v1450, 8.507059e+37
    %v1452 = vand.u32 %v1439, 2147483648
    %v1453 = vor.u32 1.1754944e-38, %v1452
    %v1454 = vsel %vm1451, %v1453, %v1449
    %v1455 = vmul.f32 1.0, %v1454
    %v1456 = vrcp.pop %v1440
    %v1457 = vmul.f32 %v1440, %v1456
    %v1458 = vsub.f32 1.0, %v1457
    %v1459 = vmul.f32 %v1456, %v1458
    %v1460 = vadd.f32 %v1456, %v1459
    %vm1461 = vweird.f32 %v1440
    %vm1462 = vweird.f32 %v1456
    %vm1463 = vmor %vm1461, %vm1462
    %v1464 = vsel %vm1463, %v1456, %v1460
    %v1465 = vand.u32 2147483647, %v1440
    %vm1466 = vcmp.eq.f32.partialorder %v1465, 8.507059e+37
    %v1467 = vand.u32 %v1440, 2147483648
    %v1468 = vor.u32 1.1754944e-38, %v1467
    %v1469 = vsel %vm1466, %v1468, %v1464
    %v1470 = vmul.f32 1.0, %v1469
    %v1471 = vmul.f32 %v1431, %v1455
    %v1472 = vmul.f32 %v1432, %v1470
    %v1473 = vld [vmem:[#allocation2 + $0x358] sm:$0xff]
    %v1474 = vld [vmem:[#allocation2 + $0x360] sm:$0xff]
    %v1475 = vld [vmem:[#allocation2 + $0x368] sm:$0x1]
    %v1476 = vperm.slane %v1475, 0
    %v1478 = vsel %vm1060, %v1471, 0
    %v1481 = vsel %vm1060, %v1472, 0
    %1483 = vmatpush.msra.mxu0 0.0
    %1484 = vmatpush.msra.mxu0 0.0
    %1485 = vmatpush.msra.mxu0 0.0
    %1486 = vmatpush.msra.mxu0 0.0
    %1487 = vmatpush.msra.mxu0 0.0
    %1488 = vmatpush.msra.mxu0 0.0
    %1489 = vmatpush.msra.mxu0 0.0
    %1490 = vmatpush.msra.mxu0 0.0
    %1491 = vmatpush.msra.mxu0 0.0
    %1492 = vmatpush.msra.mxu0 0.0
    %1493 = vmatpush.msra.mxu0 0.0
    %1494 = vmatpush.msra.mxu0 0.0
    %1495 = vmatpush.msra.mxu0 0.0
    %1496 = vmatpush.msra.mxu0 0.0
    %1497 = vmatpush.msra.mxu0 %v1474
    %1498 = vmatpush.msra.mxu0 %v1473
    %1499 = vmatmul.f32.gmra.mxu0 %v1478
    %v1500 = vpop.f32.mrf.mxu0
    %v1501 = vadd.f32 %v1476, %v1500
    %1502 = vmatmul.f32.gmra.mxu0 %v1481
    %v1503 = vpop.f32.mrf.mxu0
    %v1504 = vadd.f32 %v1476, %v1503
    %1505 = vdwg.mxu0
    %v1506 = vld [vmem:[#allocation2 + $0x388] sm:$0xff]
    %v1507 = vld [vmem:[#allocation2 + $0x390] sm:$0xff]
    %v1508 = vld [vmem:[#allocation2 + $0x398] sm:$0xff]
    %v1509 = vld [vmem:[#allocation2 + $0x3a0] sm:$0xff]
    %v1510 = vld [vmem:[#allocation2 + $0x3a8] sm:$0x1]
    %v1511 = vperm.slane %v1510, 0
    %vm1512 = vcmask 261120
    %v1514 = vsel %vm1512, %v625, 0
    %v1517 = vsel %vm1512, %v626, 0
    %v1520 = vsel %vm1512, %v627, 0
    %v1523 = vsel %vm1512, %v628, 0
    %1525 = vmatpush.msra.mxu0 0.0
    %1526 = vmatpush.msra.mxu0 0.0
    %1527 = vmatpush.msra.mxu0 0.0
    %1528 = vmatpush.msra.mxu0 0.0
    %1529 = vmatpush.msra.mxu0 0.0
    %1530 = vmatpush.msra.mxu0 0.0
    %1531 = vmatpush.msra.mxu0 0.0
    %1532 = vmatpush.msra.mxu0 0.0
    %1533 = vmatpush.msra.mxu0 0.0
    %1534 = vmatpush.msra.mxu0 0.0
    %1535 = vmatpush.msra.mxu0 0.0
    %1536 = vmatpush.msra.mxu0 0.0
    %1537 = vmatpush.msra.mxu0 %v1509
    %1538 = vmatpush.msra.mxu0 %v1508
    %1539 = vmatpush.msra.mxu0 %v1507
    %1540 = vmatpush.msra.mxu0 %v1506
    %1541 = vmatmul.f32.gmra.mxu0 %v1514
    %v1542 = vpop.f32.mrf.mxu0
    %v1543 = vadd.f32 %v1511, %v1542
    %1544 = vmatmul.f32.gmra.mxu0 %v1517
    %v1545 = vpop.f32.mrf.mxu0
    %v1546 = vadd.f32 %v1511, %v1545
    %1547 = vmatmul.f32.gmra.mxu0 %v1520
    %v1548 = vpop.f32.mrf.mxu0
    %v1549 = vadd.f32 %v1511, %v1548
    %1550 = vmatmul.f32.gmra.mxu0 %v1523
    %v1551 = vpop.f32.mrf.mxu0
    %v1552 = vadd.f32 %v1511, %v1551
    %1553 = vdwg.mxu0
    %v1554 = vld [vmem:[#allocation2 + $0x3b0] sm:$0xff]
    %v1555 = vld [vmem:[#allocation2 + $0x3b8] sm:$0xff]
    %v1556 = vld [vmem:[#allocation2 + $0x3c0] sm:$0x1]
    %v1557 = vperm.slane %v1556, 0
    %v1559 = vsel %vm1060, %v1501, 0
    %v1562 = vsel %vm1060, %v1504, 0
    %1564 = vmatpush.msra.mxu0 0.0
    %1565 = vmatpush.msra.mxu0 0.0
    %1566 = vmatpush.msra.mxu0 0.0
    %1567 = vmatpush.msra.mxu0 0.0
    %1568 = vmatpush.msra.mxu0 0.0
    %1569 = vmatpush.msra.mxu0 0.0
    %1570 = vmatpush.msra.mxu0 0.0
    %1571 = vmatpush.msra.mxu0 0.0
    %1572 = vmatpush.msra.mxu0 0.0
    %1573 = vmatpush.msra.mxu0 0.0
    %1574 = vmatpush.msra.mxu0 0.0
    %1575 = vmatpush.msra.mxu0 0.0
    %1576 = vmatpush.msra.mxu0 0.0
    %1577 = vmatpush.msra.mxu0 0.0
    %1578 = vmatpush.msra.mxu0 %v1555
    %1579 = vmatpush.msra.mxu0 %v1554
    %1580 = vmatmul.f32.gmra.mxu0 %v1559
    %v1581 = vpop.f32.mrf.mxu0
    %v1582 = vadd.f32 %v1557, %v1581
    %1583 = vmatmul.f32.gmra.mxu0 %v1562
    %v1584 = vpop.f32.mrf.mxu0
    %v1585 = vadd.f32 %v1557, %v1584
    %1586 = vdwg.mxu0
    %1593 = vrot.lane.b32.xlu0 %v1543, 96
    %v1594 = vpop.permute.xlu0 %1593
    %1595 = vrot.lane.b32.xlu0 %v1546, 96
    %v1596 = vpop.permute.xlu0 %1595
    %1597 = vrot.lane.b32.xlu0 %v1549, 96
    %v1598 = vpop.permute.xlu0 %1597
    %1599 = vrot.lane.b32.xlu0 %v1552, 96
    %v1600 = vpop.permute.xlu0 %1599
    %1601 = vrot.lane.b32.xlu0 %v1582, 96
    %v1602 = vpop.permute.xlu0 %1601
    %1603 = vrot.lane.b32.xlu0 %v1585, 96
    %v1604 = vpop.permute.xlu0 %1603
    %v1605 = vsel %vm1512, %v1543, 0
    %v1607 = vsel %vm1512, %v1546, 0
    %v1609 = vsel %vm1512, %v1549, 0
    %v1611 = vsel %vm1512, %v1552, 0
    %v1613 = vsel %vm1512, %v1582, 0
    %v1615 = vsel %vm1512, %v1585, 0
    %v1617 = vsel %vm1512, %v1594, 0
    %v1619 = vsel %vm1512, %v1596, 0
    %v1621 = vsel %vm1512, %v1598, 0
    %v1623 = vsel %vm1512, %v1600, 0
    %v1625 = vsel %vm1512, %v1602, 0
    %v1627 = vsel %vm1512, %v1604, 0
    %1629 = vmatpush.xpose.msra.mxu0 0.0
    %1630 = vmatpush.xpose.msra.mxu0 0.0
    %1631 = vmatpush.xpose.msra.mxu0 0.0
    %1632 = vmatpush.xpose.msra.mxu0 0.0
    %1633 = vmatpush.xpose.msra.mxu0 0.0
    %1634 = vmatpush.xpose.msra.mxu0 0.0
    %1635 = vmatpush.xpose.msra.mxu0 0.0
    %1636 = vmatpush.xpose.msra.mxu0 0.0
    %1637 = vmatpush.xpose.msra.mxu0 0.0
    %1638 = vmatpush.xpose.msra.mxu0 0.0
    %1639 = vmatpush.xpose.msra.mxu0 %v1627
    %1640 = vmatpush.xpose.msra.mxu0 %v1625
    %1641 = vmatpush.xpose.msra.mxu0 %v1623
    %1642 = vmatpush.xpose.msra.mxu0 %v1621
    %1643 = vmatpush.xpose.msra.mxu0 %v1619
    %1644 = vmatpush.xpose.msra.mxu0 %v1617
    %1645 = vmatmul.f32.gmra.mxu0 %v1605
    %v1646 = vpop.f32.mrf.mxu0
    %v1647 = vadd.f32 0.0, %v1646
    %1648 = vmatmul.f32.gmra.mxu0 %v1607
    %v1649 = vpop.f32.mrf.mxu0
    %v1650 = vadd.f32 0.0, %v1649
    %1651 = vmatmul.f32.gmra.mxu0 %v1609
    %v1652 = vpop.f32.mrf.mxu0
    %v1653 = vadd.f32 0.0, %v1652
    %1654 = vmatmul.f32.gmra.mxu0 %v1611
    %v1655 = vpop.f32.mrf.mxu0
    %v1656 = vadd.f32 0.0, %v1655
    %1657 = vmatmul.f32.gmra.mxu0 %v1613
    %v1658 = vpop.f32.mrf.mxu0
    %v1659 = vadd.f32 0.0, %v1658
    %1660 = vmatmul.f32.gmra.mxu0 %v1615
    %v1661 = vpop.f32.mrf.mxu0
    %v1662 = vadd.f32 0.0, %v1661
    %1663 = vdwg.mxu0
    %v1664 = vmul.f32 %v1647, 0.17677669
    %v1665 = vmul.f32 %v1650, 0.17677669
    %v1666 = vmul.f32 %v1653, 0.17677669
    %v1667 = vmul.f32 %v1656, 0.17677669
    %v1668 = vmul.f32 %v1659, 0.17677669
    %v1669 = vmul.f32 %v1662, 0.17677669
    %v1670 = vadd.f32 %v1664, %v30
    %v1671 = vadd.f32 %v1665, %v31
    %v1672 = vadd.f32 %v1666, %v32
    %v1673 = vadd.f32 %v1667, %v33
    %v1674 = vadd.f32 %v1668, %v34
    %v1675 = vadd.f32 %v1669, %v35
    %vm1676 = vcmask 392192
    %v1677 = vsel %vm1676, %v1670, -inf
    %1678 = vmax.xlane.f32.xlu0 %v1677
    %v1679 = vpop.xlane.xlu0 %1678
    %v1680 = vsel %vm1676, %v1671, -inf
    %1681 = vmax.xlane.f32.xlu0 %v1680
    %v1682 = vpop.xlane.xlu0 %1681
    %v1683 = vsel %vm1676, %v1672, -inf
    %1684 = vmax.xlane.f32.xlu0 %v1683
    %v1685 = vpop.xlane.xlu0 %1684
    %v1686 = vsel %vm1676, %v1673, -inf
    %1687 = vmax.xlane.f32.xlu0 %v1686
    %v1688 = vpop.xlane.xlu0 %1687
    %v1689 = vsel %vm1676, %v1674, -inf
    %1690 = vmax.xlane.f32.xlu0 %v1689
    %v1691 = vpop.xlane.xlu0 %1690
    %v1692 = vsel %vm1676, %v1675, -inf
    %1693 = vmax.xlane.f32.xlu0 %v1692
    %v1694 = vpop.xlane.xlu0 %1693
    %v1695 = vsub.f32 %v1670, %v1679
    %v1696 = vsub.f32 %v1671, %v1682
    %v1697 = vsub.f32 %v1672, %v1685
    %v1698 = vsub.f32 %v1673, %v1688
    %v1699 = vsub.f32 %v1674, %v1691
    %v1700 = vsub.f32 %v1675, %v1694
    %v1701 = vmul.f32 %v1695, 1.442695
    %v1702 = vpow.pop %v1701
    %v1703 = vmul.f32 %v1696, 1.442695
    %v1704 = vpow.pop %v1703
    %v1705 = vmul.f32 %v1697, 1.442695
    %v1706 = vpow.pop %v1705
    %v1707 = vmul.f32 %v1698, 1.442695
    %v1708 = vpow.pop %v1707
    %v1709 = vmul.f32 %v1699, 1.442695
    %v1710 = vpow.pop %v1709
    %v1711 = vmul.f32 %v1700, 1.442695
    %v1712 = vpow.pop %v1711
    %v1713 = vsel %vm1676, %v1702, 0.0
    %1714 = vadd.xlane.f32.xlu0 %v1713
    %v1715 = vpop.xlane.xlu0 %1714
    %v1716 = vsel %vm1676, %v1704, 0.0
    %1717 = vadd.xlane.f32.xlu0 %v1716
    %v1718 = vpop.xlane.xlu0 %1717
    %v1719 = vsel %vm1676, %v1706, 0.0
    %1720 = vadd.xlane.f32.xlu0 %v1719
    %v1721 = vpop.xlane.xlu0 %1720
    %v1722 = vsel %vm1676, %v1708, 0.0
    %1723 = vadd.xlane.f32.xlu0 %v1722
    %v1724 = vpop.xlane.xlu0 %1723
    %v1725 = vsel %vm1676, %v1710, 0.0
    %1726 = vadd.xlane.f32.xlu0 %v1725
    %v1727 = vpop.xlane.xlu0 %1726
    %v1728 = vsel %vm1676, %v1712, 0.0
    %1729 = vadd.xlane.f32.xlu0 %v1728
    %v1730 = vpop.xlane.xlu0 %1729
    %1731 = vrot.lane.b32.xlu0 %v1543, 64
    %v1732 = vpop.permute.xlu0 %1731
    %1733 = vrot.lane.b32.xlu0 %v1546, 64
    %v1734 = vpop.permute.xlu0 %1733
    %1735 = vrot.lane.b32.xlu0 %v1549, 64
    %v1736 = vpop.permute.xlu0 %1735
    %1737 = vrot.lane.b32.xlu0 %v1552, 64
    %v1738 = vpop.permute.xlu0 %1737
    %1739 = vrot.lane.b32.xlu0 %v1582, 64
    %v1740 = vpop.permute.xlu0 %1739
    %1741 = vrot.lane.b32.xlu0 %v1585, 64
    %v1742 = vpop.permute.xlu0 %1741
    %v1750 = vsel %vm1676, %v1702, 0
    %v1753 = vsel %vm1676, %v1704, 0
    %v1756 = vsel %vm1676, %v1706, 0
    %v1759 = vsel %vm1676, %v1708, 0
    %v1762 = vsel %vm1676, %v1710, 0
    %v1765 = vsel %vm1676, %v1712, 0
    %1767 = vmatpush.msra.mxu0 0.0
    %1768 = vmatpush.msra.mxu0 0.0
    %1769 = vmatpush.msra.mxu0 0.0
    %1770 = vmatpush.msra.mxu0 0.0
    %1771 = vmatpush.msra.mxu0 0.0
    %1772 = vmatpush.msra.mxu0 0.0
    %1773 = vmatpush.msra.mxu0 0.0
    %1774 = vmatpush.msra.mxu0 0.0
    %1775 = vmatpush.msra.mxu0 0.0
    %1776 = vmatpush.msra.mxu0 0.0
    %1777 = vmatpush.msra.mxu0 %v1742
    %1778 = vmatpush.msra.mxu0 %v1740
    %1779 = vmatpush.msra.mxu0 %v1738
    %1780 = vmatpush.msra.mxu0 %v1736
    %1781 = vmatpush.msra.mxu0 %v1734
    %1782 = vmatpush.msra.mxu0 %v1732
    %1783 = vmatmul.f32.gmra.mxu0 %v1750
    %v1784 = vpop.f32.mrf.mxu0
    %v1785 = vadd.f32 0.0, %v1784
    %1786 = vmatmul.f32.gmra.mxu0 %v1753
    %v1787 = vpop.f32.mrf.mxu0
    %v1788 = vadd.f32 0.0, %v1787
    %1789 = vmatmul.f32.gmra.mxu0 %v1756
    %v1790 = vpop.f32.mrf.mxu0
    %v1791 = vadd.f32 0.0, %v1790
    %1792 = vmatmul.f32.gmra.mxu0 %v1759
    %v1793 = vpop.f32.mrf.mxu0
    %v1794 = vadd.f32 0.0, %v1793
    %1795 = vmatmul.f32.gmra.mxu0 %v1762
    %v1796 = vpop.f32.mrf.mxu0
    %v1797 = vadd.f32 0.0, %v1796
    %1798 = vmatmul.f32.gmra.mxu0 %v1765
    %v1799 = vpop.f32.mrf.mxu0
    %v1800 = vadd.f32 0.0, %v1799
    %1801 = vdwg.mxu0
    %v1802 = vrcp.pop %v1715
    %v1803 = vrcp.pop %v1718
    %v1804 = vrcp.pop %v1721
    %v1805 = vrcp.pop %v1724
    %v1806 = vrcp.pop %v1727
    %v1807 = vrcp.pop %v1730
    %v1808 = vmul.f32 %v1785, %v1802
    %v1809 = vmul.f32 %v1788, %v1803
    %v1810 = vmul.f32 %v1791, %v1804
    %v1811 = vmul.f32 %v1794, %v1805
    %v1812 = vmul.f32 %v1797, %v1806
    %v1813 = vmul.f32 %v1800, %v1807
    %v1814 = vld [vmem:[#allocation2 + $0x3c8] sm:$0xff]
    %v1815 = vld [vmem:[#allocation2 + $0x3d0] sm:$0xff]
    %v1816 = vld [vmem:[#allocation2 + $0x3d8] sm:$0xff]
    %v1817 = vld [vmem:[#allocation2 + $0x3e0] sm:$0xff]
    %v1818 = vld [vmem:[#allocation2 + $0x3e8] sm:$0x1]
    %v1819 = vperm.slane %v1818, 0
    %v1821 = vsel %vm1512, %v1808, 0
    %v1824 = vsel %vm1512, %v1809, 0
    %v1827 = vsel %vm1512, %v1810, 0
    %v1830 = vsel %vm1512, %v1811, 0
    %v1833 = vsel %vm1512, %v1812, 0
    %v1836 = vsel %vm1512, %v1813, 0
    %1838 = vmatpush.msra.mxu0 0.0
    %1839 = vmatpush.msra.mxu0 0.0
    %1840 = vmatpush.msra.mxu0 0.0
    %1841 = vmatpush.msra.mxu0 0.0
    %1842 = vmatpush.msra.mxu0 0.0
    %1843 = vmatpush.msra.mxu0 0.0
    %1844 = vmatpush.msra.mxu0 0.0
    %1845 = vmatpush.msra.mxu0 0.0
    %1846 = vmatpush.msra.mxu0 0.0
    %1847 = vmatpush.msra.mxu0 0.0
    %1848 = vmatpush.msra.mxu0 0.0
    %1849 = vmatpush.msra.mxu0 0.0
    %1850 = vmatpush.msra.mxu0 %v1817
    %1851 = vmatpush.msra.mxu0 %v1816
    %1852 = vmatpush.msra.mxu0 %v1815
    %1853 = vmatpush.msra.mxu0 %v1814
    %1854 = vmatmul.f32.gmra.mxu0 %v1821
    %v1855 = vpop.f32.mrf.mxu0
    %v1856 = vadd.f32 %v1819, %v1855
    %1857 = vmatmul.f32.gmra.mxu0 %v1824
    %v1858 = vpop.f32.mrf.mxu0
    %v1859 = vadd.f32 %v1819, %v1858
    %1860 = vmatmul.f32.gmra.mxu0 %v1827
    %v1861 = vpop.f32.mrf.mxu0
    %v1862 = vadd.f32 %v1819, %v1861
    %1863 = vmatmul.f32.gmra.mxu0 %v1830
    %v1864 = vpop.f32.mrf.mxu0
    %v1865 = vadd.f32 %v1819, %v1864
    %1866 = vmatmul.f32.gmra.mxu0 %v1833
    %v1867 = vpop.f32.mrf.mxu0
    %v1868 = vadd.f32 %v1819, %v1867
    %1869 = vmatmul.f32.gmra.mxu0 %v1836
    %v1870 = vpop.f32.mrf.mxu0
    %v1871 = vadd.f32 %v1819, %v1870
    %1872 = vdwg.mxu0
    %v1873 = vadd.f32 %v625, %v1856
    %v1874 = vadd.f32 %v626, %v1859
    %v1875 = vadd.f32 %v627, %v1862
    %v1876 = vadd.f32 %v628, %v1865
    %1879 = vrot.lane.b32.xlu0 %v1868, 96
    %v1880 = vpop.permute.xlu0 %1879
    %1881 = vrot.lane.b32.xlu0 %v1871, 96
    %v1882 = vpop.permute.xlu0 %1881
    %v1885 = vadd.f32 %v1501, %v1880
    %v1886 = vadd.f32 %v1504, %v1882
    %v1887 = vld [vmem:[#allocation2 + $0x3f0] sm:$0xff]
    %v1888 = vld [vmem:[#allocation2 + $0x3f8] sm:$0xff]
    %v1889 = vld [vmem:[#allocation2 + $0x400] sm:$0xff]
    %v1890 = vld [vmem:[#allocation2 + $0x408] sm:$0xff]
    %v1891 = vld [vmem:[#allocation2 + $0x410] sm:$0x1]
    %v1892 = vperm.slane %v1891, 0
    %v1894 = vsel %vm1512, %v1873, 0
    %v1897 = vsel %vm1512, %v1874, 0
    %v1900 = vsel %vm1512, %v1875, 0
    %v1903 = vsel %vm1512, %v1876, 0
    %1905 = vmatpush.msra.mxu0 0.0
    %1906 = vmatpush.msra.mxu0 0.0
    %1907 = vmatpush.msra.mxu0 0.0
    %1908 = vmatpush.msra.mxu0 0.0
    %1909 = vmatpush.msra.mxu0 0.0
    %1910 = vmatpush.msra.mxu0 0.0
    %1911 = vmatpush.msra.mxu0 0.0
    %1912 = vmatpush.msra.mxu0 0.0
    %1913 = vmatpush.msra.mxu0 0.0
    %1914 = vmatpush.msra.mxu0 0.0
    %1915 = vmatpush.msra.mxu0 0.0
    %1916 = vmatpush.msra.mxu0 0.0
    %1917 = vmatpush.msra.mxu0 %v1890
    %1918 = vmatpush.msra.mxu0 %v1889
    %1919 = vmatpush.msra.mxu0 %v1888
    %1920 = vmatpush.msra.mxu0 %v1887
    %1921 = vmatmul.f32.gmra.mxu0 %v1894
    %v1922 = vpop.f32.mrf.mxu0
    %v1923 = vadd.f32 %v1892, %v1922
    %1924 = vmatmul.f32.gmra.mxu0 %v1897
    %v1925 = vpop.f32.mrf.mxu0
    %v1926 = vadd.f32 %v1892, %v1925
    %1927 = vmatmul.f32.gmra.mxu0 %v1900
    %v1928 = vpop.f32.mrf.mxu0
    %v1929 = vadd.f32 %v1892, %v1928
    %1930 = vmatmul.f32.gmra.mxu0 %v1903
    %v1931 = vpop.f32.mrf.mxu0
    %v1932 = vadd.f32 %v1892, %v1931
    %1933 = vdwg.mxu0
    %v1934 = vxor.u32 %v1923, 2147483648
    %v1935 = vxor.u32 %v1926, 2147483648
    %v1936 = vxor.u32 %v1929, 2147483648
    %v1937 = vxor.u32 %v1932, 2147483648
    %v1938 = vmul.f32 %v1934, 1.442695
    %v1939 = vpow.pop %v1938
    %v1940 = vmul.f32 %v1935, 1.442695
    %v1941 = vpow.pop %v1940
    %v1942 = vmul.f32 %v1936, 1.442695
    %v1943 = vpow.pop %v1942
    %v1944 = vmul.f32 %v1937, 1.442695
    %v1945 = vpow.pop %v1944
    %v1946 = vadd.f32 %v1939, 1.0
    %v1947 = vadd.f32 %v1941, 1.0
    %v1948 = vadd.f32 %v1943, 1.0
    %v1949 = vadd.f32 %v1945, 1.0
    %v1950 = vrcp.pop %v1946
    %v1951 = vmul.f32 %v1946, %v1950
    %v1952 = vsub.f32 1.0, %v1951
    %v1953 = vmul.f32 %v1950, %v1952
    %v1954 = vadd.f32 %v1950, %v1953
    %vm1955 = vweird.f32 %v1946
    %vm1956 = vweird.f32 %v1950
    %vm1957 = vmor %vm1955, %vm1956
    %v1958 = vsel %vm1957, %v1950, %v1954
    %v1959 = vand.u32 2147483647, %v1946
    %vm1960 = vcmp.eq.f32.partialorder %v1959, 8.507059e+37
    %v1961 = vand.u32 %v1946, 2147483648
    %v1962 = vor.u32 1.1754944e-38, %v1961
    %v1963 = vsel %vm1960, %v1962, %v1958
    %v1964 = vmul.f32 1.0, %v1963
    %v1965 = vrcp.pop %v1947
    %v1966 = vmul.f32 %v1947, %v1965
    %v1967 = vsub.f32 1.0, %v1966
    %v1968 = vmul.f32 %v1965, %v1967
    %v1969 = vadd.f32 %v1965, %v1968
    %vm1970 = vweird.f32 %v1947
    %vm1971 = vweird.f32 %v1965
    %vm1972 = vmor %vm1970, %vm1971
    %v1973 = vsel %vm1972, %v1965, %v1969
    %v1974 = vand.u32 2147483647, %v1947
    %vm1975 = vcmp.eq.f32.partialorder %v1974, 8.507059e+37
    %v1976 = vand.u32 %v1947, 2147483648
    %v1977 = vor.u32 1.1754944e-38, %v1976
    %v1978 = vsel %vm1975, %v1977, %v1973
    %v1979 = vmul.f32 1.0, %v1978
    %v1980 = vrcp.pop %v1948
    %v1981 = vmul.f32 %v1948, %v1980
    %v1982 = vsub.f32 1.0, %v1981
    %v1983 = vmul.f32 %v1980, %v1982
    %v1984 = vadd.f32 %v1980, %v1983
    %vm1985 = vweird.f32 %v1948
    %vm1986 = vweird.f32 %v1980
    %vm1987 = vmor %vm1985, %vm1986
    %v1988 = vsel %vm1987, %v1980, %v1984
    %v1989 = vand.u32 2147483647, %v1948
    %vm1990 = vcmp.eq.f32.partialorder %v1989, 8.507059e+37
    %v1991 = vand.u32 %v1948, 2147483648
    %v1992 = vor.u32 1.1754944e-38, %v1991
    %v1993 = vsel %vm1990, %v1992, %v1988
    %v1994 = vmul.f32 1.0, %v1993
    %v1995 = vrcp.pop %v1949
    %v1996 = vmul.f32 %v1949, %v1995
    %v1997 = vsub.f32 1.0, %v1996
    %v1998 = vmul.f32 %v1995, %v1997
    %v1999 = vadd.f32 %v1995, %v1998
    %vm2000 = vweird.f32 %v1949
    %vm2001 = vweird.f32 %v1995
    %vm2002 = vmor %vm2000, %vm2001
    %v2003 = vsel %vm2002, %v1995, %v1999
    %v2004 = vand.u32 2147483647, %v1949
    %vm2005 = vcmp.eq.f32.partialorder %v2004, 8.507059e+37
    %v2006 = vand.u32 %v1949, 2147483648
    %v2007 = vor.u32 1.1754944e-38, %v2006
    %v2008 = vsel %vm2005, %v2007, %v2003
    %v2009 = vmul.f32 1.0, %v2008
    %v2010 = vmul.f32 %v1923, %v1964
    %v2011 = vmul.f32 %v1926, %v1979
    %v2012 = vmul.f32 %v1929, %v1994
    %v2013 = vmul.f32 %v1932, %v2009
    %v2014 = vld [vmem:[#allocation2 + $0x418] sm:$0xff]
    %v2015 = vld [vmem:[#allocation2 + $0x420] sm:$0xff]
    %v2016 = vld [vmem:[#allocation2 + $0x428] sm:$0xff]
    %v2017 = vld [vmem:[#allocation2 + $0x430] sm:$0xff]
    %v2018 = vld [vmem:[#allocation2 + $0x438] sm:$0xff]
    %v2019 = vld [vmem:[#allocation2 + $0x440] sm:$0xff]
    %v2020 = vld [vmem:[#allocation2 + $0x448] sm:$0xff]
    %v2021 = vld [vmem:[#allocation2 + $0x450] sm:$0xff]
    %v2022 = vld [vmem:[#allocation2 + $0x458] sm:$0xff]
    %v2023 = vld [vmem:[#allocation2 + $0x460] sm:$0xff]
    %v2024 = vld [vmem:[#allocation2 + $0x468] sm:$0xff]
    %v2025 = vld [vmem:[#allocation2 + $0x470] sm:$0xff]
    %v2026 = vld [vmem:[#allocation2 + $0x478] sm:$0xff]
    %v2027 = vld [vmem:[#allocation2 + $0x480] sm:$0xff]
    %v2028 = vld [vmem:[#allocation2 + $0x488] sm:$0xff]
    %v2029 = vld [vmem:[#allocation2 + $0x490] sm:$0xff]
    %2030 = vmatpush.msra.mxu0 %v2029
    %2031 = vmatpush.msra.mxu0 %v2028
    %2032 = vmatpush.msra.mxu0 %v2027
    %2033 = vmatpush.msra.mxu0 %v2026
    %2034 = vmatpush.msra.mxu0 %v2025
    %2035 = vmatpush.msra.mxu0 %v2024
    %2036 = vmatpush.msra.mxu0 %v2023
    %2037 = vmatpush.msra.mxu0 %v2022
    %2038 = vmatpush.msra.mxu0 %v2021
    %2039 = vmatpush.msra.mxu0 %v2020
    %2040 = vmatpush.msra.mxu0 %v2019
    %2041 = vmatpush.msra.mxu0 %v2018
    %2042 = vmatpush.msra.mxu0 %v2017
    %2043 = vmatpush.msra.mxu0 %v2016
    %2044 = vmatpush.msra.mxu0 %v2015
    %2045 = vmatpush.msra.mxu0 %v2014
    %2046 = vmatmul.f32.gmra.mxu0 %v2010
    %v2047 = vpop.f32.mrf.mxu0
    %v2048 = vadd.f32 0.0, %v2047
    %2049 = vmatmul.f32.gmra.mxu0 %v2011
    %v2050 = vpop.f32.mrf.mxu0
    %v2051 = vadd.f32 0.0, %v2050
    %2052 = vmatmul.f32.gmra.mxu0 %v2012
    %v2053 = vpop.f32.mrf.mxu0
    %v2054 = vadd.f32 0.0, %v2053
    %2055 = vmatmul.f32.gmra.mxu0 %v2013
    %v2056 = vpop.f32.mrf.mxu0
    %v2057 = vadd.f32 0.0, %v2056
    %2058 = vdwg.mxu0
    %v2059 = vadd.f32 %v1873, %v2048
    %v2060 = vadd.f32 %v1874, %v2051
    %v2061 = vadd.f32 %v1875, %v2054
    %v2062 = vadd.f32 %v1876, %v2057
    %v2063 = vld [vmem:[#allocation2 + $0x498] sm:$0x1]
    %v2064 = vperm.slane %v2063, 0
    %v2065 = vadd.f32 %v2059, %v2064
    %v2066 = vadd.f32 %v2060, %v2064
    %v2067 = vadd.f32 %v2061, %v2064
    %v2068 = vadd.f32 %v2062, %v2064
    %v2069 = vld [vmem:[#allocation2 + $0x4a0] sm:$0xff]
    %v2070 = vld [vmem:[#allocation2 + $0x4a8] sm:$0xff]
    %v2071 = vld [vmem:[#allocation2 + $0x4b0] sm:$0x1]
    %v2072 = vperm.slane %v2071, 0
    %v2074 = vsel %vm1060, %v1885, 0
    %v2077 = vsel %vm1060, %v1886, 0
    %2079 = vmatpush.msra.mxu0 0.0
    %2080 = vmatpush.msra.mxu0 0.0
    %2081 = vmatpush.msra.mxu0 0.0
    %2082 = vmatpush.msra.mxu0 0.0
    %2083 = vmatpush.msra.mxu0 0.0
    %2084 = vmatpush.msra.mxu0 0.0
    %2085 = vmatpush.msra.mxu0 0.0
    %2086 = vmatpush.msra.mxu0 0.0
    %2087 = vmatpush.msra.mxu0 0.0
    %2088 = vmatpush.msra.mxu0 0.0
    %2089 = vmatpush.msra.mxu0 0.0
    %2090 = vmatpush.msra.mxu0 0.0
    %2091 = vmatpush.msra.mxu0 0.0
    %2092 = vmatpush.msra.mxu0 0.0
    %2093 = vmatpush.msra.mxu0 %v2070
    %2094 = vmatpush.msra.mxu0 %v2069
    %2095 = vmatmul.f32.gmra.mxu0 %v2074
    %v2096 = vpop.f32.mrf.mxu0
    %v2097 = vadd.f32 %v2072, %v2096
    %2098 = vmatmul.f32.gmra.mxu0 %v2077
    %v2099 = vpop.f32.mrf.mxu0
    %v2100 = vadd.f32 %v2072, %v2099
    %2101 = vdwg.mxu0
    %v2102 = vxor.u32 %v2097, 2147483648
    %v2103 = vxor.u32 %v2100, 2147483648
    %v2104 = vmul.f32 %v2102, 1.442695
    %v2105 = vpow.pop %v2104
    %v2106 = vmul.f32 %v2103, 1.442695
    %v2107 = vpow.pop %v2106
    %v2108 = vadd.f32 %v2105, 1.0
    %v2109 = vadd.f32 %v2107, 1.0
    %v2110 = vrcp.pop %v2108
    %v2111 = vmul.f32 %v2108, %v2110
    %v2112 = vsub.f32 1.0, %v2111
    %v2113 = vmul.f32 %v2110, %v2112
    %v2114 = vadd.f32 %v2110, %v2113
    %vm2115 = vweird.f32 %v2108
    %vm2116 = vweird.f32 %v2110
    %vm2117 = vmor %vm2115, %vm2116
    %v2118 = vsel %vm2117, %v2110, %v2114
    %v2119 = vand.u32 2147483647, %v2108
    %vm2120 = vcmp.eq.f32.partialorder %v2119, 8.507059e+37
    %v2121 = vand.u32 %v2108, 2147483648
    %v2122 = vor.u32 1.1754944e-38, %v2121
    %v2123 = vsel %vm2120, %v2122, %v2118
    %v2124 = vmul.f32 1.0, %v2123
    %v2125 = vrcp.pop %v2109
    %v2126 = vmul.f32 %v2109, %v2125
    %v2127 = vsub.f32 1.0, %v2126
    %v2128 = vmul.f32 %v2125, %v2127
    %v2129 = vadd.f32 %v2125, %v2128
    %vm2130 = vweird.f32 %v2109
    %vm2131 = vweird.f32 %v2125
    %vm2132 = vmor %vm2130, %vm2131
    %v2133 = vsel %vm2132, %v2125, %v2129
    %v2134 = vand.u32 2147483647, %v2109
    %vm2135 = vcmp.eq.f32.partialorder %v2134, 8.507059e+37
    %v2136 = vand.u32 %v2109, 2147483648
    %v2137 = vor.u32 1.1754944e-38, %v2136
    %v2138 = vsel %vm2135, %v2137, %v2133
    %v2139 = vmul.f32 1.0, %v2138
    %v2140 = vmul.f32 %v2097, %v2124
    %v2141 = vmul.f32 %v2100, %v2139
    %v2142 = vld [vmem:[#allocation2 + $0x4b8] sm:$0xff]
    %v2143 = vld [vmem:[#allocation2 + $0x4c0] sm:$0xff]
    %v2144 = vld [vmem:[#allocation2 + $0x4c8] sm:$0xff]
    %v2145 = vld [vmem:[#allocation2 + $0x4d0] sm:$0xff]
    %v2146 = vld [vmem:[#allocation2 + $0x4d8] sm:$0xff]
    %v2147 = vld [vmem:[#allocation2 + $0x4e0] sm:$0xff]
    %v2148 = vld [vmem:[#allocation2 + $0x4e8] sm:$0xff]
    %v2149 = vld [vmem:[#allocation2 + $0x4f0] sm:$0xff]
    %vm2150 = vcmask 523264
    %v2152 = vsel %vm2150, %v2140, 0
    %v2155 = vsel %vm2150, %v2141, 0
    %2157 = vmatpush.msra.mxu0 0.0
    %2158 = vmatpush.msra.mxu0 0.0
    %2159 = vmatpush.msra.mxu0 0.0
    %2160 = vmatpush.msra.mxu0 0.0
    %2161 = vmatpush.msra.mxu0 0.0
    %2162 = vmatpush.msra.mxu0 0.0
    %2163 = vmatpush.msra.mxu0 0.0
    %2164 = vmatpush.msra.mxu0 0.0
    %2165 = vmatpush.msra.mxu0 %v2149
    %2166 = vmatpush.msra.mxu0 %v2148
    %2167 = vmatpush.msra.mxu0 %v2147
    %2168 = vmatpush.msra.mxu0 %v2146
    %2169 = vmatpush.msra.mxu0 %v2145
    %2170 = vmatpush.msra.mxu0 %v2144
    %2171 = vmatpush.msra.mxu0 %v2143
    %2172 = vmatpush.msra.mxu0 %v2142
    %2173 = vmatmul.f32.gmra.mxu0 %v2152
    %v2174 = vpop.f32.mrf.mxu0
    %v2175 = vadd.f32 0.0, %v2174
    %2176 = vmatmul.f32.gmra.mxu0 %v2155
    %v2177 = vpop.f32.mrf.mxu0
    %v2178 = vadd.f32 0.0, %v2177
    %2179 = vdwg.mxu0
    %v2180 = vadd.f32 %v1885, %v2175
    %v2181 = vadd.f32 %v1886, %v2178
    %v2182 = vld [vmem:[#allocation2 + $0x4f8] sm:$0x1]
    %v2183 = vperm.slane %v2182, 0
    %v2184 = vadd.f32 %v2180, %v2183
    %v2185 = vadd.f32 %v2181, %v2183
    %v2186 = vld [vmem:[#allocation2 + $0x500] sm:$0xff]
    %v2187 = vld [vmem:[#allocation2 + $0x508] sm:$0xff]
    %v2188 = vld [vmem:[#allocation2 + $0x510] sm:$0xff]
    %v2189 = vld [vmem:[#allocation2 + $0x518] sm:$0xff]
    %v2190 = vld [vmem:[#allocation2 + $0x520] sm:$0x1]
    %v2191 = vperm.slane %v2190, 0
    %v2193 = vsel %vm1512, %v2065, 0
    %v2196 = vsel %vm1512, %v2066, 0
    %v2199 = vsel %vm1512, %v2067, 0
    %v2202 = vsel %vm1512, %v2068, 0
    %2204 = vmatpush.msra.mxu0 0.0
    %2205 = vmatpush.msra.mxu0 0.0
    %2206 = vmatpush.msra.mxu0 0.0
    %2207 = vmatpush.msra.mxu0 0.0
    %2208 = vmatpush.msra.mxu0 0.0
    %2209 = vmatpush.msra.mxu0 0.0
    %2210 = vmatpush.msra.mxu0 0.0
    %2211 = vmatpush.msra.mxu0 0.0
    %2212 = vmatpush.msra.mxu0 0.0
    %2213 = vmatpush.msra.mxu0 0.0
    %2214 = vmatpush.msra.mxu0 0.0
    %2215 = vmatpush.msra.mxu0 0.0
    %2216 = vmatpush.msra.mxu0 %v2189
    %2217 = vmatpush.msra.mxu0 %v2188
    %2218 = vmatpush.msra.mxu0 %v2187
    %2219 = vmatpush.msra.mxu0 %v2186
    %2220 = vmatmul.f32.gmra.mxu0 %v2193
    %v2221 = vpop.f32.mrf.mxu0
    %v2222 = vadd.f32 %v2191, %v2221
    %2223 = vmatmul.f32.gmra.mxu0 %v2196
    %v2224 = vpop.f32.mrf.mxu0
    %v2225 = vadd.f32 %v2191, %v2224
    %2226 = vmatmul.f32.gmra.mxu0 %v2199
    %v2227 = vpop.f32.mrf.mxu0
    %v2228 = vadd.f32 %v2191, %v2227
    %2229 = vmatmul.f32.gmra.mxu0 %v2202
    %v2230 = vpop.f32.mrf.mxu0
    %v2231 = vadd.f32 %v2191, %v2230
    %2232 = vdwg.mxu0
    %v2233 = vld [vmem:[#allocation2 + $0x528] sm:$0xff]
    %v2234 = vld [vmem:[#allocation2 + $0x530] sm:$0xff]
    %v2235 = vld [vmem:[#allocation2 + $0x538] sm:$0x1]
    %v2236 = vperm.slane %v2235, 0
    %v2238 = vsel %vm1060, %v2184, 0
    %v2241 = vsel %vm1060, %v2185, 0
    %2243 = vmatpush.msra.mxu0 0.0
    %2244 = vmatpush.msra.mxu0 0.0
    %2245 = vmatpush.msra.mxu0 0.0
    %2246 = vmatpush.msra.mxu0 0.0
    %2247 = vmatpush.msra.mxu0 0.0
    %2248 = vmatpush.msra.mxu0 0.0
    %2249 = vmatpush.msra.mxu0 0.0
    %2250 = vmatpush.msra.mxu0 0.0
    %2251 = vmatpush.msra.mxu0 0.0
    %2252 = vmatpush.msra.mxu0 0.0
    %2253 = vmatpush.msra.mxu0 0.0
    %2254 = vmatpush.msra.mxu0 0.0
    %2255 = vmatpush.msra.mxu0 0.0
    %2256 = vmatpush.msra.mxu0 0.0
    %2257 = vmatpush.msra.mxu0 %v2234
    %2258 = vmatpush.msra.mxu0 %v2233
    %2259 = vmatmul.f32.gmra.mxu0 %v2238
    %v2260 = vpop.f32.mrf.mxu0
    %v2261 = vadd.f32 %v2236, %v2260
    %2262 = vmatmul.f32.gmra.mxu0 %v2241
    %v2263 = vpop.f32.mrf.mxu0
    %v2264 = vadd.f32 %v2236, %v2263
    %2265 = vdwg.mxu0
    %2272 = vrot.lane.b32.xlu0 %v2222, 96
    %v2273 = vpop.permute.xlu0 %2272
    %2274 = vrot.lane.b32.xlu0 %v2225, 96
    %v2275 = vpop.permute.xlu0 %2274
    %2276 = vrot.lane.b32.xlu0 %v2228, 96
    %v2277 = vpop.permute.xlu0 %2276
    %2278 = vrot.lane.b32.xlu0 %v2231, 96
    %v2279 = vpop.permute.xlu0 %2278
    %2280 = vrot.lane.b32.xlu0 %v2261, 96
    %v2281 = vpop.permute.xlu0 %2280
    %2282 = vrot.lane.b32.xlu0 %v2264, 96
    %v2283 = vpop.permute.xlu0 %2282
    %v2284 = vsel %vm1512, %v2222, 0
    %v2286 = vsel %vm1512, %v2225, 0
    %v2288 = vsel %vm1512, %v2228, 0
    %v2290 = vsel %vm1512, %v2231, 0
    %v2292 = vsel %vm1512, %v2261, 0
    %v2294 = vsel %vm1512, %v2264, 0
    %v2296 = vsel %vm1512, %v2273, 0
    %v2298 = vsel %vm1512, %v2275, 0
    %v2300 = vsel %vm1512, %v2277, 0
    %v2302 = vsel %vm1512, %v2279, 0
    %v2304 = vsel %vm1512, %v2281, 0
    %v2306 = vsel %vm1512, %v2283, 0
    %2308 = vmatpush.xpose.msra.mxu0 0.0
    %2309 = vmatpush.xpose.msra.mxu0 0.0
    %2310 = vmatpush.xpose.msra.mxu0 0.0
    %2311 = vmatpush.xpose.msra.mxu0 0.0
    %2312 = vmatpush.xpose.msra.mxu0 0.0
    %2313 = vmatpush.xpose.msra.mxu0 0.0
    %2314 = vmatpush.xpose.msra.mxu0 0.0
    %2315 = vmatpush.xpose.msra.mxu0 0.0
    %2316 = vmatpush.xpose.msra.mxu0 0.0
    %2317 = vmatpush.xpose.msra.mxu0 0.0
    %2318 = vmatpush.xpose.msra.mxu0 %v2306
    %2319 = vmatpush.xpose.msra.mxu0 %v2304
    %2320 = vmatpush.xpose.msra.mxu0 %v2302
    %2321 = vmatpush.xpose.msra.mxu0 %v2300
    %2322 = vmatpush.xpose.msra.mxu0 %v2298
    %2323 = vmatpush.xpose.msra.mxu0 %v2296
    %2324 = vmatmul.f32.gmra.mxu0 %v2284
    %v2325 = vpop.f32.mrf.mxu0
    %v2326 = vadd.f32 0.0, %v2325
    %2327 = vmatmul.f32.gmra.mxu0 %v2286
    %v2328 = vpop.f32.mrf.mxu0
    %v2329 = vadd.f32 0.0, %v2328
    %2330 = vmatmul.f32.gmra.mxu0 %v2288
    %v2331 = vpop.f32.mrf.mxu0
    %v2332 = vadd.f32 0.0, %v2331
    %2333 = vmatmul.f32.gmra.mxu0 %v2290
    %v2334 = vpop.f32.mrf.mxu0
    %v2335 = vadd.f32 0.0, %v2334
    %2336 = vmatmul.f32.gmra.mxu0 %v2292
    %v2337 = vpop.f32.mrf.mxu0
    %v2338 = vadd.f32 0.0, %v2337
    %2339 = vmatmul.f32.gmra.mxu0 %v2294
    %v2340 = vpop.f32.mrf.mxu0
    %v2341 = vadd.f32 0.0, %v2340
    %2342 = vdwg.mxu0
    %v2343 = vmul.f32 %v2326, 0.17677669
    %v2344 = vmul.f32 %v2329, 0.17677669
    %v2345 = vmul.f32 %v2332, 0.17677669
    %v2346 = vmul.f32 %v2335, 0.17677669
    %v2347 = vmul.f32 %v2338, 0.17677669
    %v2348 = vmul.f32 %v2341, 0.17677669
    %v2349 = vadd.f32 %v2343, %v30
    %v2350 = vadd.f32 %v2344, %v31
    %v2351 = vadd.f32 %v2345, %v32
    %v2352 = vadd.f32 %v2346, %v33
    %v2353 = vadd.f32 %v2347, %v34
    %v2354 = vadd.f32 %v2348, %v35
    %v2355 = vsel %vm1676, %v2349, -inf
    %2356 = vmax.xlane.f32.xlu0 %v2355
    %v2357 = vpop.xlane.xlu0 %2356
    %v2358 = vsel %vm1676, %v2350, -inf
    %2359 = vmax.xlane.f32.xlu0 %v2358
    %v2360 = vpop.xlane.xlu0 %2359
    %v2361 = vsel %vm1676, %v2351, -inf
    %2362 = vmax.xlane.f32.xlu0 %v2361
    %v2363 = vpop.xlane.xlu0 %2362
    %v2364 = vsel %vm1676, %v2352, -inf
    %2365 = vmax.xlane.f32.xlu0 %v2364
    %v2366 = vpop.xlane.xlu0 %2365
    %v2367 = vsel %vm1676, %v2353, -inf
    %2368 = vmax.xlane.f32.xlu0 %v2367
    %v2369 = vpop.xlane.xlu0 %2368
    %v2370 = vsel %vm1676, %v2354, -inf
    %2371 = vmax.xlane.f32.xlu0 %v2370
    %v2372 = vpop.xlane.xlu0 %2371
    %v2373 = vsub.f32 %v2349, %v2357
    %v2374 = vsub.f32 %v2350, %v2360
    %v2375 = vsub.f32 %v2351, %v2363
    %v2376 = vsub.f32 %v2352, %v2366
    %v2377 = vsub.f32 %v2353, %v2369
    %v2378 = vsub.f32 %v2354, %v2372
    %v2379 = vmul.f32 %v2373, 1.442695
    %v2380 = vpow.pop %v2379
    %v2381 = vmul.f32 %v2374, 1.442695
    %v2382 = vpow.pop %v2381
    %v2383 = vmul.f32 %v2375, 1.442695
    %v2384 = vpow.pop %v2383
    %v2385 = vmul.f32 %v2376, 1.442695
    %v2386 = vpow.pop %v2385
    %v2387 = vmul.f32 %v2377, 1.442695
    %v2388 = vpow.pop %v2387
    %v2389 = vmul.f32 %v2378, 1.442695
    %v2390 = vpow.pop %v2389
    %v2391 = vsel %vm1676, %v2380, 0.0
    %2392 = vadd.xlane.f32.xlu0 %v2391
    %v2393 = vpop.xlane.xlu0 %2392
    %v2394 = vsel %vm1676, %v2382, 0.0
    %2395 = vadd.xlane.f32.xlu0 %v2394
    %v2396 = vpop.xlane.xlu0 %2395
    %v2397 = vsel %vm1676, %v2384, 0.0
    %2398 = vadd.xlane.f32.xlu0 %v2397
    %v2399 = vpop.xlane.xlu0 %2398
    %v2400 = vsel %vm1676, %v2386, 0.0
    %2401 = vadd.xlane.f32.xlu0 %v2400
    %v2402 = vpop.xlane.xlu0 %2401
    %v2403 = vsel %vm1676, %v2388, 0.0
    %2404 = vadd.xlane.f32.xlu0 %v2403
    %v2405 = vpop.xlane.xlu0 %2404
    %v2406 = vsel %vm1676, %v2390, 0.0
    %2407 = vadd.xlane.f32.xlu0 %v2406
    %v2408 = vpop.xlane.xlu0 %2407
    %2409 = vrot.lane.b32.xlu0 %v2222, 64
    %v2410 = vpop.permute.xlu0 %2409
    %2411 = vrot.lane.b32.xlu0 %v2225, 64
    %v2412 = vpop.permute.xlu0 %2411
    %2413 = vrot.lane.b32.xlu0 %v2228, 64
    %v2414 = vpop.permute.xlu0 %2413
    %2415 = vrot.lane.b32.xlu0 %v2231, 64
    %v2416 = vpop.permute.xlu0 %2415
    %2417 = vrot.lane.b32.xlu0 %v2261, 64
    %v2418 = vpop.permute.xlu0 %2417
    %2419 = vrot.lane.b32.xlu0 %v2264, 64
    %v2420 = vpop.permute.xlu0 %2419
    %v2428 = vsel %vm1676, %v2380, 0
    %v2431 = vsel %vm1676, %v2382, 0
    %v2434 = vsel %vm1676, %v2384, 0
    %v2437 = vsel %vm1676, %v2386, 0
    %v2440 = vsel %vm1676, %v2388, 0
    %v2443 = vsel %vm1676, %v2390, 0
    %2445 = vmatpush.msra.mxu0 0.0
    %2446 = vmatpush.msra.mxu0 0.0
    %2447 = vmatpush.msra.mxu0 0.0
    %2448 = vmatpush.msra.mxu0 0.0
    %2449 = vmatpush.msra.mxu0 0.0
    %2450 = vmatpush.msra.mxu0 0.0
    %2451 = vmatpush.msra.mxu0 0.0
    %2452 = vmatpush.msra.mxu0 0.0
    %2453 = vmatpush.msra.mxu0 0.0
    %2454 = vmatpush.msra.mxu0 0.0
    %2455 = vmatpush.msra.mxu0 %v2420
    %2456 = vmatpush.msra.mxu0 %v2418
    %2457 = vmatpush.msra.mxu0 %v2416
    %2458 = vmatpush.msra.mxu0 %v2414
    %2459 = vmatpush.msra.mxu0 %v2412
    %2460 = vmatpush.msra.mxu0 %v2410
    %2461 = vmatmul.f32.gmra.mxu0 %v2428
    %v2462 = vpop.f32.mrf.mxu0
    %v2463 = vadd.f32 0.0, %v2462
    %2464 = vmatmul.f32.gmra.mxu0 %v2431
    %v2465 = vpop.f32.mrf.mxu0
    %v2466 = vadd.f32 0.0, %v2465
    %2467 = vmatmul.f32.gmra.mxu0 %v2434
    %v2468 = vpop.f32.mrf.mxu0
    %v2469 = vadd.f32 0.0, %v2468
    %2470 = vmatmul.f32.gmra.mxu0 %v2437
    %v2471 = vpop.f32.mrf.mxu0
    %v2472 = vadd.f32 0.0, %v2471
    %2473 = vmatmul.f32.gmra.mxu0 %v2440
    %v2474 = vpop.f32.mrf.mxu0
    %v2475 = vadd.f32 0.0, %v2474
    %2476 = vmatmul.f32.gmra.mxu0 %v2443
    %v2477 = vpop.f32.mrf.mxu0
    %v2478 = vadd.f32 0.0, %v2477
    %2479 = vdwg.mxu0
    %v2480 = vrcp.pop %v2393
    %v2481 = vrcp.pop %v2396
    %v2482 = vrcp.pop %v2399
    %v2483 = vrcp.pop %v2402
    %v2484 = vrcp.pop %v2405
    %v2485 = vrcp.pop %v2408
    %v2486 = vmul.f32 %v2463, %v2480
    %v2487 = vmul.f32 %v2466, %v2481
    %v2488 = vmul.f32 %v2469, %v2482
    %v2489 = vmul.f32 %v2472, %v2483
    %v2490 = vmul.f32 %v2475, %v2484
    %v2491 = vmul.f32 %v2478, %v2485
    %v2492 = vld [vmem:[#allocation2 + $0x540] sm:$0xff]
    %v2493 = vld [vmem:[#allocation2 + $0x548] sm:$0xff]
    %v2494 = vld [vmem:[#allocation2 + $0x550] sm:$0xff]
    %v2495 = vld [vmem:[#allocation2 + $0x558] sm:$0xff]
    %v2496 = vld [vmem:[#allocation2 + $0x560] sm:$0x1]
    %v2497 = vperm.slane %v2496, 0
    %v2499 = vsel %vm1512, %v2486, 0
    %v2502 = vsel %vm1512, %v2487, 0
    %v2505 = vsel %vm1512, %v2488, 0
    %v2508 = vsel %vm1512, %v2489, 0
    %v2511 = vsel %vm1512, %v2490, 0
    %v2514 = vsel %vm1512, %v2491, 0
    %2516 = vmatpush.msra.mxu0 0.0
    %2517 = vmatpush.msra.mxu0 0.0
    %2518 = vmatpush.msra.mxu0 0.0
    %2519 = vmatpush.msra.mxu0 0.0
    %2520 = vmatpush.msra.mxu0 0.0
    %2521 = vmatpush.msra.mxu0 0.0
    %2522 = vmatpush.msra.mxu0 0.0
    %2523 = vmatpush.msra.mxu0 0.0
    %2524 = vmatpush.msra.mxu0 0.0
    %2525 = vmatpush.msra.mxu0 0.0
    %2526 = vmatpush.msra.mxu0 0.0
    %2527 = vmatpush.msra.mxu0 0.0
    %2528 = vmatpush.msra.mxu0 %v2495
    %2529 = vmatpush.msra.mxu0 %v2494
    %2530 = vmatpush.msra.mxu0 %v2493
    %2531 = vmatpush.msra.mxu0 %v2492
    %2532 = vmatmul.f32.gmra.mxu0 %v2499
    %v2533 = vpop.f32.mrf.mxu0
    %2534 = vmatmul.f32.gmra.mxu0 %v2502
    %v2535 = vpop.f32.mrf.mxu0
    %2536 = vmatmul.f32.gmra.mxu0 %v2505
    %v2537 = vpop.f32.mrf.mxu0
    %2538 = vmatmul.f32.gmra.mxu0 %v2508
    %v2539 = vpop.f32.mrf.mxu0
    %2540 = vmatmul.f32.gmra.mxu0 %v2511
    %v2541 = vpop.f32.mrf.mxu0
    %v2542 = vadd.f32 %v2497, %v2541
    %2543 = vmatmul.f32.gmra.mxu0 %v2514
    %v2544 = vpop.f32.mrf.mxu0
    %v2545 = vadd.f32 %v2497, %v2544
    %2546 = vdwg.mxu0
    %2549 = vrot.lane.b32.xlu0 %v2542, 96
    %v2550 = vpop.permute.xlu0 %2549
    %2551 = vrot.lane.b32.xlu0 %v2545, 96
    %v2552 = vpop.permute.xlu0 %2551
    %v2555 = vadd.f32 %v2184, %v2550
    %v2556 = vadd.f32 %v2185, %v2552
    %v2557 = vld [vmem:[#allocation2 + $0x618] sm:$0xff]
    %v2558 = vld [vmem:[#allocation2 + $0x620] sm:$0xff]
    %v2559 = vld [vmem:[#allocation2 + $0x628] sm:$0x1]
    %v2560 = vperm.slane %v2559, 0
    %v2562 = vsel %vm1060, %v2555, 0
    %v2565 = vsel %vm1060, %v2556, 0
    %2567 = vmatpush.msra.mxu0 0.0
    %2568 = vmatpush.msra.mxu0 0.0
    %2569 = vmatpush.msra.mxu0 0.0
    %2570 = vmatpush.msra.mxu0 0.0
    %2571 = vmatpush.msra.mxu0 0.0
    %2572 = vmatpush.msra.mxu0 0.0
    %2573 = vmatpush.msra.mxu0 0.0
    %2574 = vmatpush.msra.mxu0 0.0
    %2575 = vmatpush.msra.mxu0 0.0
    %2576 = vmatpush.msra.mxu0 0.0
    %2577 = vmatpush.msra.mxu0 0.0
    %2578 = vmatpush.msra.mxu0 0.0
    %2579 = vmatpush.msra.mxu0 0.0
    %2580 = vmatpush.msra.mxu0 0.0
    %2581 = vmatpush.msra.mxu0 %v2558
    %2582 = vmatpush.msra.mxu0 %v2557
    %2583 = vmatmul.f32.gmra.mxu0 %v2562
    %v2584 = vpop.f32.mrf.mxu0
    %v2585 = vadd.f32 %v2560, %v2584
    %2586 = vmatmul.f32.gmra.mxu0 %v2565
    %v2587 = vpop.f32.mrf.mxu0
    %v2588 = vadd.f32 %v2560, %v2587
    %2589 = vdwg.mxu0
    %v2590 = vxor.u32 %v2585, 2147483648
    %v2591 = vxor.u32 %v2588, 2147483648
    %v2592 = vmul.f32 %v2590, 1.442695
    %v2593 = vpow.pop %v2592
    %v2594 = vmul.f32 %v2591, 1.442695
    %v2595 = vpow.pop %v2594
    %v2596 = vadd.f32 %v2593, 1.0
    %v2597 = vadd.f32 %v2595, 1.0
    %v2598 = vrcp.pop %v2596
    %v2599 = vmul.f32 %v2596, %v2598
    %v2600 = vsub.f32 1.0, %v2599
    %v2601 = vmul.f32 %v2598, %v2600
    %v2602 = vadd.f32 %v2598, %v2601
    %vm2603 = vweird.f32 %v2596
    %vm2604 = vweird.f32 %v2598
    %vm2605 = vmor %vm2603, %vm2604
    %v2606 = vsel %vm2605, %v2598, %v2602
    %v2607 = vand.u32 2147483647, %v2596
    %vm2608 = vcmp.eq.f32.partialorder %v2607, 8.507059e+37
    %v2609 = vand.u32 %v2596, 2147483648
    %v2610 = vor.u32 1.1754944e-38, %v2609
    %v2611 = vsel %vm2608, %v2610, %v2606
    %v2612 = vmul.f32 1.0, %v2611
    %v2613 = vrcp.pop %v2597
    %v2614 = vmul.f32 %v2597, %v2613
    %v2615 = vsub.f32 1.0, %v2614
    %v2616 = vmul.f32 %v2613, %v2615
    %v2617 = vadd.f32 %v2613, %v2616
    %vm2618 = vweird.f32 %v2597
    %vm2619 = vweird.f32 %v2613
    %vm2620 = vmor %vm2618, %vm2619
    %v2621 = vsel %vm2620, %v2613, %v2617
    %v2622 = vand.u32 2147483647, %v2597
    %vm2623 = vcmp.eq.f32.partialorder %v2622, 8.507059e+37
    %v2624 = vand.u32 %v2597, 2147483648
    %v2625 = vor.u32 1.1754944e-38, %v2624
    %v2626 = vsel %vm2623, %v2625, %v2621
    %v2627 = vmul.f32 1.0, %v2626
    %v2628 = vmul.f32 %v2585, %v2612
    %v2629 = vmul.f32 %v2588, %v2627
    %v2630 = vld [vmem:[#allocation2 + $0x630] sm:$0xff]
    %v2631 = vld [vmem:[#allocation2 + $0x638] sm:$0xff]
    %v2632 = vld [vmem:[#allocation2 + $0x640] sm:$0xff]
    %v2633 = vld [vmem:[#allocation2 + $0x648] sm:$0xff]
    %v2634 = vld [vmem:[#allocation2 + $0x650] sm:$0xff]
    %v2635 = vld [vmem:[#allocation2 + $0x658] sm:$0xff]
    %v2636 = vld [vmem:[#allocation2 + $0x660] sm:$0xff]
    %v2637 = vld [vmem:[#allocation2 + $0x668] sm:$0xff]
    %v2639 = vsel %vm2150, %v2628, 0
    %v2642 = vsel %vm2150, %v2629, 0
    %2644 = vmatpush.msra.mxu0 0.0
    %2645 = vmatpush.msra.mxu0 0.0
    %2646 = vmatpush.msra.mxu0 0.0
    %2647 = vmatpush.msra.mxu0 0.0
    %2648 = vmatpush.msra.mxu0 0.0
    %2649 = vmatpush.msra.mxu0 0.0
    %2650 = vmatpush.msra.mxu0 0.0
    %2651 = vmatpush.msra.mxu0 0.0
    %2652 = vmatpush.msra.mxu0 %v2637
    %2653 = vmatpush.msra.mxu0 %v2636
    %2654 = vmatpush.msra.mxu0 %v2635
    %2655 = vmatpush.msra.mxu0 %v2634
    %2656 = vmatpush.msra.mxu0 %v2633
    %2657 = vmatpush.msra.mxu0 %v2632
    %2658 = vmatpush.msra.mxu0 %v2631
    %2659 = vmatpush.msra.mxu0 %v2630
    %2660 = vmatmul.f32.gmra.mxu0 %v2639
    %v2661 = vpop.f32.mrf.mxu0
    %v2662 = vadd.f32 0.0, %v2661
    %2663 = vmatmul.f32.gmra.mxu0 %v2642
    %v2664 = vpop.f32.mrf.mxu0
    %v2665 = vadd.f32 0.0, %v2664
    %2666 = vdwg.mxu0
    %v2667 = vadd.f32 %v2555, %v2662
    %v2668 = vadd.f32 %v2556, %v2665
    %v2669 = vld [vmem:[#allocation2 + $0x670] sm:$0x1]
    %v2670 = vperm.slane %v2669, 0
    %v2671 = vadd.f32 %v2667, %v2670
    %v2672 = vadd.f32 %v2668, %v2670
    %v2673 = vld [vmem:[#allocation2 + $0x370] sm:$0xff]
    %v2674 = vld [vmem:[#allocation2 + $0x378] sm:$0xff]
    %v2675 = vld [vmem:[#allocation2 + $0x380] sm:$0x1]
    %v2676 = vperm.slane %v2675, 0
    %v2678 = vsel %vm1060, %v2671, 0
    %v2681 = vsel %vm1060, %v2672, 0
    %2683 = vmatpush.msra.mxu0 0.0
    %2684 = vmatpush.msra.mxu0 0.0
    %2685 = vmatpush.msra.mxu0 0.0
    %2686 = vmatpush.msra.mxu0 0.0
    %2687 = vmatpush.msra.mxu0 0.0
    %2688 = vmatpush.msra.mxu0 0.0
    %2689 = vmatpush.msra.mxu0 0.0
    %2690 = vmatpush.msra.mxu0 0.0
    %2691 = vmatpush.msra.mxu0 0.0
    %2692 = vmatpush.msra.mxu0 0.0
    %2693 = vmatpush.msra.mxu0 0.0
    %2694 = vmatpush.msra.mxu0 0.0
    %2695 = vmatpush.msra.mxu0 0.0
    %2696 = vmatpush.msra.mxu0 0.0
    %2697 = vmatpush.msra.mxu0 %v2674
    %2698 = vmatpush.msra.mxu0 %v2673
    %2699 = vmatmul.f32.gmra.mxu0 %v2678
    %v2700 = vpop.f32.mrf.mxu0
    %v2701 = vadd.f32 %v2676, %v2700
    %2702 = vmatmul.f32.gmra.mxu0 %v2681
    %v2703 = vpop.f32.mrf.mxu0
    %v2704 = vadd.f32 %v2676, %v2703
    %2705 = vdwg.mxu0
    %2708 = vrot.lane.b32.xlu0 %v2701, 6
    %v2709 = vpop.permute.xlu0 %2708
    %2710 = vrot.lane.b32.xlu0 %v2704, 6
    %v2711 = vpop.permute.xlu0 %2710
    %v2714 = vsub.f32 %v671, %v2709
    %v2715 = vsub.f32 %v672, %v2711
    %v2716 = vmul.f32 %v2714, %v2714
    %v2717 = vmul.f32 %v2715, %v2715
    %2720 = vrot.lane.b32.xlu0 %v2716, 122
    %v2721 = vpop.permute.xlu0 %2720
    %2722 = vrot.lane.b32.xlu0 %v2717, 122
    %v2723 = vpop.permute.xlu0 %2722
    %2726 = vst.msk [vmem:[%s3] sm:$0xff] %vm284, %v2721
    %2727 = vst.msk [vmem:[%s3 + $0x8] sm:$0xff] %vm284, %v2723
    // Predicated region
    $region18: #{vla_flow_matching_forward.1} parent=1 // pred_check
      _
    $region19: #{vla_flow_matching_forward.1} parent=1 // pred_check_branch
      %2729 = sbr.rel (0) target = $region21
    $region20: #{vla_flow_matching_forward.1} parent=1 // pred_region
      _
    $region21: #{vla_flow_matching_forward.1} parent=1 // pred_fallthru
      _
    // Predicated region
    $region22: #{vla_flow_matching_forward.1} parent=1 // pred_check
      _
    $region23: #{vla_flow_matching_forward.1} parent=1 // pred_check_branch
      %2731 = sbr.rel (0) target = $region25
    $region24: #{vla_flow_matching_forward.1} parent=1 // pred_region
      _
    $region25: #{vla_flow_matching_forward.1} parent=1 // pred_fallthru
      _
    %2732 = vsyncpa [#allocation3], 1

</llo_original>
